<compile_context>
chip_gen: v5e
topology: v5e:2x2
jax: 0.10.0
libtpu: 0.0.40
codegen_flags: <defaults>
</compile_context>

<pallas_src>
import functools

import jax
import jax.numpy as jnp
from jax.experimental import pallas as pl
from jax.experimental.pallas import tpu as pltpu


LANES = 128          # pad Cout to a full 128-lane vreg -> unmasked stores
BN_EPS = 1e-5
LRELU_SLOPE = 0.2

# For ConvTranspose2d(k=4, stride=2, pad=1): output row 2i+py reads rows i+dy of
# the pad-1 input with kernel row ky, for (dy, ky) in _TAPS[py] (same along W).
_TAPS = {0: ((0, 3), (1, 1)), 1: ((1, 2), (2, 0))}
_PHASES = ((0, 0), (0, 1), (1, 0), (1, 1))


# ---------------------------------------------------------------------------
# Pallas kernels
# ---------------------------------------------------------------------------
def _mean_gm(x):
    # Mean over the (group, row) dims of a (G, M, C) array -> (1, 1, C).
    return jnp.mean(jnp.mean(x, axis=1, keepdims=True), axis=0, keepdims=True)


def _grouped_matmul_bn_lrelu_kernel(x_ref, w_ref, gamma_ref, beta_ref, o_ref):
    # x: (G, M, K) bf16 patches, w: (G, K, 128) bf16, gamma/beta: (1, 1, 128) f32.
    y = jnp.einsum("gmk,gkc->gmc", x_ref[...], w_ref[...],
                   preferred_element_type=jnp.float32)
    mean = _mean_gm(y)                            # batch stats over all G*M rows
    var = _mean_gm(jnp.square(y - mean))          # biased variance (PyTorch train)
    yn = (y - mean) * jax.lax.rsqrt(var + BN_EPS)
    yn = yn * gamma_ref[...] + beta_ref[...]
    o_ref[...] = jnp.where(yn >= 0.0, yn, LRELU_SLOPE * yn).astype(o_ref.dtype)


def _grouped_matmul_tanh_kernel(x_ref, w_ref, o_ref):
    # One output phase per grid step: (M, K) x (K, 128) -> (M, 128).
    y = jnp.dot(x_ref[0], w_ref[0], preferred_element_type=jnp.float32)
    o_ref[0] = jnp.tanh(y)


# ---------------------------------------------------------------------------
# pallas_call wrappers
# ---------------------------------------------------------------------------
def _full_block(shape):
    return pl.BlockSpec(shape, lambda: (0,) * len(shape))


def grouped_matmul_bn_lrelu(x, w, gamma, beta):
    G, M, K = x.shape
    C = w.shape[-1]
    return pl.pallas_call(
        _grouped_matmul_bn_lrelu_kernel,
        out_shape=jax.ShapeDtypeStruct((G, M, C), jnp.bfloat16),
        in_specs=[_full_block((G, M, K)), _full_block((G, K, C)),
                  _full_block((1, 1, C)), _full_block((1, 1, C))],
        out_specs=_full_block((G, M, C)),
    )(x, w, gamma, beta)


def grouped_matmul_tanh(x, w):
    G, M, K = x.shape
    C = w.shape[-1]
    return pl.pallas_call(
        _grouped_matmul_tanh_kernel,
        out_shape=jax.ShapeDtypeStruct((G, M, C), jnp.float32),
        grid=(G,),
        in_specs=[pl.BlockSpec((1, M, K), lambda g: (g, 0, 0)),
                  pl.BlockSpec((1, K, C), lambda g: (g, 0, 0))],
        out_specs=pl.BlockSpec((1, M, C), lambda g: (g, 0, 0)),
        compiler_params=pltpu.CompilerParams(
            dimension_semantics=("parallel",)),   # megacore use on v7x
    )(x, w)


# ---------------------------------------------------------------------------
# Weight preprocessing (done once, outside the jitted forward)
# ---------------------------------------------------------------------------
def _pad_cout(w2d, cout_pad=LANES):
    c = w2d.shape[-1]
    if c >= cout_pad:
        return w2d
    pad = [(0, 0)] * (w2d.ndim - 1) + [(0, cout_pad - c)]
    return jnp.pad(w2d, pad)


def _phase_weight_matrices(w):
    # w: (Cin, Cout, 4, 4) ConvTranspose2d weight -> (4, 4*Cin, 128) bf16,
    # one (4*Cin, Cout)->pad128 matrix per output phase (row order matches the
    # tap-concatenation order used in _phase_patches).
    mats = []
    for (py, px) in _PHASES:
        rows = []
        for (_, ky) in _TAPS[py]:
            for (_, kx) in _TAPS[px]:
                rows.append(w[:, :, ky, kx])          # (Cin, Cout)
        mats.append(jnp.concatenate(rows, axis=0))     # (4*Cin, Cout)
    wph = jnp.stack(mats, axis=0)                      # (4, 4*Cin, Cout)
    return _pad_cout(wph).astype(jnp.bfloat16)


def _first_layer_weight_matrix(w):
    # ConvT(Z, Cout, 4, 1, 0) on a 1x1 input: out[n, co, ky, kx] = z[n] . w[:, co, ky, kx].
    # Single (16*Z, Cout) matrix with rows ordered (s = ky*4 + kx, ci).
    z_dim, cout = w.shape[0], w.shape[1]
    wmat = w.transpose(2, 3, 0, 1).reshape(16 * z_dim, cout)
    return _pad_cout(wmat)[None].astype(jnp.bfloat16)  # (1, 16*Z, 128)


# ---------------------------------------------------------------------------
# Activation-side glue (cheap XLA slices/concat/reshape, no dilation zeros)
# ---------------------------------------------------------------------------
def _first_layer_patches(z):
    # Row (n, s) holds z[n] in channel-block s.  Tiny (N*16, 16*Z) matrix; the
    # structural zeros here are negligible (the zero-free phase decomposition
    # is used for the stride-2 layers where it matters).
    n, z_dim = z.shape
    eye = jnp.eye(16, dtype=z.dtype)
    patches = (eye[None, :, :, None] * z[:, None, None, :]).reshape(n * 16, 16 * z_dim)
    return patches[None].astype(jnp.bfloat16)           # (1, N*16, 16*Z)


def _phase_patches(x_nhwc, cin):
    # x_nhwc: (N, H, W, 128) lane-padded activation; only the first `cin`
    # channels are real.  Returns (4, N*H*W, 4*cin) bf16 patches.
    n, h, w, _ = x_nhwc.shape
    xp = jnp.pad(x_nhwc[..., :cin], ((0, 0), (1, 1), (1, 1), (0, 0)))
    phases = []
    for (py, px) in _PHASES:
        taps = []
        for (dy, _) in _TAPS[py]:
            for (dx, _) in _TAPS[px]:
                taps.append(xp[:, dy:dy + h, dx:dx + w, :])
        phases.append(jnp.concatenate(taps, axis=-1).reshape(n * h * w, 4 * cin))
    return jnp.stack(phases, axis=0).astype(jnp.bfloat16)


def _interleave_phases(yph, n, h, w):
    # yph: (4, N*H*W, C) with phase order (py, px) -> (N, 2H, 2W, C) interleaved.
    c = yph.shape[-1]
    y = yph.reshape(2, 2, n, h, w, c)        # (py, px, n, i, j, c)
    y = y.transpose(2, 3, 0, 4, 1, 5)        # (n, i, py, j, px, c)
    return y.reshape(n, 2 * h, 2 * w, c)


# ---------------------------------------------------------------------------
# Generator (img_size == 32 branch of the PyTorch module)
# ---------------------------------------------------------------------------
def init_generator_params(key, noise_dim, hidden_dim, rgb_channels):
    h = hidden_dim
    layer_io = [
        (noise_dim, 4 * h),  # ConvT(Z, 4H, 4, 1, 0)
        (4 * h, 2 * h),      # ConvT(4H, 2H, 4, 2, 1)
        (2 * h, h),          # ConvT(2H, H, 4, 2, 1)
        (h, rgb_channels),   # ConvT(H, RGB, 4, 2, 1)
    ]
    params = []
    for i, (cin, cout) in enumerate(layer_io):
        key, sub = jax.random.split(key)
        w = 0.05 * jax.random.normal(sub, (cin, cout, 4, 4), dtype=jnp.float32)
        if i < 3:  # BatchNorm affine params (default init: gamma=1, beta=0)
            gamma = jnp.ones((cout,), jnp.float32)
            beta = jnp.zeros((cout,), jnp.float32)
        else:
            gamma = beta = None
        params.append((w, gamma, beta))
    return params


def prepare_generator_params(params):
    (w1, g1, b1), (w2, g2, b2), (w3, g3, b3), (w4, _, _) = params

    def pad_affine(g, b):
        gp = jnp.ones((1, 1, LANES), jnp.float32).at[0, 0, :g.shape[0]].set(g)
        bp = jnp.zeros((1, 1, LANES), jnp.float32).at[0, 0, :b.shape[0]].set(b)
        return gp, bp

    return {
        "w1": _first_layer_weight_matrix(w1), "bn1": pad_affine(g1, b1),
        "w2": _phase_weight_matrices(w2),     "bn2": pad_affine(g2, b2),
        "w3": _phase_weight_matrices(w3),     "bn3": pad_affine(g3, b3),
        "w4": _phase_weight_matrices(w4),
    }


@functools.partial(jax.jit, static_argnames=("rgb_channels",))
def generator_forward(z, prepared, rgb_channels):
    # z: (N, Z, 1, 1) noise, NCHW like the PyTorch module.
    n = z.shape[0]
    zz = z.reshape(n, -1)

    w1 = prepared["w1"]; g1, b1 = prepared["bn1"]
    w2 = prepared["w2"]; g2, b2 = prepared["bn2"]
    w3 = prepared["w3"]; g3, b3 = prepared["bn3"]
    w4 = prepared["w4"]

    # layer 1: ConvT(Z, 4H, 4, 1, 0) + BN + LeakyReLU  -> (N, 4, 4, 128)
    x1 = grouped_matmul_bn_lrelu(_first_layer_patches(zz), w1, g1, b1)
    x1 = x1.reshape(n, 4, 4, LANES)

    # layer 2: ConvT(4H, 2H, 4, 2, 1) + BN + LeakyReLU -> (N, 8, 8, 128)
    cin2 = w2.shape[1] // 4
    y2 = grouped_matmul_bn_lrelu(_phase_patches(x1, cin2), w2, g2, b2)
    x2 = _interleave_phases(y2, n, 4, 4)

    # layer 3: ConvT(2H, H, 4, 2, 1) + BN + LeakyReLU  -> (N, 16, 16, 128)
    cin3 = w3.shape[1] // 4
    y3 = grouped_matmul_bn_lrelu(_phase_patches(x2, cin3), w3, g3, b3)
    x3 = _interleave_phases(y3, n, 8, 8)

    # layer 4: ConvT(H, RGB, 4, 2, 1) + Tanh           -> (N, 32, 32, 128)
    cin4 = w4.shape[1] // 4
    y4 = grouped_matmul_tanh(_phase_patches(x3, cin4), w4)
    x4 = _interleave_phases(y4, n, 16, 16)

    # Drop the lane padding and return NCHW like the PyTorch module.
    return x4[..., :rgb_channels].transpose(0, 3, 1, 2)


if __name__ == "__main__":
    NOISE_DIM = 8      # INPUT_NOISE_VECTOR
    HIDDEN_DIM = 8     # HIDDEN_DIM_GEN
    RGB = 3            # RGB_CHANNEL
    BATCH = 2
    IMG_SIZE = 32

    key = jax.random.PRNGKey(0)
    key, zkey = jax.random.split(key)
    z = jax.random.normal(zkey, (BATCH, NOISE_DIM, 1, 1), dtype=jnp.float32)

    params = init_generator_params(key, NOISE_DIM, HIDDEN_DIM, RGB)
    prepared = prepare_generator_params(params)

    out = generator_forward(z, prepared, rgb_channels=RGB)
    out = jax.block_until_ready(out)

    assert out.shape == (BATCH, RGB, IMG_SIZE, IMG_SIZE), out.shape
    assert bool(jnp.all(jnp.isfinite(out)))
    assert bool(jnp.all(jnp.abs(out) <= 1.0))  # tanh output range
    print("KERNEL_OK")
</pallas_src>

<mosaic_0001>
module attributes {stable_mosaic.version = 11 : i64} {
  func.func @_grouped_matmul_bn_lrelu_kernel(%arg0: memref<1x32x128xbf16, #tpu.memory_space<vmem>>, %arg1: memref<1x128x128xbf16, #tpu.memory_space<vmem>>, %arg2: memref<1x1x128xf32, #tpu.memory_space<vmem>>, %arg3: memref<1x1x128xf32, #tpu.memory_space<vmem>>, %arg4: memref<1x32x128xbf16, #tpu.memory_space<vmem>>) attributes {dimension_semantics = [], scalar_prefetch = 0 : i64, scratch_operands = 0 : i64, tpu.core_type = #tpu.core_type<tc>} {
    %c0 = arith.constant 0 : index
    %c0_0 = arith.constant 0 : index
    %c0_1 = arith.constant 0 : index
    %0 = vector.load %arg0[%c0, %c0_0, %c0_1] : memref<1x32x128xbf16, #tpu.memory_space<vmem>>, vector<1x32x128xbf16>
    %c0_2 = arith.constant 0 : index
    %c0_3 = arith.constant 0 : index
    %c0_4 = arith.constant 0 : index
    %1 = vector.load %arg1[%c0_2, %c0_3, %c0_4] : memref<1x128x128xbf16, #tpu.memory_space<vmem>>, vector<1x128x128xbf16>
    "tpu.trace_start"() <{level = 10 : i32, message = "gmk,gkc->gmc"}> : () -> ()
    %cst = arith.constant dense<0.000000e+00> : vector<1x32x128xf32>
    %2 = tpu.matmul %0, %1, %cst {dimension_numbers = #tpu.dot_dimension_numbers<[2], [1], [1], [2], [0, 0, 0, 1, 1, 2], [0], [0]>} : vector<1x32x128xbf16>, vector<1x128x128xbf16>, vector<1x32x128xf32> -> vector<1x32x128xf32>
    "tpu.trace_stop"() : () -> ()
    %cst_5 = arith.constant dense<0.000000e+00> : vector<1x128xf32>
    %3 = vector.multi_reduction <add>, %2, %cst_5 [1] : vector<1x32x128xf32> to vector<1x128xf32>
    %4 = vector.shape_cast %3 : vector<1x128xf32> to vector<1x1x128xf32>
    %cst_6 = arith.constant 3.200000e+01 : f32
    %5 = vector.broadcast %cst_6 : f32 to vector<1x1x128xf32>
    %6 = arith.divf %4, %5 : vector<1x1x128xf32>
    %cst_7 = arith.constant dense<0.000000e+00> : vector<1x128xf32>
    %7 = vector.multi_reduction <add>, %6, %cst_7 [0] : vector<1x1x128xf32> to vector<1x128xf32>
    %8 = vector.shape_cast %7 : vector<1x128xf32> to vector<1x1x128xf32>
    %cst_8 = arith.constant 1.000000e+00 : f32
    %9 = vector.broadcast %cst_8 : f32 to vector<1x1x128xf32>
    %10 = arith.divf %8, %9 : vector<1x1x128xf32>
    %11 = vector.broadcast %10 : vector<1x1x128xf32> to vector<1x32x128xf32>
    %12 = arith.subf %2, %11 : vector<1x32x128xf32>
    %13 = arith.mulf %12, %12 : vector<1x32x128xf32>
    %cst_9 = arith.constant dense<0.000000e+00> : vector<1x128xf32>
    %14 = vector.multi_reduction <add>, %13, %cst_9 [1] : vector<1x32x128xf32> to vector<1x128xf32>
    %15 = vector.shape_cast %14 : vector<1x128xf32> to vector<1x1x128xf32>
    %cst_10 = arith.constant 3.200000e+01 : f32
    %16 = vector.broadcast %cst_10 : f32 to vector<1x1x128xf32>
    %17 = arith.divf %15, %16 : vector<1x1x128xf32>
    %cst_11 = arith.constant dense<0.000000e+00> : vector<1x128xf32>
    %18 = vector.multi_reduction <add>, %17, %cst_11 [0] : vector<1x1x128xf32> to vector<1x128xf32>
    %19 = vector.shape_cast %18 : vector<1x128xf32> to vector<1x1x128xf32>
    %cst_12 = arith.constant 1.000000e+00 : f32
    %20 = vector.broadcast %cst_12 : f32 to vector<1x1x128xf32>
    %21 = arith.divf %19, %20 : vector<1x1x128xf32>
    %22 = vector.broadcast %10 : vector<1x1x128xf32> to vector<1x32x128xf32>
    %23 = arith.subf %2, %22 : vector<1x32x128xf32>
    %cst_13 = arith.constant 9.99999974E-6 : f32
    %24 = vector.broadcast %cst_13 : f32 to vector<1x1x128xf32>
    %25 = arith.addf %21, %24 : vector<1x1x128xf32>
    %26 = math.rsqrt %25 : vector<1x1x128xf32>
    %27 = vector.broadcast %26 : vector<1x1x128xf32> to vector<1x32x128xf32>
    %28 = arith.mulf %23, %27 : vector<1x32x128xf32>
    %c0_14 = arith.constant 0 : index
    %c0_15 = arith.constant 0 : index
    %c0_16 = arith.constant 0 : index
    %29 = vector.load %arg2[%c0_14, %c0_15, %c0_16] : memref<1x1x128xf32, #tpu.memory_space<vmem>>, vector<1x1x128xf32>
    %30 = vector.broadcast %29 : vector<1x1x128xf32> to vector<1x32x128xf32>
    %31 = arith.mulf %28, %30 : vector<1x32x128xf32>
    %c0_17 = arith.constant 0 : index
    %c0_18 = arith.constant 0 : index
    %c0_19 = arith.constant 0 : index
    %32 = vector.load %arg3[%c0_17, %c0_18, %c0_19] : memref<1x1x128xf32, #tpu.memory_space<vmem>>, vector<1x1x128xf32>
    %33 = vector.broadcast %32 : vector<1x1x128xf32> to vector<1x32x128xf32>
    %34 = arith.addf %31, %33 : vector<1x32x128xf32>
    %cst_20 = arith.constant 0.000000e+00 : f32
    %35 = vector.broadcast %cst_20 : f32 to vector<1x32x128xf32>
    %36 = arith.cmpf oge, %34, %35 : vector<1x32x128xf32>
    %cst_21 = arith.constant 2.000000e-01 : f32
    %37 = vector.broadcast %cst_21 : f32 to vector<1x32x128xf32>
    %38 = arith.mulf %37, %34 : vector<1x32x128xf32>
    %39 = arith.select %36, %34, %38 : vector<1x32x128xi1>, vector<1x32x128xf32>
    %40 = arith.truncf %39 : vector<1x32x128xf32> to vector<1x32x128xbf16>
    %c0_22 = arith.constant 0 : index
    %c0_23 = arith.constant 0 : index
    %c0_24 = arith.constant 0 : index
    %41 = vector.load %arg4[%c0_22, %c0_23, %c0_24] : memref<1x32x128xbf16, #tpu.memory_space<vmem>>, vector<1x32x128xbf16>
    tpu.vector_store %arg4[%c0_22, %c0_23, %c0_24], %40 {strides = array<i32>} : memref<1x32x128xbf16, #tpu.memory_space<vmem>>, vector<1x32x128xbf16>,
    return
  }
}

module attributes {stable_mosaic.version = 11 : i64} {
  func.func @_grouped_matmul_bn_lrelu_kernel(%arg0: memref<4x32x128xbf16, #tpu.memory_space<vmem>>, %arg1: memref<4x128x128xbf16, #tpu.memory_space<vmem>>, %arg2: memref<1x1x128xf32, #tpu.memory_space<vmem>>, %arg3: memref<1x1x128xf32, #tpu.memory_space<vmem>>, %arg4: memref<4x32x128xbf16, #tpu.memory_space<vmem>>) attributes {dimension_semantics = [], scalar_prefetch = 0 : i64, scratch_operands = 0 : i64, tpu.core_type = #tpu.core_type<tc>} {
    %c0 = arith.constant 0 : index
    %c0_0 = arith.constant 0 : index
    %c0_1 = arith.constant 0 : index
    %0 = vector.load %arg0[%c0, %c0_0, %c0_1] : memref<4x32x128xbf16, #tpu.memory_space<vmem>>, vector<4x32x128xbf16>
    %c0_2 = arith.constant 0 : index
    %c0_3 = arith.constant 0 : index
    %c0_4 = arith.constant 0 : index
    %1 = vector.load %arg1[%c0_2, %c0_3, %c0_4] : memref<4x128x128xbf16, #tpu.memory_space<vmem>>, vector<4x128x128xbf16>
    "tpu.trace_start"() <{level = 10 : i32, message = "gmk,gkc->gmc"}> : () -> ()
    %cst = arith.constant dense<0.000000e+00> : vector<4x32x128xf32>
    %2 = tpu.matmul %0, %1, %cst {dimension_numbers = #tpu.dot_dimension_numbers<[2], [1], [1], [2], [0, 0, 0, 1, 1, 2], [0], [0]>} : vector<4x32x128xbf16>, vector<4x128x128xbf16>, vector<4x32x128xf32> -> vector<4x32x128xf32>
    "tpu.trace_stop"() : () -> ()
    %cst_5 = arith.constant dense<0.000000e+00> : vector<4x128xf32>
    %3 = vector.multi_reduction <add>, %2, %cst_5 [1] : vector<4x32x128xf32> to vector<4x128xf32>
    %4 = vector.shape_cast %3 : vector<4x128xf32> to vector<4x1x128xf32>
    %cst_6 = arith.constant 3.200000e+01 : f32
    %5 = vector.broadcast %cst_6 : f32 to vector<4x1x128xf32>
    %6 = arith.divf %4, %5 : vector<4x1x128xf32>
    %cst_7 = arith.constant dense<0.000000e+00> : vector<1x128xf32>
    %7 = vector.multi_reduction <add>, %6, %cst_7 [0] : vector<4x1x128xf32> to vector<1x128xf32>
    %8 = vector.shape_cast %7 : vector<1x128xf32> to vector<1x1x128xf32>
    %cst_8 = arith.constant 4.000000e+00 : f32
    %9 = vector.broadcast %cst_8 : f32 to vector<1x1x128xf32>
    %10 = arith.divf %8, %9 : vector<1x1x128xf32>
    %11 = vector.broadcast %10 : vector<1x1x128xf32> to vector<4x32x128xf32>
    %12 = arith.subf %2, %11 : vector<4x32x128xf32>
    %13 = arith.mulf %12, %12 : vector<4x32x128xf32>
    %cst_9 = arith.constant dense<0.000000e+00> : vector<4x128xf32>
    %14 = vector.multi_reduction <add>, %13, %cst_9 [1] : vector<4x32x128xf32> to vector<4x128xf32>
    %15 = vector.shape_cast %14 : vector<4x128xf32> to vector<4x1x128xf32>
    %cst_10 = arith.constant 3.200000e+01 : f32
    %16 = vector.broadcast %cst_10 : f32 to vector<4x1x128xf32>
    %17 = arith.divf %15, %16 : vector<4x1x128xf32>
    %cst_11 = arith.constant dense<0.000000e+00> : vector<1x128xf32>
    %18 = vector.multi_reduction <add>, %17, %cst_11 [0] : vector<4x1x128xf32> to vector<1x128xf32>
    %19 = vector.shape_cast %18 : vector<1x128xf32> to vector<1x1x128xf32>
    %cst_12 = arith.constant 4.000000e+00 : f32
    %20 = vector.broadcast %cst_12 : f32 to vector<1x1x128xf32>
    %21 = arith.divf %19, %20 : vector<1x1x128xf32>
    %22 = vector.broadcast %10 : vector<1x1x128xf32> to vector<4x32x128xf32>
    %23 = arith.subf %2, %22 : vector<4x32x128xf32>
    %cst_13 = arith.constant 9.99999974E-6 : f32
    %24 = vector.broadcast %cst_13 : f32 to vector<1x1x128xf32>
    %25 = arith.addf %21, %24 : vector<1x1x128xf32>
    %26 = math.rsqrt %25 : vector<1x1x128xf32>
    %27 = vector.broadcast %26 : vector<1x1x128xf32> to vector<4x32x128xf32>
    %28 = arith.mulf %23, %27 : vector<4x32x128xf32>
    %c0_14 = arith.constant 0 : index
    %c0_15 = arith.constant 0 : index
    %c0_16 = arith.constant 0 : index
    %29 = vector.load %arg2[%c0_14, %c0_15, %c0_16] : memref<1x1x128xf32, #tpu.memory_space<vmem>>, vector<1x1x128xf32>
    %30 = vector.broadcast %29 : vector<1x1x128xf32> to vector<4x32x128xf32>
    %31 = arith.mulf %28, %30 : vector<4x32x128xf32>
    %c0_17 = arith.constant 0 : index
    %c0_18 = arith.constant 0 : index
    %c0_19 = arith.constant 0 : index
    %32 = vector.load %arg3[%c0_17, %c0_18, %c0_19] : memref<1x1x128xf32, #tpu.memory_space<vmem>>, vector<1x1x128xf32>
    %33 = vector.broadcast %32 : vector<1x1x128xf32> to vector<4x32x128xf32>
    %34 = arith.addf %31, %33 : vector<4x32x128xf32>
    %cst_20 = arith.constant 0.000000e+00 : f32
    %35 = vector.broadcast %cst_20 : f32 to vector<4x32x128xf32>
    %36 = arith.cmpf oge, %34, %35 : vector<4x32x128xf32>
    %cst_21 = arith.constant 2.000000e-01 : f32
    %37 = vector.broadcast %cst_21 : f32 to vector<4x32x128xf32>
    %38 = arith.mulf %37, %34 : vector<4x32x128xf32>
    %39 = arith.select %36, %34, %38 : vector<4x32x128xi1>, vector<4x32x128xf32>
    %40 = arith.truncf %39 : vector<4x32x128xf32> to vector<4x32x128xbf16>
    %c0_22 = arith.constant 0 : index
    %c0_23 = arith.constant 0 : index
    %c0_24 = arith.constant 0 : index
    %41 = vector.load %arg4[%c0_22, %c0_23, %c0_24] : memref<4x32x128xbf16, #tpu.memory_space<vmem>>, vector<4x32x128xbf16>
    tpu.vector_store %arg4[%c0_22, %c0_23, %c0_24], %40 {strides = array<i32>} : memref<4x32x128xbf16, #tpu.memory_space<vmem>>, vector<4x32x128xbf16>,
    return
  }
}

module attributes {stable_mosaic.version = 11 : i64} {
  func.func @_grouped_matmul_bn_lrelu_kernel(%arg0: memref<4x128x64xbf16, #tpu.memory_space<vmem>>, %arg1: memref<4x64x128xbf16, #tpu.memory_space<vmem>>, %arg2: memref<1x1x128xf32, #tpu.memory_space<vmem>>, %arg3: memref<1x1x128xf32, #tpu.memory_space<vmem>>, %arg4: memref<4x128x128xbf16, #tpu.memory_space<vmem>>) attributes {dimension_semantics = [], scalar_prefetch = 0 : i64, scratch_operands = 0 : i64, tpu.core_type = #tpu.core_type<tc>} {
    %c0 = arith.constant 0 : index
    %c0_0 = arith.constant 0 : index
    %c0_1 = arith.constant 0 : index
    %0 = vector.load %arg0[%c0, %c0_0, %c0_1] : memref<4x128x64xbf16, #tpu.memory_space<vmem>>, vector<4x128x64xbf16>
    %c0_2 = arith.constant 0 : index
    %c0_3 = arith.constant 0 : index
    %c0_4 = arith.constant 0 : index
    %1 = vector.load %arg1[%c0_2, %c0_3, %c0_4] : memref<4x64x128xbf16, #tpu.memory_space<vmem>>, vector<4x64x128xbf16>
    "tpu.trace_start"() <{level = 10 : i32, message = "gmk,gkc->gmc"}> : () -> ()
    %cst = arith.constant dense<0.000000e+00> : vector<4x128x128xf32>
    %2 = tpu.matmul %0, %1, %cst {dimension_numbers = #tpu.dot_dimension_numbers<[2], [1], [1], [2], [0, 0, 0, 1, 1, 2], [0], [0]>} : vector<4x128x64xbf16>, vector<4x64x128xbf16>, vector<4x128x128xf32> -> vector<4x128x128xf32>
    "tpu.trace_stop"() : () -> ()
    %cst_5 = arith.constant dense<0.000000e+00> : vector<4x128xf32>
    %3 = vector.multi_reduction <add>, %2, %cst_5 [1] : vector<4x128x128xf32> to vector<4x128xf32>
    %4 = vector.shape_cast %3 : vector<4x128xf32> to vector<4x1x128xf32>
    %cst_6 = arith.constant 1.280000e+02 : f32
    %5 = vector.broadcast %cst_6 : f32 to vector<4x1x128xf32>
    %6 = arith.divf %4, %5 : vector<4x1x128xf32>
    %cst_7 = arith.constant dense<0.000000e+00> : vector<1x128xf32>
    %7 = vector.multi_reduction <add>, %6, %cst_7 [0] : vector<4x1x128xf32> to vector<1x128xf32>
    %8 = vector.shape_cast %7 : vector<1x128xf32> to vector<1x1x128xf32>
    %cst_8 = arith.constant 4.000000e+00 : f32
    %9 = vector.broadcast %cst_8 : f32 to vector<1x1x128xf32>
    %10 = arith.divf %8, %9 : vector<1x1x128xf32>
    %11 = vector.broadcast %10 : vector<1x1x128xf32> to vector<4x128x128xf32>
    %12 = arith.subf %2, %11 : vector<4x128x128xf32>
    %13 = arith.mulf %12, %12 : vector<4x128x128xf32>
    %cst_9 = arith.constant dense<0.000000e+00> : vector<4x128xf32>
    %14 = vector.multi_reduction <add>, %13, %cst_9 [1] : vector<4x128x128xf32> to vector<4x128xf32>
    %15 = vector.shape_cast %14 : vector<4x128xf32> to vector<4x1x128xf32>
    %cst_10 = arith.constant 1.280000e+02 : f32
    %16 = vector.broadcast %cst_10 : f32 to vector<4x1x128xf32>
    %17 = arith.divf %15, %16 : vector<4x1x128xf32>
    %cst_11 = arith.constant dense<0.000000e+00> : vector<1x128xf32>
    %18 = vector.multi_reduction <add>, %17, %cst_11 [0] : vector<4x1x128xf32> to vector<1x128xf32>
    %19 = vector.shape_cast %18 : vector<1x128xf32> to vector<1x1x128xf32>
    %cst_12 = arith.constant 4.000000e+00 : f32
    %20 = vector.broadcast %cst_12 : f32 to vector<1x1x128xf32>
    %21 = arith.divf %19, %20 : vector<1x1x128xf32>
    %22 = vector.broadcast %10 : vector<1x1x128xf32> to vector<4x128x128xf32>
    %23 = arith.subf %2, %22 : vector<4x128x128xf32>
    %cst_13 = arith.constant 9.99999974E-6 : f32
    %24 = vector.broadcast %cst_13 : f32 to vector<1x1x128xf32>
    %25 = arith.addf %21, %24 : vector<1x1x128xf32>
    %26 = math.rsqrt %25 : vector<1x1x128xf32>
    %27 = vector.broadcast %26 : vector<1x1x128xf32> to vector<4x128x128xf32>
    %28 = arith.mulf %23, %27 : vector<4x128x128xf32>
    %c0_14 = arith.constant 0 : index
    %c0_15 = arith.constant 0 : index
    %c0_16 = arith.constant 0 : index
    %29 = vector.load %arg2[%c0_14, %c0_15, %c0_16] : memref<1x1x128xf32, #tpu.memory_space<vmem>>, vector<1x1x128xf32>
    %30 = vector.broadcast %29 : vector<1x1x128xf32> to vector<4x128x128xf32>
    %31 = arith.mulf %28, %30 : vector<4x128x128xf32>
    %c0_17 = arith.constant 0 : index
    %c0_18 = arith.constant 0 : index
    %c0_19 = arith.constant 0 : index
    %32 = vector.load %arg3[%c0_17, %c0_18, %c0_19] : memref<1x1x128xf32, #tpu.memory_space<vmem>>, vector<1x1x128xf32>
    %33 = vector.broadcast %32 : vector<1x1x128xf32> to vector<4x128x128xf32>
    %34 = arith.addf %31, %33 : vector<4x128x128xf32>
    %cst_20 = arith.constant 0.000000e+00 : f32
    %35 = vector.broadcast %cst_20 : f32 to vector<4x128x128xf32>
    %36 = arith.cmpf oge, %34, %35 : vector<4x128x128xf32>
    %cst_21 = arith.constant 2.000000e-01 : f32
    %37 = vector.broadcast %cst_21 : f32 to vector<4x128x128xf32>
    %38 = arith.mulf %37, %34 : vector<4x128x128xf32>
    %39 = arith.select %36, %34, %38 : vector<4x128x128xi1>, vector<4x128x128xf32>
    %40 = arith.truncf %39 : vector<4x128x128xf32> to vector<4x128x128xbf16>
    %c0_22 = arith.constant 0 : index
    %c0_23 = arith.constant 0 : index
    %c0_24 = arith.constant 0 : index
    %41 = vector.load %arg4[%c0_22, %c0_23, %c0_24] : memref<4x128x128xbf16, #tpu.memory_space<vmem>>, vector<4x128x128xbf16>
    tpu.vector_store %arg4[%c0_22, %c0_23, %c0_24], %40 {strides = array<i32>} : memref<4x128x128xbf16, #tpu.memory_space<vmem>>, vector<4x128x128xbf16>,
    return
  }
}

module attributes {stable_mosaic.version = 11 : i64} {
  func.func @_grouped_matmul_tanh_kernel(%arg0: i32, %arg1: memref<1x512x32xbf16, #tpu.memory_space<vmem>>, %arg2: memref<1x32x128xbf16, #tpu.memory_space<vmem>>, %arg3: memref<1x512x128xf32, #tpu.memory_space<vmem>>) attributes {dimension_semantics = [#tpu.dimension_semantics<parallel>], iteration_bounds = array<i64: 4>, scalar_prefetch = 0 : i64, scratch_operands = 0 : i64, tpu.core_type = #tpu.core_type<tc>, window_params = [{transform_indices = @transform_0, window_bounds = array<i64: 1, 512, 32>}, {transform_indices = @transform_1, window_bounds = array<i64: 1, 32, 128>}, {transform_indices = @transform_2, window_bounds = array<i64: 1, 512, 128>}]} {
    %c0 = arith.constant 0 : index
    %c0_0 = arith.constant 0 : index
    %c0_1 = arith.constant 0 : index
    %0 = vector.load %arg1[%c0, %c0_0, %c0_1] : memref<1x512x32xbf16, #tpu.memory_space<vmem>>, vector<1x512x32xbf16>
    %1 = vector.shape_cast %0 : vector<1x512x32xbf16> to vector<512x32xbf16>
    %c0_2 = arith.constant 0 : index
    %c0_3 = arith.constant 0 : index
    %c0_4 = arith.constant 0 : index
    %2 = vector.load %arg2[%c0_2, %c0_3, %c0_4] : memref<1x32x128xbf16, #tpu.memory_space<vmem>>, vector<1x32x128xbf16>
    %3 = vector.shape_cast %2 : vector<1x32x128xbf16> to vector<32x128xbf16>
    %cst = arith.constant dense<0.000000e+00> : vector<512x128xf32>
    %4 = tpu.matmul %1, %3, %cst {dimension_numbers = #tpu.dot_dimension_numbers<[1], [0], [0], [1], [0, 0, 1, 1], [], []>} : vector<512x32xbf16>, vector<32x128xbf16>, vector<512x128xf32> -> vector<512x128xf32>
    %5 = math.tanh %4 : vector<512x128xf32>
    %c0_5 = arith.constant 0 : index
    %c0_6 = arith.constant 0 : index
    %c0_7 = arith.constant 0 : index
    %6 = vector.load %arg3[%c0_5, %c0_6, %c0_7] : memref<1x512x128xf32, #tpu.memory_space<vmem>>, vector<1x512x128xf32>
    %7 = vector.shape_cast %6 : vector<1x512x128xf32> to vector<512x128xf32>
    %8 = vector.shape_cast %5 : vector<512x128xf32> to vector<1x512x128xf32>
    tpu.vector_store %arg3[%c0_5, %c0_6, %c0_7], %8 {strides = array<i32>} : memref<1x512x128xf32, #tpu.memory_space<vmem>>, vector<1x512x128xf32>,
    return
  }
  func.func @transform_0(%arg0: i32) -> (i32, i32, i32) {
    %c0_i32 = arith.constant 0 : i32
    %c0_i32_0 = arith.constant 0 : i32
    %c0_i32_1 = arith.constant 0 : i32
    return %arg0, %c0_i32, %c0_i32_0 : i32, i32, i32
  }
  func.func @transform_1(%arg0: i32) -> (i32, i32, i32) {
    %c0_i32 = arith.constant 0 : i32
    %c0_i32_0 = arith.constant 0 : i32
    %c0_i32_1 = arith.constant 0 : i32
    return %arg0, %c0_i32, %c0_i32_0 : i32, i32, i32
  }
  func.func @transform_2(%arg0: i32) -> (i32, i32, i32) {
    %c0_i32 = arith.constant 0 : i32
    %c0_i32_0 = arith.constant 0 : i32
    %c0_i32_1 = arith.constant 0 : i32
    return %arg0, %c0_i32, %c0_i32_0 : i32, i32, i32
  }
}

</mosaic_0001>

<llo_original>
// kernel: generator_forward.4
$region0: #{generator_forward.4}
  #allocation0 [shape = 'u32[]', space=smem, size = 0x4, offset = 0x4, fixed_abs, tag = 'smem constant byte address 0x4 - core index']
  #allocation1 [shape = 'u32[72,128]{1,0:T(1,128)}', space=vmem, size = 0x9000, scoped, tag = 'internal scratch']
  %s0 = inlined_call_operand.vmem [shape: bf16[1,32,128], index: 0, kind: input, shape index: {}]
  %s1 = inlined_call_operand.vmem [shape: bf16[1,128,128], index: 1, kind: input, shape index: {}]
  %s2 = inlined_call_operand.vmem [shape: f32[1,1,128], index: 2, kind: input, shape index: {}]
  %s3 = inlined_call_operand.vmem [shape: f32[1,1,128], index: 3, kind: input, shape index: {}]
  %s4 = inlined_call_operand.vmem [shape: bf16[1,32,128], index: 4, kind: output, shape index: {}]
  %s5 = sld [smem:[#allocation0]]
  $region26: #{generator_forward.4} parent=0
    _
  %s7 = ssub.s32 1, %s5
  %s8 = scalar_select 0, %s7, %s5
  // Predicated region
  $region2: #{generator_forward.4} parent=0 // pred_check
    _
  $region3: #{generator_forward.4} parent=0 // pred_check_branch
    %10 = sbr.rel (0) target = $region5
  $region4: #{generator_forward.4} parent=0 // pred_region
    _
  $region5: #{generator_forward.4} parent=0 // pred_fallthru
    _
  // Predicated region
  $region6: #{generator_forward.4} parent=0 // pred_check
    _
  $region7: #{generator_forward.4} parent=0 // pred_check_branch
    %12 = sbr.rel (0) target = $region9
  $region8: #{generator_forward.4} parent=0 // pred_region
    _
  $region9: #{generator_forward.4} parent=0 // pred_fallthru
    _
  // Predicated region
  $region10: #{generator_forward.4} parent=0 // pred_check
    _
  $region11: #{generator_forward.4} parent=0 // pred_check_branch
    %14 = sbr.rel (0) target = $region13
  $region12: #{generator_forward.4} parent=0 // pred_region
    _
  $region13: #{generator_forward.4} parent=0 // pred_fallthru
    _
  // Predicated region
  $region14: #{generator_forward.4} parent=0 // pred_check
    _
  $region15: #{generator_forward.4} parent=0 // pred_check_branch
    %16 = sbr.rel (0) target = $region17
  $region16: #{generator_forward.4} parent=0 // pred_region
    _
  $region17: #{generator_forward.4} parent=0 // pred_fallthru
    _
  %v17 = vld [vmem:[%s0] sm:$0xf]
  %v18 = vld [vmem:[%s0 + $0x4] sm:$0xf]
  %v19 = vld [vmem:[%s0 + $0x8] sm:$0xf]
  %v20 = vld [vmem:[%s0 + $0xc] sm:$0xf]
  %v21 = vld [vmem:[%s1] sm:$0xf]
  %v22 = vld [vmem:[%s1 + $0x4] sm:$0xf]
  %v23 = vld [vmem:[%s1 + $0x8] sm:$0xf]
  %v24 = vld [vmem:[%s1 + $0xc] sm:$0xf]
  %v25 = vld [vmem:[%s1 + $0x10] sm:$0xf]
  %v26 = vld [vmem:[%s1 + $0x14] sm:$0xf]
  %v27 = vld [vmem:[%s1 + $0x18] sm:$0xf]
  %v28 = vld [vmem:[%s1 + $0x1c] sm:$0xf]
  %v29 = vld [vmem:[%s1 + $0x20] sm:$0xf]
  %v30 = vld [vmem:[%s1 + $0x24] sm:$0xf]
  %v31 = vld [vmem:[%s1 + $0x28] sm:$0xf]
  %v32 = vld [vmem:[%s1 + $0x2c] sm:$0xf]
  %v33 = vld [vmem:[%s1 + $0x30] sm:$0xf]
  %v34 = vld [vmem:[%s1 + $0x34] sm:$0xf]
  %v35 = vld [vmem:[%s1 + $0x38] sm:$0xf]
  %v36 = vld [vmem:[%s1 + $0x3c] sm:$0xf]
  %v41 = vunpack.c.l.b16 %v17
  %v42 = vunpack.c.l.b16 %v18
  %v43 = vunpack.c.l.b16 %v19
  %v44 = vunpack.c.l.b16 %v20
  %v45 = vpack.c.b16 %v42, %v41
  %v46 = vpack.c.b16 %v44, %v43
  %v65 = vunpack.c.l.b16 %v21
  %v66 = vunpack.c.l.b16 %v22
  %v67 = vunpack.c.l.b16 %v23
  %v68 = vunpack.c.l.b16 %v24
  %v69 = vunpack.c.l.b16 %v25
  %v70 = vunpack.c.l.b16 %v26
  %v71 = vunpack.c.l.b16 %v27
  %v72 = vunpack.c.l.b16 %v28
  %v73 = vunpack.c.l.b16 %v29
  %v74 = vunpack.c.l.b16 %v30
  %v75 = vunpack.c.l.b16 %v31
  %v76 = vunpack.c.l.b16 %v32
  %v77 = vunpack.c.l.b16 %v33
  %v78 = vunpack.c.l.b16 %v34
  %v79 = vunpack.c.l.b16 %v35
  %v80 = vunpack.c.l.b16 %v36
  %v81 = vpack.c.b16 %v66, %v65
  %v82 = vpack.c.b16 %v68, %v67
  %v83 = vpack.c.b16 %v70, %v69
  %v84 = vpack.c.b16 %v72, %v71
  %v85 = vpack.c.b16 %v74, %v73
  %v86 = vpack.c.b16 %v76, %v75
  %v87 = vpack.c.b16 %v78, %v77
  %v88 = vpack.c.b16 %v80, %v79
  %97 = vmatpush.bf16.msra.mxu0 %v88
  %98 = vmatpush.bf16.msra.mxu0 %v87
  %99 = vmatpush.bf16.msra.mxu0 %v86
  %100 = vmatpush.bf16.msra.mxu0 %v85
  %101 = vmatpush.bf16.msra.mxu0 %v84
  %102 = vmatpush.bf16.msra.mxu0 %v83
  %103 = vmatpush.bf16.msra.mxu0 %v82
  %104 = vmatpush.bf16.msra.mxu0 %v81
  %105 = vmatmul.bf16.gmra.mxu0 %v45
  %v106 = vpop.f32.mrf.mxu0
  %v107 = vadd.f32 0.0, %v106
  %v108 = vpop.f32.mrf.mxu0
  %v109 = vadd.f32 0.0, %v108
  %110 = vmatmul.bf16.gmra.mxu0 %v46
  %v111 = vpop.f32.mrf.mxu0
  %v112 = vadd.f32 0.0, %v111
  %v113 = vpop.f32.mrf.mxu0
  %v114 = vadd.f32 0.0, %v113
  %115 = vdwg.mxu0
  %v116 = vadd.f32 %v107, %v109
  %v117 = vadd.f32 %v116, %v112
  %v118 = vadd.f32 %v117, %v114
  %v119 = vrot.slane %v118, 4
  %v120 = vadd.f32 %v118, %v119
  %v121 = vrot.slane %v120, 2
  %v122 = vadd.f32 %v120, %v121
  %v123 = vrot.slane %v122, 1
  %v124 = vadd.f32 %v122, %v123
  %v125 = vrcp.pop 32.0
  %v126 = vmul.f32 32.0, %v125
  %v127 = vsub.f32 1.0, %v126
  %v128 = vmul.f32 %v125, %v127
  %v129 = vadd.f32 %v125, %v128
  %vm130 = vweird.f32 %v125
  %v131 = vsel %vm130, %v125, %v129
  %v132 = vmul.f32 %v124, %v131
  %v133 = vadd.f32 %v132, 0.0
  %v134 = vsub.f32 %v107, %v133
  %v135 = vsub.f32 %v109, %v133
  %v136 = vsub.f32 %v112, %v133
  %v137 = vsub.f32 %v114, %v133
  %v138 = vmul.f32 %v134, %v134
  %v139 = vmul.f32 %v135, %v135
  %v140 = vmul.f32 %v136, %v136
  %v141 = vmul.f32 %v137, %v137
  %v142 = vadd.f32 %v138, %v139
  %v143 = vadd.f32 %v142, %v140
  %v144 = vadd.f32 %v143, %v141
  %v145 = vrot.slane %v144, 4
  %v146 = vadd.f32 %v144, %v145
  %v147 = vrot.slane %v146, 2
  %v148 = vadd.f32 %v146, %v147
  %v149 = vrot.slane %v148, 1
  %v150 = vadd.f32 %v148, %v149
  %v151 = vmul.f32 %v150, %v131
  %v152 = vadd.f32 %v151, 0.0
  %v153 = vadd.f32 %v152, 1e-05
  %v154 = vrsqrt.pop %v153
  %v155 = vmul.f32 %v154, %v153
  %v156 = vmul.f32 %v155, %v154
  %v157 = vmul.f32 0.5, %v156
  %v158 = vsub.f32 1.5, %v157
  %v159 = vmul.f32 %v154, %v158
  %vm160 = vweird.f32 %v153
  %vm161 = vweird.f32 %v154
  %vm162 = vmor %vm160, %vm161
  %v163 = vsel %vm162, %v154, %v159
  %v164 = vmul.f32 %v134, %v163
  %v165 = vmul.f32 %v135, %v163
  %v166 = vmul.f32 %v136, %v163
  %v167 = vmul.f32 %v137, %v163
  %v168 = vld [vmem:[%s2] sm:$0x1]
  %v170 = vperm.slane %v168, 0
  %v172 = vmul.f32 %v164, %v170
  %v173 = vmul.f32 %v165, %v170
  %v174 = vmul.f32 %v166, %v170
  %v175 = vmul.f32 %v167, %v170
  %v176 = vld [vmem:[%s3] sm:$0x1]
  %v178 = vperm.slane %v176, 0
  %v180 = vadd.f32 %v172, %v178
  %v181 = vadd.f32 %v173, %v178
  %v182 = vadd.f32 %v174, %v178
  %v183 = vadd.f32 %v175, %v178
  %vm184 = vcmp.ge.f32.partialorder %v180, 0.0
  %vm185 = vcmp.ge.f32.partialorder %v181, 0.0
  %vm186 = vcmp.ge.f32.partialorder %v182, 0.0
  %vm187 = vcmp.ge.f32.partialorder %v183, 0.0
  %v188 = vmul.f32 %v180, 0.2
  %v189 = vmul.f32 %v181, 0.2
  %v190 = vmul.f32 %v182, 0.2
  %v191 = vmul.f32 %v183, 0.2
  %v192 = vsel %vm184, %v180, %v188
  %v193 = vsel %vm185, %v181, %v189
  %v194 = vsel %vm186, %v182, %v190
  %v195 = vsel %vm187, %v183, %v191
  %v196 = vpack.c.bf16 %v192, %v192
  %v197 = vpack.c.bf16 %v193, %v193
  %v198 = vpack.c.bf16 %v194, %v194
  %v199 = vpack.c.bf16 %v195, %v195
  %200 = vst [vmem:[%s4] sm:$0xf] %v196
  %201 = vst [vmem:[%s4 + $0x4] sm:$0xf] %v197
  %202 = vst [vmem:[%s4 + $0x8] sm:$0xf] %v198
  %203 = vst [vmem:[%s4 + $0xc] sm:$0xf] %v199
  // Predicated region
  $region18: #{generator_forward.4} parent=0 // pred_check
    _
  $region19: #{generator_forward.4} parent=0 // pred_check_branch
    %205 = sbr.rel (0) target = $region21
  $region20: #{generator_forward.4} parent=0 // pred_region
    _
  $region21: #{generator_forward.4} parent=0 // pred_fallthru
    _
  // Predicated region
  $region22: #{generator_forward.4} parent=0 // pred_check
    _
  $region23: #{generator_forward.4} parent=0 // pred_check_branch
    %207 = sbr.rel (0) target = $region25
  $region24: #{generator_forward.4} parent=0 // pred_region
    _
  $region25: #{generator_forward.4} parent=0 // pred_fallthru
    _

// kernel: generator_forward.5
$region0: #{generator_forward.5}
  #allocation0 [shape = 'u32[]', space=smem, size = 0x4, offset = 0x4, fixed_abs, tag = 'smem constant byte address 0x4 - core index']
  #allocation1 [shape = 'u32[72,128]{1,0:T(1,128)}', space=vmem, size = 0x9000, scoped, tag = 'internal scratch']
  %s0 = inlined_call_operand.vmem [shape: bf16[4,32,128], index: 0, kind: input, shape index: {}]
  %s1 = inlined_call_operand.vmem [shape: bf16[4,128,128], index: 1, kind: input, shape index: {}]
  %s2 = inlined_call_operand.vmem [shape: f32[1,1,128], index: 2, kind: input, shape index: {}]
  %s3 = inlined_call_operand.vmem [shape: f32[1,1,128], index: 3, kind: input, shape index: {}]
  %s4 = inlined_call_operand.vmem [shape: bf16[4,32,128], index: 4, kind: output, shape index: {}]
  %s5 = sld [smem:[#allocation0]]
  $region26: #{generator_forward.5} parent=0
    _
  %s7 = ssub.s32 1, %s5
  %s8 = scalar_select 0, %s7, %s5
  // Predicated region
  $region2: #{generator_forward.5} parent=0 // pred_check
    _
  $region3: #{generator_forward.5} parent=0 // pred_check_branch
    %10 = sbr.rel (0) target = $region5
  $region4: #{generator_forward.5} parent=0 // pred_region
    _
  $region5: #{generator_forward.5} parent=0 // pred_fallthru
    _
  // Predicated region
  $region6: #{generator_forward.5} parent=0 // pred_check
    _
  $region7: #{generator_forward.5} parent=0 // pred_check_branch
    %12 = sbr.rel (0) target = $region9
  $region8: #{generator_forward.5} parent=0 // pred_region
    _
  $region9: #{generator_forward.5} parent=0 // pred_fallthru
    _
  // Predicated region
  $region10: #{generator_forward.5} parent=0 // pred_check
    _
  $region11: #{generator_forward.5} parent=0 // pred_check_branch
    %14 = sbr.rel (0) target = $region13
  $region12: #{generator_forward.5} parent=0 // pred_region
    _
  $region13: #{generator_forward.5} parent=0 // pred_fallthru
    _
  // Predicated region
  $region14: #{generator_forward.5} parent=0 // pred_check
    _
  $region15: #{generator_forward.5} parent=0 // pred_check_branch
    %16 = sbr.rel (0) target = $region17
  $region16: #{generator_forward.5} parent=0 // pred_region
    _
  $region17: #{generator_forward.5} parent=0 // pred_fallthru
    _
  %v17 = vld [vmem:[%s0] sm:$0xf]
  %v18 = vld [vmem:[%s0 + $0x4] sm:$0xf]
  %v19 = vld [vmem:[%s0 + $0x8] sm:$0xf]
  %v20 = vld [vmem:[%s0 + $0xc] sm:$0xf]
  %v21 = vld [vmem:[%s0 + $0x10] sm:$0xf]
  %v22 = vld [vmem:[%s0 + $0x14] sm:$0xf]
  %v23 = vld [vmem:[%s0 + $0x18] sm:$0xf]
  %v24 = vld [vmem:[%s0 + $0x1c] sm:$0xf]
  %v25 = vld [vmem:[%s0 + $0x20] sm:$0xf]
  %v26 = vld [vmem:[%s0 + $0x24] sm:$0xf]
  %v27 = vld [vmem:[%s0 + $0x28] sm:$0xf]
  %v28 = vld [vmem:[%s0 + $0x2c] sm:$0xf]
  %v29 = vld [vmem:[%s0 + $0x30] sm:$0xf]
  %v30 = vld [vmem:[%s0 + $0x34] sm:$0xf]
  %v31 = vld [vmem:[%s0 + $0x38] sm:$0xf]
  %v32 = vld [vmem:[%s0 + $0x3c] sm:$0xf]
  %v33 = vld [vmem:[%s1] sm:$0xf]
  %v34 = vld [vmem:[%s1 + $0x4] sm:$0xf]
  %v35 = vld [vmem:[%s1 + $0x8] sm:$0xf]
  %v36 = vld [vmem:[%s1 + $0xc] sm:$0xf]
  %v37 = vld [vmem:[%s1 + $0x10] sm:$0xf]
  %v38 = vld [vmem:[%s1 + $0x14] sm:$0xf]
  %v39 = vld [vmem:[%s1 + $0x18] sm:$0xf]
  %v40 = vld [vmem:[%s1 + $0x1c] sm:$0xf]
  %v41 = vld [vmem:[%s1 + $0x20] sm:$0xf]
  %v42 = vld [vmem:[%s1 + $0x24] sm:$0xf]
  %v43 = vld [vmem:[%s1 + $0x28] sm:$0xf]
  %v44 = vld [vmem:[%s1 + $0x2c] sm:$0xf]
  %v45 = vld [vmem:[%s1 + $0x30] sm:$0xf]
  %v46 = vld [vmem:[%s1 + $0x34] sm:$0xf]
  %v47 = vld [vmem:[%s1 + $0x38] sm:$0xf]
  %v48 = vld [vmem:[%s1 + $0x3c] sm:$0xf]
  %v49 = vld [vmem:[%s1 + $0x40] sm:$0xf]
  %v50 = vld [vmem:[%s1 + $0x44] sm:$0xf]
  %v51 = vld [vmem:[%s1 + $0x48] sm:$0xf]
  %v52 = vld [vmem:[%s1 + $0x4c] sm:$0xf]
  %v53 = vld [vmem:[%s1 + $0x50] sm:$0xf]
  %v54 = vld [vmem:[%s1 + $0x54] sm:$0xf]
  %v55 = vld [vmem:[%s1 + $0x58] sm:$0xf]
  %v56 = vld [vmem:[%s1 + $0x5c] sm:$0xf]
  %v57 = vld [vmem:[%s1 + $0x60] sm:$0xf]
  %v58 = vld [vmem:[%s1 + $0x64] sm:$0xf]
  %v59 = vld [vmem:[%s1 + $0x68] sm:$0xf]
  %v60 = vld [vmem:[%s1 + $0x6c] sm:$0xf]
  %v61 = vld [vmem:[%s1 + $0x70] sm:$0xf]
  %v62 = vld [vmem:[%s1 + $0x74] sm:$0xf]
  %v63 = vld [vmem:[%s1 + $0x78] sm:$0xf]
  %v64 = vld [vmem:[%s1 + $0x7c] sm:$0xf]
  %v65 = vld [vmem:[%s1 + $0x80] sm:$0xf]
  %v66 = vld [vmem:[%s1 + $0x84] sm:$0xf]
  %v67 = vld [vmem:[%s1 + $0x88] sm:$0xf]
  %v68 = vld [vmem:[%s1 + $0x8c] sm:$0xf]
  %v69 = vld [vmem:[%s1 + $0x90] sm:$0xf]
  %v70 = vld [vmem:[%s1 + $0x94] sm:$0xf]
  %v71 = vld [vmem:[%s1 + $0x98] sm:$0xf]
  %v72 = vld [vmem:[%s1 + $0x9c] sm:$0xf]
  %v73 = vld [vmem:[%s1 + $0xa0] sm:$0xf]
  %v74 = vld [vmem:[%s1 + $0xa4] sm:$0xf]
  %v75 = vld [vmem:[%s1 + $0xa8] sm:$0xf]
  %v76 = vld [vmem:[%s1 + $0xac] sm:$0xf]
  %v77 = vld [vmem:[%s1 + $0xb0] sm:$0xf]
  %v78 = vld [vmem:[%s1 + $0xb4] sm:$0xf]
  %v79 = vld [vmem:[%s1 + $0xb8] sm:$0xf]
  %v80 = vld [vmem:[%s1 + $0xbc] sm:$0xf]
  %v81 = vld [vmem:[%s1 + $0xc0] sm:$0xf]
  %v82 = vld [vmem:[%s1 + $0xc4] sm:$0xf]
  %v83 = vld [vmem:[%s1 + $0xc8] sm:$0xf]
  %v84 = vld [vmem:[%s1 + $0xcc] sm:$0xf]
  %v85 = vld [vmem:[%s1 + $0xd0] sm:$0xf]
  %v86 = vld [vmem:[%s1 + $0xd4] sm:$0xf]
  %v87 = vld [vmem:[%s1 + $0xd8] sm:$0xf]
  %v88 = vld [vmem:[%s1 + $0xdc] sm:$0xf]
  %v89 = vld [vmem:[%s1 + $0xe0] sm:$0xf]
  %v90 = vld [vmem:[%s1 + $0xe4] sm:$0xf]
  %v91 = vld [vmem:[%s1 + $0xe8] sm:$0xf]
  %v92 = vld [vmem:[%s1 + $0xec] sm:$0xf]
  %v93 = vld [vmem:[%s1 + $0xf0] sm:$0xf]
  %v94 = vld [vmem:[%s1 + $0xf4] sm:$0xf]
  %v95 = vld [vmem:[%s1 + $0xf8] sm:$0xf]
  %v96 = vld [vmem:[%s1 + $0xfc] sm:$0xf]
  %v101 = vunpack.c.l.b16 %v17
  %v102 = vunpack.c.l.b16 %v18
  %v103 = vunpack.c.l.b16 %v19
  %v104 = vunpack.c.l.b16 %v20
  %v105 = vpack.c.b16 %v102, %v101
  %v106 = vpack.c.b16 %v104, %v103
  %v125 = vunpack.c.l.b16 %v33
  %v126 = vunpack.c.l.b16 %v34
  %v127 = vunpack.c.l.b16 %v35
  %v128 = vunpack.c.l.b16 %v36
  %v129 = vunpack.c.l.b16 %v37
  %v130 = vunpack.c.l.b16 %v38
  %v131 = vunpack.c.l.b16 %v39
  %v132 = vunpack.c.l.b16 %v40
  %v133 = vunpack.c.l.b16 %v41
  %v134 = vunpack.c.l.b16 %v42
  %v135 = vunpack.c.l.b16 %v43
  %v136 = vunpack.c.l.b16 %v44
  %v137 = vunpack.c.l.b16 %v45
  %v138 = vunpack.c.l.b16 %v46
  %v139 = vunpack.c.l.b16 %v47
  %v140 = vunpack.c.l.b16 %v48
  %v141 = vpack.c.b16 %v126, %v125
  %v142 = vpack.c.b16 %v128, %v127
  %v143 = vpack.c.b16 %v130, %v129
  %v144 = vpack.c.b16 %v132, %v131
  %v145 = vpack.c.b16 %v134, %v133
  %v146 = vpack.c.b16 %v136, %v135
  %v147 = vpack.c.b16 %v138, %v137
  %v148 = vpack.c.b16 %v140, %v139
  %157 = vmatpush.bf16.msra.mxu0 %v148
  %158 = vmatpush.bf16.msra.mxu0 %v147
  %159 = vmatpush.bf16.msra.mxu0 %v146
  %160 = vmatpush.bf16.msra.mxu0 %v145
  %161 = vmatpush.bf16.msra.mxu0 %v144
  %162 = vmatpush.bf16.msra.mxu0 %v143
  %163 = vmatpush.bf16.msra.mxu0 %v142
  %164 = vmatpush.bf16.msra.mxu0 %v141
  %165 = vmatmul.bf16.gmra.mxu0 %v105
  %v166 = vpop.f32.mrf.mxu0
  %v167 = vadd.f32 0.0, %v166
  %v168 = vpop.f32.mrf.mxu0
  %v169 = vadd.f32 0.0, %v168
  %170 = vmatmul.bf16.gmra.mxu0 %v106
  %v171 = vpop.f32.mrf.mxu0
  %v172 = vadd.f32 0.0, %v171
  %v173 = vpop.f32.mrf.mxu0
  %v174 = vadd.f32 0.0, %v173
  %175 = vdwg.mxu0
  %v180 = vunpack.c.l.b16 %v21
  %v181 = vunpack.c.l.b16 %v22
  %v182 = vunpack.c.l.b16 %v23
  %v183 = vunpack.c.l.b16 %v24
  %v184 = vpack.c.b16 %v181, %v180
  %v185 = vpack.c.b16 %v183, %v182
  %v204 = vunpack.c.l.b16 %v49
  %v205 = vunpack.c.l.b16 %v50
  %v206 = vunpack.c.l.b16 %v51
  %v207 = vunpack.c.l.b16 %v52
  %v208 = vunpack.c.l.b16 %v53
  %v209 = vunpack.c.l.b16 %v54
  %v210 = vunpack.c.l.b16 %v55
  %v211 = vunpack.c.l.b16 %v56
  %v212 = vunpack.c.l.b16 %v57
  %v213 = vunpack.c.l.b16 %v58
  %v214 = vunpack.c.l.b16 %v59
  %v215 = vunpack.c.l.b16 %v60
  %v216 = vunpack.c.l.b16 %v61
  %v217 = vunpack.c.l.b16 %v62
  %v218 = vunpack.c.l.b16 %v63
  %v219 = vunpack.c.l.b16 %v64
  %v220 = vpack.c.b16 %v205, %v204
  %v221 = vpack.c.b16 %v207, %v206
  %v222 = vpack.c.b16 %v209, %v208
  %v223 = vpack.c.b16 %v211, %v210
  %v224 = vpack.c.b16 %v213, %v212
  %v225 = vpack.c.b16 %v215, %v214
  %v226 = vpack.c.b16 %v217, %v216
  %v227 = vpack.c.b16 %v219, %v218
  %236 = vmatpush.bf16.msra.mxu0 %v227
  %237 = vmatpush.bf16.msra.mxu0 %v226
  %238 = vmatpush.bf16.msra.mxu0 %v225
  %239 = vmatpush.bf16.msra.mxu0 %v224
  %240 = vmatpush.bf16.msra.mxu0 %v223
  %241 = vmatpush.bf16.msra.mxu0 %v222
  %242 = vmatpush.bf16.msra.mxu0 %v221
  %243 = vmatpush.bf16.msra.mxu0 %v220
  %244 = vmatmul.bf16.gmra.mxu0 %v184
  %v245 = vpop.f32.mrf.mxu0
  %v246 = vadd.f32 0.0, %v245
  %v247 = vpop.f32.mrf.mxu0
  %v248 = vadd.f32 0.0, %v247
  %249 = vmatmul.bf16.gmra.mxu0 %v185
  %v250 = vpop.f32.mrf.mxu0
  %v251 = vadd.f32 0.0, %v250
  %v252 = vpop.f32.mrf.mxu0
  %v253 = vadd.f32 0.0, %v252
  %254 = vdwg.mxu0
  %v259 = vunpack.c.l.b16 %v25
  %v260 = vunpack.c.l.b16 %v26
  %v261 = vunpack.c.l.b16 %v27
  %v262 = vunpack.c.l.b16 %v28
  %v263 = vpack.c.b16 %v260, %v259
  %v264 = vpack.c.b16 %v262, %v261
  %v283 = vunpack.c.l.b16 %v65
  %v284 = vunpack.c.l.b16 %v66
  %v285 = vunpack.c.l.b16 %v67
  %v286 = vunpack.c.l.b16 %v68
  %v287 = vunpack.c.l.b16 %v69
  %v288 = vunpack.c.l.b16 %v70
  %v289 = vunpack.c.l.b16 %v71
  %v290 = vunpack.c.l.b16 %v72
  %v291 = vunpack.c.l.b16 %v73
  %v292 = vunpack.c.l.b16 %v74
  %v293 = vunpack.c.l.b16 %v75
  %v294 = vunpack.c.l.b16 %v76
  %v295 = vunpack.c.l.b16 %v77
  %v296 = vunpack.c.l.b16 %v78
  %v297 = vunpack.c.l.b16 %v79
  %v298 = vunpack.c.l.b16 %v80
  %v299 = vpack.c.b16 %v284, %v283
  %v300 = vpack.c.b16 %v286, %v285
  %v301 = vpack.c.b16 %v288, %v287
  %v302 = vpack.c.b16 %v290, %v289
  %v303 = vpack.c.b16 %v292, %v291
  %v304 = vpack.c.b16 %v294, %v293
  %v305 = vpack.c.b16 %v296, %v295
  %v306 = vpack.c.b16 %v298, %v297
  %315 = vmatpush.bf16.msra.mxu0 %v306
  %316 = vmatpush.bf16.msra.mxu0 %v305
  %317 = vmatpush.bf16.msra.mxu0 %v304
  %318 = vmatpush.bf16.msra.mxu0 %v303
  %319 = vmatpush.bf16.msra.mxu0 %v302
  %320 = vmatpush.bf16.msra.mxu0 %v301
  %321 = vmatpush.bf16.msra.mxu0 %v300
  %322 = vmatpush.bf16.msra.mxu0 %v299
  %323 = vmatmul.bf16.gmra.mxu0 %v263
  %v324 = vpop.f32.mrf.mxu0
  %v325 = vadd.f32 0.0, %v324
  %v326 = vpop.f32.mrf.mxu0
  %v327 = vadd.f32 0.0, %v326
  %328 = vmatmul.bf16.gmra.mxu0 %v264
  %v329 = vpop.f32.mrf.mxu0
  %v330 = vadd.f32 0.0, %v329
  %v331 = vpop.f32.mrf.mxu0
  %v332 = vadd.f32 0.0, %v331
  %333 = vdwg.mxu0
  %v338 = vunpack.c.l.b16 %v29
  %v339 = vunpack.c.l.b16 %v30
  %v340 = vunpack.c.l.b16 %v31
  %v341 = vunpack.c.l.b16 %v32
  %v342 = vpack.c.b16 %v339, %v338
  %v343 = vpack.c.b16 %v341, %v340
  %v362 = vunpack.c.l.b16 %v81
  %v363 = vunpack.c.l.b16 %v82
  %v364 = vunpack.c.l.b16 %v83
  %v365 = vunpack.c.l.b16 %v84
  %v366 = vunpack.c.l.b16 %v85
  %v367 = vunpack.c.l.b16 %v86
  %v368 = vunpack.c.l.b16 %v87
  %v369 = vunpack.c.l.b16 %v88
  %v370 = vunpack.c.l.b16 %v89
  %v371 = vunpack.c.l.b16 %v90
  %v372 = vunpack.c.l.b16 %v91
  %v373 = vunpack.c.l.b16 %v92
  %v374 = vunpack.c.l.b16 %v93
  %v375 = vunpack.c.l.b16 %v94
  %v376 = vunpack.c.l.b16 %v95
  %v377 = vunpack.c.l.b16 %v96
  %v378 = vpack.c.b16 %v363, %v362
  %v379 = vpack.c.b16 %v365, %v364
  %v380 = vpack.c.b16 %v367, %v366
  %v381 = vpack.c.b16 %v369, %v368
  %v382 = vpack.c.b16 %v371, %v370
  %v383 = vpack.c.b16 %v373, %v372
  %v384 = vpack.c.b16 %v375, %v374
  %v385 = vpack.c.b16 %v377, %v376
  %394 = vmatpush.bf16.msra.mxu0 %v385
  %395 = vmatpush.bf16.msra.mxu0 %v384
  %396 = vmatpush.bf16.msra.mxu0 %v383
  %397 = vmatpush.bf16.msra.mxu0 %v382
  %398 = vmatpush.bf16.msra.mxu0 %v381
  %399 = vmatpush.bf16.msra.mxu0 %v380
  %400 = vmatpush.bf16.msra.mxu0 %v379
  %401 = vmatpush.bf16.msra.mxu0 %v378
  %402 = vmatmul.bf16.gmra.mxu0 %v342
  %v403 = vpop.f32.mrf.mxu0
  %v404 = vadd.f32 0.0, %v403
  %v405 = vpop.f32.mrf.mxu0
  %v406 = vadd.f32 0.0, %v405
  %407 = vmatmul.bf16.gmra.mxu0 %v343
  %v408 = vpop.f32.mrf.mxu0
  %v409 = vadd.f32 0.0, %v408
  %v410 = vpop.f32.mrf.mxu0
  %v411 = vadd.f32 0.0, %v410
  %412 = vdwg.mxu0
  %v413 = vadd.f32 %v167, %v169
  %v414 = vadd.f32 %v413, %v172
  %v415 = vadd.f32 %v414, %v174
  %v416 = vrot.slane %v415, 4
  %v417 = vadd.f32 %v415, %v416
  %v418 = vrot.slane %v417, 2
  %v419 = vadd.f32 %v417, %v418
  %v420 = vrot.slane %v419, 1
  %v421 = vadd.f32 %v419, %v420
  %v422 = vadd.f32 %v246, %v248
  %v423 = vadd.f32 %v422, %v251
  %v424 = vadd.f32 %v423, %v253
  %v425 = vrot.slane %v424, 4
  %v426 = vadd.f32 %v424, %v425
  %v427 = vrot.slane %v426, 2
  %v428 = vadd.f32 %v426, %v427
  %v429 = vrot.slane %v428, 1
  %v430 = vadd.f32 %v428, %v429
  %v431 = vadd.f32 %v325, %v327
  %v432 = vadd.f32 %v431, %v330
  %v433 = vadd.f32 %v432, %v332
  %v434 = vrot.slane %v433, 4
  %v435 = vadd.f32 %v433, %v434
  %v436 = vrot.slane %v435, 2
  %v437 = vadd.f32 %v435, %v436
  %v438 = vrot.slane %v437, 1
  %v439 = vadd.f32 %v437, %v438
  %v440 = vadd.f32 %v404, %v406
  %v441 = vadd.f32 %v440, %v409
  %v442 = vadd.f32 %v441, %v411
  %v443 = vrot.slane %v442, 4
  %v444 = vadd.f32 %v442, %v443
  %v445 = vrot.slane %v444, 2
  %v446 = vadd.f32 %v444, %v445
  %v447 = vrot.slane %v446, 1
  %v448 = vadd.f32 %v446, %v447
  %v449 = vrcp.pop 32.0
  %v450 = vmul.f32 32.0, %v449
  %v451 = vsub.f32 1.0, %v450
  %v452 = vmul.f32 %v449, %v451
  %v453 = vadd.f32 %v449, %v452
  %vm454 = vweird.f32 %v449
  %v455 = vsel %vm454, %v449, %v453
  %v456 = vmul.f32 %v421, %v455
  %v457 = vmul.f32 %v430, %v455
  %v458 = vmul.f32 %v439, %v455
  %v459 = vmul.f32 %v448, %v455
  %v460 = vadd.f32 %v456, %v457
  %v461 = vadd.f32 %v460, %v458
  %v462 = vadd.f32 %v461, %v459
  %v463 = vrcp.pop 4.0
  %v464 = vmul.f32 4.0, %v463
  %v465 = vsub.f32 1.0, %v464
  %v466 = vmul.f32 %v463, %v465
  %v467 = vadd.f32 %v463, %v466
  %vm468 = vweird.f32 %v463
  %v469 = vsel %vm468, %v463, %v467
  %v470 = vmul.f32 %v462, %v469
  %v471 = vsub.f32 %v167, %v470
  %v472 = vsub.f32 %v169, %v470
  %v473 = vsub.f32 %v172, %v470
  %v474 = vsub.f32 %v174, %v470
  %v475 = vsub.f32 %v246, %v470
  %v476 = vsub.f32 %v248, %v470
  %v477 = vsub.f32 %v251, %v470
  %v478 = vsub.f32 %v253, %v470
  %v479 = vsub.f32 %v325, %v470
  %v480 = vsub.f32 %v327, %v470
  %v481 = vsub.f32 %v330, %v470
  %v482 = vsub.f32 %v332, %v470
  %v483 = vsub.f32 %v404, %v470
  %v484 = vsub.f32 %v406, %v470
  %v485 = vsub.f32 %v409, %v470
  %v486 = vsub.f32 %v411, %v470
  %v487 = vmul.f32 %v471, %v471
  %v488 = vmul.f32 %v472, %v472
  %v489 = vmul.f32 %v473, %v473
  %v490 = vmul.f32 %v474, %v474
  %v491 = vmul.f32 %v475, %v475
  %v492 = vmul.f32 %v476, %v476
  %v493 = vmul.f32 %v477, %v477
  %v494 = vmul.f32 %v478, %v478
  %v495 = vmul.f32 %v479, %v479
  %v496 = vmul.f32 %v480, %v480
  %v497 = vmul.f32 %v481, %v481
  %v498 = vmul.f32 %v482, %v482
  %v499 = vmul.f32 %v483, %v483
  %v500 = vmul.f32 %v484, %v484
  %v501 = vmul.f32 %v485, %v485
  %v502 = vmul.f32 %v486, %v486
  %v503 = vadd.f32 %v487, %v488
  %v504 = vadd.f32 %v503, %v489
  %v505 = vadd.f32 %v504, %v490
  %v506 = vrot.slane %v505, 4
  %v507 = vadd.f32 %v505, %v506
  %v508 = vrot.slane %v507, 2
  %v509 = vadd.f32 %v507, %v508
  %v510 = vrot.slane %v509, 1
  %v511 = vadd.f32 %v509, %v510
  %v512 = vadd.f32 %v491, %v492
  %v513 = vadd.f32 %v512, %v493
  %v514 = vadd.f32 %v513, %v494
  %v515 = vrot.slane %v514, 4
  %v516 = vadd.f32 %v514, %v515
  %v517 = vrot.slane %v516, 2
  %v518 = vadd.f32 %v516, %v517
  %v519 = vrot.slane %v518, 1
  %v520 = vadd.f32 %v518, %v519
  %v521 = vadd.f32 %v495, %v496
  %v522 = vadd.f32 %v521, %v497
  %v523 = vadd.f32 %v522, %v498
  %v524 = vrot.slane %v523, 4
  %v525 = vadd.f32 %v523, %v524
  %v526 = vrot.slane %v525, 2
  %v527 = vadd.f32 %v525, %v526
  %v528 = vrot.slane %v527, 1
  %v529 = vadd.f32 %v527, %v528
  %v530 = vadd.f32 %v499, %v500
  %v531 = vadd.f32 %v530, %v501
  %v532 = vadd.f32 %v531, %v502
  %v533 = vrot.slane %v532, 4
  %v534 = vadd.f32 %v532, %v533
  %v535 = vrot.slane %v534, 2
  %v536 = vadd.f32 %v534, %v535
  %v537 = vrot.slane %v536, 1
  %v538 = vadd.f32 %v536, %v537
  %v539 = vmul.f32 %v511, %v455
  %v540 = vmul.f32 %v520, %v455
  %v541 = vmul.f32 %v529, %v455
  %v542 = vmul.f32 %v538, %v455
  %v543 = vadd.f32 %v539, %v540
  %v544 = vadd.f32 %v543, %v541
  %v545 = vadd.f32 %v544, %v542
  %v546 = vmul.f32 %v545, %v469
  %v547 = vadd.f32 %v546, 1e-05
  %v548 = vrsqrt.pop %v547
  %v549 = vmul.f32 %v548, %v547
  %v550 = vmul.f32 %v549, %v548
  %v551 = vmul.f32 0.5, %v550
  %v552 = vsub.f32 1.5, %v551
  %v553 = vmul.f32 %v548, %v552
  %vm554 = vweird.f32 %v547
  %vm555 = vweird.f32 %v548
  %vm556 = vmor %vm554, %vm555
  %v557 = vsel %vm556, %v548, %v553
  %v558 = vmul.f32 %v471, %v557
  %v559 = vmul.f32 %v472, %v557
  %v560 = vmul.f32 %v473, %v557
  %v561 = vmul.f32 %v474, %v557
  %v562 = vmul.f32 %v475, %v557
  %v563 = vmul.f32 %v476, %v557
  %v564 = vmul.f32 %v477, %v557
  %v565 = vmul.f32 %v478, %v557
  %v566 = vmul.f32 %v479, %v557
  %v567 = vmul.f32 %v480, %v557
  %v568 = vmul.f32 %v481, %v557
  %v569 = vmul.f32 %v482, %v557
  %v570 = vmul.f32 %v483, %v557
  %v571 = vmul.f32 %v484, %v557
  %v572 = vmul.f32 %v485, %v557
  %v573 = vmul.f32 %v486, %v557
  %v574 = vld [vmem:[%s2] sm:$0x1]
  %v576 = vperm.slane %v574, 0
  %v578 = vmul.f32 %v558, %v576
  %v579 = vmul.f32 %v559, %v576
  %v580 = vmul.f32 %v560, %v576
  %v581 = vmul.f32 %v561, %v576
  %v582 = vmul.f32 %v562, %v576
  %v583 = vmul.f32 %v563, %v576
  %v584 = vmul.f32 %v564, %v576
  %v585 = vmul.f32 %v565, %v576
  %v586 = vmul.f32 %v566, %v576
  %v587 = vmul.f32 %v567, %v576
  %v588 = vmul.f32 %v568, %v576
  %v589 = vmul.f32 %v569, %v576
  %v590 = vmul.f32 %v570, %v576
  %v591 = vmul.f32 %v571, %v576
  %v592 = vmul.f32 %v572, %v576
  %v593 = vmul.f32 %v573, %v576
  %v594 = vld [vmem:[%s3] sm:$0x1]
  %v596 = vperm.slane %v594, 0
  %v598 = vadd.f32 %v578, %v596
  %v599 = vadd.f32 %v579, %v596
  %v600 = vadd.f32 %v580, %v596
  %v601 = vadd.f32 %v581, %v596
  %v602 = vadd.f32 %v582, %v596
  %v603 = vadd.f32 %v583, %v596
  %v604 = vadd.f32 %v584, %v596
  %v605 = vadd.f32 %v585, %v596
  %v606 = vadd.f32 %v586, %v596
  %v607 = vadd.f32 %v587, %v596
  %v608 = vadd.f32 %v588, %v596
  %v609 = vadd.f32 %v589, %v596
  %v610 = vadd.f32 %v590, %v596
  %v611 = vadd.f32 %v591, %v596
  %v612 = vadd.f32 %v592, %v596
  %v613 = vadd.f32 %v593, %v596
  %vm614 = vcmp.ge.f32.partialorder %v598, 0.0
  %vm615 = vcmp.ge.f32.partialorder %v599, 0.0
  %vm616 = vcmp.ge.f32.partialorder %v600, 0.0
  %vm617 = vcmp.ge.f32.partialorder %v601, 0.0
  %vm618 = vcmp.ge.f32.partialorder %v602, 0.0
  %vm619 = vcmp.ge.f32.partialorder %v603, 0.0
  %vm620 = vcmp.ge.f32.partialorder %v604, 0.0
  %vm621 = vcmp.ge.f32.partialorder %v605, 0.0
  %vm622 = vcmp.ge.f32.partialorder %v606, 0.0
  %vm623 = vcmp.ge.f32.partialorder %v607, 0.0
  %vm624 = vcmp.ge.f32.partialorder %v608, 0.0
  %vm625 = vcmp.ge.f32.partialorder %v609, 0.0
  %vm626 = vcmp.ge.f32.partialorder %v610, 0.0
  %vm627 = vcmp.ge.f32.partialorder %v611, 0.0
  %vm628 = vcmp.ge.f32.partialorder %v612, 0.0
  %vm629 = vcmp.ge.f32.partialorder %v613, 0.0
  %v630 = vmul.f32 %v598, 0.2
  %v631 = vmul.f32 %v599, 0.2
  %v632 = vmul.f32 %v600, 0.2
  %v633 = vmul.f32 %v601, 0.2
  %v634 = vmul.f32 %v602, 0.2
  %v635 = vmul.f32 %v603, 0.2
  %v636 = vmul.f32 %v604, 0.2
  %v637 = vmul.f32 %v605, 0.2
  %v638 = vmul.f32 %v606, 0.2
  %v639 = vmul.f32 %v607, 0.2
  %v640 = vmul.f32 %v608, 0.2
  %v641 = vmul.f32 %v609, 0.2
  %v642 = vmul.f32 %v610, 0.2
  %v643 = vmul.f32 %v611, 0.2
  %v644 = vmul.f32 %v612, 0.2
  %v645 = vmul.f32 %v613, 0.2
  %v646 = vsel %vm614, %v598, %v630
  %v647 = vsel %vm615, %v599, %v631
  %v648 = vsel %vm616, %v600, %v632
  %v649 = vsel %vm617, %v601, %v633
  %v650 = vsel %vm618, %v602, %v634
  %v651 = vsel %vm619, %v603, %v635
  %v652 = vsel %vm620, %v604, %v636
  %v653 = vsel %vm621, %v605, %v637
  %v654 = vsel %vm622, %v606, %v638
  %v655 = vsel %vm623, %v607, %v639
  %v656 = vsel %vm624, %v608, %v640
  %v657 = vsel %vm625, %v609, %v641
  %v658 = vsel %vm626, %v610, %v642
  %v659 = vsel %vm627, %v611, %v643
  %v660 = vsel %vm628, %v612, %v644
  %v661 = vsel %vm629, %v613, %v645
  %v662 = vpack.c.bf16 %v646, %v646
  %v663 = vpack.c.bf16 %v647, %v647
  %v664 = vpack.c.bf16 %v648, %v648
  %v665 = vpack.c.bf16 %v649, %v649
  %v666 = vpack.c.bf16 %v650, %v650
  %v667 = vpack.c.bf16 %v651, %v651
  %v668 = vpack.c.bf16 %v652, %v652
  %v669 = vpack.c.bf16 %v653, %v653
  %v670 = vpack.c.bf16 %v654, %v654
  %v671 = vpack.c.bf16 %v655, %v655
  %v672 = vpack.c.bf16 %v656, %v656
  %v673 = vpack.c.bf16 %v657, %v657
  %v674 = vpack.c.bf16 %v658, %v658
  %v675 = vpack.c.bf16 %v659, %v659
  %v676 = vpack.c.bf16 %v660, %v660
  %v677 = vpack.c.bf16 %v661, %v661
  %678 = vst [vmem:[%s4] sm:$0xf] %v662
  %679 = vst [vmem:[%s4 + $0x4] sm:$0xf] %v663
  %680 = vst [vmem:[%s4 + $0x8] sm:$0xf] %v664
  %681 = vst [vmem:[%s4 + $0xc] sm:$0xf] %v665
  %682 = vst [vmem:[%s4 + $0x10] sm:$0xf] %v666
  %683 = vst [vmem:[%s4 + $0x14] sm:$0xf] %v667
  %684 = vst [vmem:[%s4 + $0x18] sm:$0xf] %v668
  %685 = vst [vmem:[%s4 + $0x1c] sm:$0xf] %v669
  %686 = vst [vmem:[%s4 + $0x20] sm:$0xf] %v670
  %687 = vst [vmem:[%s4 + $0x24] sm:$0xf] %v671
  %688 = vst [vmem:[%s4 + $0x28] sm:$0xf] %v672
  %689 = vst [vmem:[%s4 + $0x2c] sm:$0xf] %v673
  %690 = vst [vmem:[%s4 + $0x30] sm:$0xf] %v674
  %691 = vst [vmem:[%s4 + $0x34] sm:$0xf] %v675
  %692 = vst [vmem:[%s4 + $0x38] sm:$0xf] %v676
  %693 = vst [vmem:[%s4 + $0x3c] sm:$0xf] %v677
  // Predicated region
  $region18: #{generator_forward.5} parent=0 // pred_check
    _
  $region19: #{generator_forward.5} parent=0 // pred_check_branch
    %695 = sbr.rel (0) target = $region21
  $region20: #{generator_forward.5} parent=0 // pred_region
    _
  $region21: #{generator_forward.5} parent=0 // pred_fallthru
    _
  // Predicated region
  $region22: #{generator_forward.5} parent=0 // pred_check
    _
  $region23: #{generator_forward.5} parent=0 // pred_check_branch
    %697 = sbr.rel (0) target = $region25
  $region24: #{generator_forward.5} parent=0 // pred_region
    _
  $region25: #{generator_forward.5} parent=0 // pred_fallthru
    _

// kernel: generator_forward.6
$region0: #{generator_forward.6}
  #allocation0 [shape = 'u32[]', space=smem, size = 0x4, offset = 0x4, fixed_abs, tag = 'smem constant byte address 0x4 - core index']
  #allocation1 [shape = 'u32[72,128]{1,0:T(1,128)}', space=vmem, size = 0x9000, scoped, tag = 'internal scratch']
  %s0 = inlined_call_operand.vmem [shape: bf16[4,128,64], index: 0, kind: input, shape index: {}]
  %s1 = inlined_call_operand.vmem [shape: bf16[4,64,128], index: 1, kind: input, shape index: {}]
  %s2 = inlined_call_operand.vmem [shape: f32[1,1,128], index: 2, kind: input, shape index: {}]
  %s3 = inlined_call_operand.vmem [shape: f32[1,1,128], index: 3, kind: input, shape index: {}]
  %s4 = inlined_call_operand.vmem [shape: bf16[4,128,128], index: 4, kind: output, shape index: {}]
  %s5 = sld [smem:[#allocation0]]
  $region26: #{generator_forward.6} parent=0
    _
  %s7 = ssub.s32 1, %s5
  %s8 = scalar_select 0, %s7, %s5
  // Predicated region
  $region2: #{generator_forward.6} parent=0 // pred_check
    _
  $region3: #{generator_forward.6} parent=0 // pred_check_branch
    %10 = sbr.rel (0) target = $region5
  $region4: #{generator_forward.6} parent=0 // pred_region
    _
  $region5: #{generator_forward.6} parent=0 // pred_fallthru
    _
  // Predicated region
  $region6: #{generator_forward.6} parent=0 // pred_check
    _
  $region7: #{generator_forward.6} parent=0 // pred_check_branch
    %12 = sbr.rel (0) target = $region9
  $region8: #{generator_forward.6} parent=0 // pred_region
    _
  $region9: #{generator_forward.6} parent=0 // pred_fallthru
    _
  // Predicated region
  $region10: #{generator_forward.6} parent=0 // pred_check
    _
  $region11: #{generator_forward.6} parent=0 // pred_check_branch
    %14 = sbr.rel (0) target = $region13
  $region12: #{generator_forward.6} parent=0 // pred_region
    _
  $region13: #{generator_forward.6} parent=0 // pred_fallthru
    _
  // Predicated region
  $region14: #{generator_forward.6} parent=0 // pred_check
    _
  $region15: #{generator_forward.6} parent=0 // pred_check_branch
    %16 = sbr.rel (0) target = $region17
  $region16: #{generator_forward.6} parent=0 // pred_region
    _
  $region17: #{generator_forward.6} parent=0 // pred_fallthru
    _
  %v18 = vld [vmem:[%s0] sm:$0xf]
  %v19 = vld [vmem:[%s0 + $0x4] sm:$0xf]
  %v20 = vld [vmem:[%s0 + $0x8] sm:$0xf]
  %v21 = vld [vmem:[%s0 + $0xc] sm:$0xf]
  %v22 = vld [vmem:[%s0 + $0x10] sm:$0xf]
  %v23 = vld [vmem:[%s0 + $0x14] sm:$0xf]
  %v24 = vld [vmem:[%s0 + $0x18] sm:$0xf]
  %v25 = vld [vmem:[%s0 + $0x1c] sm:$0xf]
  %v26 = vld [vmem:[%s0 + $0x20] sm:$0xf]
  %v27 = vld [vmem:[%s0 + $0x24] sm:$0xf]
  %v28 = vld [vmem:[%s0 + $0x28] sm:$0xf]
  %v29 = vld [vmem:[%s0 + $0x2c] sm:$0xf]
  %v30 = vld [vmem:[%s0 + $0x30] sm:$0xf]
  %v31 = vld [vmem:[%s0 + $0x34] sm:$0xf]
  %v32 = vld [vmem:[%s0 + $0x38] sm:$0xf]
  %v33 = vld [vmem:[%s0 + $0x3c] sm:$0xf]
  %v34 = vld [vmem:[%s0 + $0x40] sm:$0xf]
  %v35 = vld [vmem:[%s0 + $0x44] sm:$0xf]
  %v36 = vld [vmem:[%s0 + $0x48] sm:$0xf]
  %v37 = vld [vmem:[%s0 + $0x4c] sm:$0xf]
  %v38 = vld [vmem:[%s0 + $0x50] sm:$0xf]
  %v39 = vld [vmem:[%s0 + $0x54] sm:$0xf]
  %v40 = vld [vmem:[%s0 + $0x58] sm:$0xf]
  %v41 = vld [vmem:[%s0 + $0x5c] sm:$0xf]
  %v42 = vld [vmem:[%s0 + $0x60] sm:$0xf]
  %v43 = vld [vmem:[%s0 + $0x64] sm:$0xf]
  %v44 = vld [vmem:[%s0 + $0x68] sm:$0xf]
  %v45 = vld [vmem:[%s0 + $0x6c] sm:$0xf]
  %v46 = vld [vmem:[%s0 + $0x70] sm:$0xf]
  %v47 = vld [vmem:[%s0 + $0x74] sm:$0xf]
  %v48 = vld [vmem:[%s0 + $0x78] sm:$0xf]
  %v49 = vld [vmem:[%s0 + $0x7c] sm:$0xf]
  %v50 = vld [vmem:[%s0 + $0x80] sm:$0xf]
  %v51 = vld [vmem:[%s0 + $0x84] sm:$0xf]
  %v52 = vld [vmem:[%s0 + $0x88] sm:$0xf]
  %v53 = vld [vmem:[%s0 + $0x8c] sm:$0xf]
  %v54 = vld [vmem:[%s0 + $0x90] sm:$0xf]
  %v55 = vld [vmem:[%s0 + $0x94] sm:$0xf]
  %v56 = vld [vmem:[%s0 + $0x98] sm:$0xf]
  %v57 = vld [vmem:[%s0 + $0x9c] sm:$0xf]
  %v58 = vld [vmem:[%s0 + $0xa0] sm:$0xf]
  %v59 = vld [vmem:[%s0 + $0xa4] sm:$0xf]
  %v60 = vld [vmem:[%s0 + $0xa8] sm:$0xf]
  %v61 = vld [vmem:[%s0 + $0xac] sm:$0xf]
  %v62 = vld [vmem:[%s0 + $0xb0] sm:$0xf]
  %v63 = vld [vmem:[%s0 + $0xb4] sm:$0xf]
  %v64 = vld [vmem:[%s0 + $0xb8] sm:$0xf]
  %v65 = vld [vmem:[%s0 + $0xbc] sm:$0xf]
  %v66 = vld [vmem:[%s0 + $0xc0] sm:$0xf]
  %v67 = vld [vmem:[%s0 + $0xc4] sm:$0xf]
  %v68 = vld [vmem:[%s0 + $0xc8] sm:$0xf]
  %v69 = vld [vmem:[%s0 + $0xcc] sm:$0xf]
  %v70 = vld [vmem:[%s0 + $0xd0] sm:$0xf]
  %v71 = vld [vmem:[%s0 + $0xd4] sm:$0xf]
  %v72 = vld [vmem:[%s0 + $0xd8] sm:$0xf]
  %v73 = vld [vmem:[%s0 + $0xdc] sm:$0xf]
  %v74 = vld [vmem:[%s0 + $0xe0] sm:$0xf]
  %v75 = vld [vmem:[%s0 + $0xe4] sm:$0xf]
  %v76 = vld [vmem:[%s0 + $0xe8] sm:$0xf]
  %v77 = vld [vmem:[%s0 + $0xec] sm:$0xf]
  %v78 = vld [vmem:[%s0 + $0xf0] sm:$0xf]
  %v79 = vld [vmem:[%s0 + $0xf4] sm:$0xf]
  %v80 = vld [vmem:[%s0 + $0xf8] sm:$0xf]
  %v81 = vld [vmem:[%s0 + $0xfc] sm:$0xf]
  %v82 = vld [vmem:[%s1] sm:$0xf]
  %v83 = vld [vmem:[%s1 + $0x4] sm:$0xf]
  %v84 = vld [vmem:[%s1 + $0x8] sm:$0xf]
  %v85 = vld [vmem:[%s1 + $0xc] sm:$0xf]
  %v86 = vld [vmem:[%s1 + $0x10] sm:$0xf]
  %v87 = vld [vmem:[%s1 + $0x14] sm:$0xf]
  %v88 = vld [vmem:[%s1 + $0x18] sm:$0xf]
  %v89 = vld [vmem:[%s1 + $0x1c] sm:$0xf]
  %v90 = vld [vmem:[%s1 + $0x20] sm:$0xf]
  %v91 = vld [vmem:[%s1 + $0x24] sm:$0xf]
  %v92 = vld [vmem:[%s1 + $0x28] sm:$0xf]
  %v93 = vld [vmem:[%s1 + $0x2c] sm:$0xf]
  %v94 = vld [vmem:[%s1 + $0x30] sm:$0xf]
  %v95 = vld [vmem:[%s1 + $0x34] sm:$0xf]
  %v96 = vld [vmem:[%s1 + $0x38] sm:$0xf]
  %v97 = vld [vmem:[%s1 + $0x3c] sm:$0xf]
  %v98 = vld [vmem:[%s1 + $0x40] sm:$0xf]
  %v99 = vld [vmem:[%s1 + $0x44] sm:$0xf]
  %v100 = vld [vmem:[%s1 + $0x48] sm:$0xf]
  %v101 = vld [vmem:[%s1 + $0x4c] sm:$0xf]
  %v102 = vld [vmem:[%s1 + $0x50] sm:$0xf]
  %v103 = vld [vmem:[%s1 + $0x54] sm:$0xf]
  %v104 = vld [vmem:[%s1 + $0x58] sm:$0xf]
  %v105 = vld [vmem:[%s1 + $0x5c] sm:$0xf]
  %v106 = vld [vmem:[%s1 + $0x60] sm:$0xf]
  %v107 = vld [vmem:[%s1 + $0x64] sm:$0xf]
  %v108 = vld [vmem:[%s1 + $0x68] sm:$0xf]
  %v109 = vld [vmem:[%s1 + $0x6c] sm:$0xf]
  %v110 = vld [vmem:[%s1 + $0x70] sm:$0xf]
  %v111 = vld [vmem:[%s1 + $0x74] sm:$0xf]
  %v112 = vld [vmem:[%s1 + $0x78] sm:$0xf]
  %v113 = vld [vmem:[%s1 + $0x7c] sm:$0xf]
  %v130 = vunpack.c.l.b16 %v18
  %v131 = vunpack.c.l.b16 %v19
  %v132 = vunpack.c.l.b16 %v20
  %v133 = vunpack.c.l.b16 %v21
  %v134 = vunpack.c.l.b16 %v22
  %v135 = vunpack.c.l.b16 %v23
  %v136 = vunpack.c.l.b16 %v24
  %v137 = vunpack.c.l.b16 %v25
  %v138 = vunpack.c.l.b16 %v26
  %v139 = vunpack.c.l.b16 %v27
  %v140 = vunpack.c.l.b16 %v28
  %v141 = vunpack.c.l.b16 %v29
  %v142 = vunpack.c.l.b16 %v30
  %v143 = vunpack.c.l.b16 %v31
  %v144 = vunpack.c.l.b16 %v32
  %v145 = vunpack.c.l.b16 %v33
  %v146 = vpack.c.b16 %v131, %v130
  %v147 = vpack.c.b16 %v133, %v132
  %v148 = vpack.c.b16 %v135, %v134
  %v149 = vpack.c.b16 %v137, %v136
  %v150 = vpack.c.b16 %v139, %v138
  %v151 = vpack.c.b16 %v141, %v140
  %v152 = vpack.c.b16 %v143, %v142
  %v153 = vpack.c.b16 %v145, %v144
  %v162 = vunpack.c.l.b16 %v82
  %v163 = vunpack.c.l.b16 %v83
  %v164 = vunpack.c.l.b16 %v84
  %v165 = vunpack.c.l.b16 %v85
  %v166 = vunpack.c.l.b16 %v86
  %v167 = vunpack.c.l.b16 %v87
  %v168 = vunpack.c.l.b16 %v88
  %v169 = vunpack.c.l.b16 %v89
  %v170 = vpack.c.b16 %v163, %v162
  %v171 = vpack.c.b16 %v165, %v164
  %v172 = vpack.c.b16 %v167, %v166
  %v173 = vpack.c.b16 %v169, %v168
  %vm178 = vcmask 523264
  %v180 = vsel %vm178, %v146, 0
  %v183 = vsel %vm178, %v147, 0
  %v186 = vsel %vm178, %v148, 0
  %v189 = vsel %vm178, %v149, 0
  %v192 = vsel %vm178, %v150, 0
  %v195 = vsel %vm178, %v151, 0
  %v198 = vsel %vm178, %v152, 0
  %v201 = vsel %vm178, %v153, 0
  %203 = vmatpush.bf16.msra.mxu0 0
  %204 = vmatpush.bf16.msra.mxu0 0
  %205 = vmatpush.bf16.msra.mxu0 0
  %206 = vmatpush.bf16.msra.mxu0 0
  %207 = vmatpush.bf16.msra.mxu0 %v173
  %208 = vmatpush.bf16.msra.mxu0 %v172
  %209 = vmatpush.bf16.msra.mxu0 %v171
  %210 = vmatpush.bf16.msra.mxu0 %v170
  %211 = vmatmul.bf16.gmra.mxu0 %v180
  %v212 = vpop.f32.mrf.mxu0
  %v213 = vadd.f32 0.0, %v212
  %v214 = vpop.f32.mrf.mxu0
  %v215 = vadd.f32 0.0, %v214
  %216 = vmatmul.bf16.gmra.mxu0 %v183
  %v217 = vpop.f32.mrf.mxu0
  %v218 = vadd.f32 0.0, %v217
  %v219 = vpop.f32.mrf.mxu0
  %v220 = vadd.f32 0.0, %v219
  %221 = vmatmul.bf16.gmra.mxu0 %v186
  %v222 = vpop.f32.mrf.mxu0
  %v223 = vadd.f32 0.0, %v222
  %v224 = vpop.f32.mrf.mxu0
  %v225 = vadd.f32 0.0, %v224
  %226 = vmatmul.bf16.gmra.mxu0 %v189
  %v227 = vpop.f32.mrf.mxu0
  %v228 = vadd.f32 0.0, %v227
  %v229 = vpop.f32.mrf.mxu0
  %v230 = vadd.f32 0.0, %v229
  %231 = vmatmul.bf16.gmra.mxu0 %v192
  %v232 = vpop.f32.mrf.mxu0
  %v233 = vadd.f32 0.0, %v232
  %v234 = vpop.f32.mrf.mxu0
  %v235 = vadd.f32 0.0, %v234
  %236 = vmatmul.bf16.gmra.mxu0 %v195
  %v237 = vpop.f32.mrf.mxu0
  %v238 = vadd.f32 0.0, %v237
  %v239 = vpop.f32.mrf.mxu0
  %v240 = vadd.f32 0.0, %v239
  %241 = vmatmul.bf16.gmra.mxu0 %v198
  %v242 = vpop.f32.mrf.mxu0
  %v243 = vadd.f32 0.0, %v242
  %v244 = vpop.f32.mrf.mxu0
  %v245 = vadd.f32 0.0, %v244
  %246 = vmatmul.bf16.gmra.mxu0 %v201
  %v247 = vpop.f32.mrf.mxu0
  %v248 = vadd.f32 0.0, %v247
  %v249 = vpop.f32.mrf.mxu0
  %v250 = vadd.f32 0.0, %v249
  %251 = vdwg.mxu0
  %v268 = vunpack.c.l.b16 %v34
  %v269 = vunpack.c.l.b16 %v35
  %v270 = vunpack.c.l.b16 %v36
  %v271 = vunpack.c.l.b16 %v37
  %v272 = vunpack.c.l.b16 %v38
  %v273 = vunpack.c.l.b16 %v39
  %v274 = vunpack.c.l.b16 %v40
  %v275 = vunpack.c.l.b16 %v41
  %v276 = vunpack.c.l.b16 %v42
  %v277 = vunpack.c.l.b16 %v43
  %v278 = vunpack.c.l.b16 %v44
  %v279 = vunpack.c.l.b16 %v45
  %v280 = vunpack.c.l.b16 %v46
  %v281 = vunpack.c.l.b16 %v47
  %v282 = vunpack.c.l.b16 %v48
  %v283 = vunpack.c.l.b16 %v49
  %v284 = vpack.c.b16 %v269, %v268
  %v285 = vpack.c.b16 %v271, %v270
  %v286 = vpack.c.b16 %v273, %v272
  %v287 = vpack.c.b16 %v275, %v274
  %v288 = vpack.c.b16 %v277, %v276
  %v289 = vpack.c.b16 %v279, %v278
  %v290 = vpack.c.b16 %v281, %v280
  %v291 = vpack.c.b16 %v283, %v282
  %v300 = vunpack.c.l.b16 %v90
  %v301 = vunpack.c.l.b16 %v91
  %v302 = vunpack.c.l.b16 %v92
  %v303 = vunpack.c.l.b16 %v93
  %v304 = vunpack.c.l.b16 %v94
  %v305 = vunpack.c.l.b16 %v95
  %v306 = vunpack.c.l.b16 %v96
  %v307 = vunpack.c.l.b16 %v97
  %v308 = vpack.c.b16 %v301, %v300
  %v309 = vpack.c.b16 %v303, %v302
  %v310 = vpack.c.b16 %v305, %v304
  %v311 = vpack.c.b16 %v307, %v306
  %v317 = vsel %vm178, %v284, 0
  %v320 = vsel %vm178, %v285, 0
  %v323 = vsel %vm178, %v286, 0
  %v326 = vsel %vm178, %v287, 0
  %v329 = vsel %vm178, %v288, 0
  %v332 = vsel %vm178, %v289, 0
  %v335 = vsel %vm178, %v290, 0
  %v338 = vsel %vm178, %v291, 0
  %340 = vmatpush.bf16.msra.mxu0 0
  %341 = vmatpush.bf16.msra.mxu0 0
  %342 = vmatpush.bf16.msra.mxu0 0
  %343 = vmatpush.bf16.msra.mxu0 0
  %344 = vmatpush.bf16.msra.mxu0 %v311
  %345 = vmatpush.bf16.msra.mxu0 %v310
  %346 = vmatpush.bf16.msra.mxu0 %v309
  %347 = vmatpush.bf16.msra.mxu0 %v308
  %348 = vmatmul.bf16.gmra.mxu0 %v317
  %v349 = vpop.f32.mrf.mxu0
  %v350 = vadd.f32 0.0, %v349
  %v351 = vpop.f32.mrf.mxu0
  %v352 = vadd.f32 0.0, %v351
  %353 = vmatmul.bf16.gmra.mxu0 %v320
  %v354 = vpop.f32.mrf.mxu0
  %v355 = vadd.f32 0.0, %v354
  %v356 = vpop.f32.mrf.mxu0
  %v357 = vadd.f32 0.0, %v356
  %358 = vmatmul.bf16.gmra.mxu0 %v323
  %v359 = vpop.f32.mrf.mxu0
  %v360 = vadd.f32 0.0, %v359
  %v361 = vpop.f32.mrf.mxu0
  %v362 = vadd.f32 0.0, %v361
  %363 = vmatmul.bf16.gmra.mxu0 %v326
  %v364 = vpop.f32.mrf.mxu0
  %v365 = vadd.f32 0.0, %v364
  %v366 = vpop.f32.mrf.mxu0
  %v367 = vadd.f32 0.0, %v366
  %368 = vmatmul.bf16.gmra.mxu0 %v329
  %v369 = vpop.f32.mrf.mxu0
  %v370 = vadd.f32 0.0, %v369
  %v371 = vpop.f32.mrf.mxu0
  %v372 = vadd.f32 0.0, %v371
  %373 = vmatmul.bf16.gmra.mxu0 %v332
  %v374 = vpop.f32.mrf.mxu0
  %v375 = vadd.f32 0.0, %v374
  %v376 = vpop.f32.mrf.mxu0
  %v377 = vadd.f32 0.0, %v376
  %378 = vmatmul.bf16.gmra.mxu0 %v335
  %v379 = vpop.f32.mrf.mxu0
  %v380 = vadd.f32 0.0, %v379
  %v381 = vpop.f32.mrf.mxu0
  %v382 = vadd.f32 0.0, %v381
  %383 = vmatmul.bf16.gmra.mxu0 %v338
  %v384 = vpop.f32.mrf.mxu0
  %v385 = vadd.f32 0.0, %v384
  %v386 = vpop.f32.mrf.mxu0
  %v387 = vadd.f32 0.0, %v386
  %388 = vdwg.mxu0
  %v405 = vunpack.c.l.b16 %v50
  %v406 = vunpack.c.l.b16 %v51
  %v407 = vunpack.c.l.b16 %v52
  %v408 = vunpack.c.l.b16 %v53
  %v409 = vunpack.c.l.b16 %v54
  %v410 = vunpack.c.l.b16 %v55
  %v411 = vunpack.c.l.b16 %v56
  %v412 = vunpack.c.l.b16 %v57
  %v413 = vunpack.c.l.b16 %v58
  %v414 = vunpack.c.l.b16 %v59
  %v415 = vunpack.c.l.b16 %v60
  %v416 = vunpack.c.l.b16 %v61
  %v417 = vunpack.c.l.b16 %v62
  %v418 = vunpack.c.l.b16 %v63
  %v419 = vunpack.c.l.b16 %v64
  %v420 = vunpack.c.l.b16 %v65
  %v421 = vpack.c.b16 %v406, %v405
  %v422 = vpack.c.b16 %v408, %v407
  %v423 = vpack.c.b16 %v410, %v409
  %v424 = vpack.c.b16 %v412, %v411
  %v425 = vpack.c.b16 %v414, %v413
  %v426 = vpack.c.b16 %v416, %v415
  %v427 = vpack.c.b16 %v418, %v417
  %v428 = vpack.c.b16 %v420, %v419
  %v437 = vunpack.c.l.b16 %v98
  %v438 = vunpack.c.l.b16 %v99
  %v439 = vunpack.c.l.b16 %v100
  %v440 = vunpack.c.l.b16 %v101
  %v441 = vunpack.c.l.b16 %v102
  %v442 = vunpack.c.l.b16 %v103
  %v443 = vunpack.c.l.b16 %v104
  %v444 = vunpack.c.l.b16 %v105
  %v445 = vpack.c.b16 %v438, %v437
  %v446 = vpack.c.b16 %v440, %v439
  %v447 = vpack.c.b16 %v442, %v441
  %v448 = vpack.c.b16 %v444, %v443
  %v454 = vsel %vm178, %v421, 0
  %v457 = vsel %vm178, %v422, 0
  %v460 = vsel %vm178, %v423, 0
  %v463 = vsel %vm178, %v424, 0
  %v466 = vsel %vm178, %v425, 0
  %v469 = vsel %vm178, %v426, 0
  %v472 = vsel %vm178, %v427, 0
  %v475 = vsel %vm178, %v428, 0
  %477 = vmatpush.bf16.msra.mxu0 0
  %478 = vmatpush.bf16.msra.mxu0 0
  %479 = vmatpush.bf16.msra.mxu0 0
  %480 = vmatpush.bf16.msra.mxu0 0
  %481 = vmatpush.bf16.msra.mxu0 %v448
  %482 = vmatpush.bf16.msra.mxu0 %v447
  %483 = vmatpush.bf16.msra.mxu0 %v446
  %484 = vmatpush.bf16.msra.mxu0 %v445
  %485 = vmatmul.bf16.gmra.mxu0 %v454
  %v486 = vpop.f32.mrf.mxu0
  %v487 = vadd.f32 0.0, %v486
  %v488 = vpop.f32.mrf.mxu0
  %v489 = vadd.f32 0.0, %v488
  %490 = vmatmul.bf16.gmra.mxu0 %v457
  %v491 = vpop.f32.mrf.mxu0
  %v492 = vadd.f32 0.0, %v491
  %v493 = vpop.f32.mrf.mxu0
  %v494 = vadd.f32 0.0, %v493
  %495 = vmatmul.bf16.gmra.mxu0 %v460
  %v496 = vpop.f32.mrf.mxu0
  %v497 = vadd.f32 0.0, %v496
  %v498 = vpop.f32.mrf.mxu0
  %v499 = vadd.f32 0.0, %v498
  %500 = vmatmul.bf16.gmra.mxu0 %v463
  %v501 = vpop.f32.mrf.mxu0
  %v502 = vadd.f32 0.0, %v501
  %v503 = vpop.f32.mrf.mxu0
  %v504 = vadd.f32 0.0, %v503
  %505 = vmatmul.bf16.gmra.mxu0 %v466
  %v506 = vpop.f32.mrf.mxu0
  %v507 = vadd.f32 0.0, %v506
  %v508 = vpop.f32.mrf.mxu0
  %v509 = vadd.f32 0.0, %v508
  %510 = vmatmul.bf16.gmra.mxu0 %v469
  %v511 = vpop.f32.mrf.mxu0
  %v512 = vadd.f32 0.0, %v511
  %v513 = vpop.f32.mrf.mxu0
  %v514 = vadd.f32 0.0, %v513
  %515 = vmatmul.bf16.gmra.mxu0 %v472
  %v516 = vpop.f32.mrf.mxu0
  %v517 = vadd.f32 0.0, %v516
  %v518 = vpop.f32.mrf.mxu0
  %v519 = vadd.f32 0.0, %v518
  %520 = vmatmul.bf16.gmra.mxu0 %v475
  %v521 = vpop.f32.mrf.mxu0
  %v522 = vadd.f32 0.0, %v521
  %v523 = vpop.f32.mrf.mxu0
  %v524 = vadd.f32 0.0, %v523
  %525 = vdwg.mxu0
  %v542 = vunpack.c.l.b16 %v66
  %v543 = vunpack.c.l.b16 %v67
  %v544 = vunpack.c.l.b16 %v68
  %v545 = vunpack.c.l.b16 %v69
  %v546 = vunpack.c.l.b16 %v70
  %v547 = vunpack.c.l.b16 %v71
  %v548 = vunpack.c.l.b16 %v72
  %v549 = vunpack.c.l.b16 %v73
  %v550 = vunpack.c.l.b16 %v74
  %v551 = vunpack.c.l.b16 %v75
  %v552 = vunpack.c.l.b16 %v76
  %v553 = vunpack.c.l.b16 %v77
  %v554 = vunpack.c.l.b16 %v78
  %v555 = vunpack.c.l.b16 %v79
  %v556 = vunpack.c.l.b16 %v80
  %v557 = vunpack.c.l.b16 %v81
  %v558 = vpack.c.b16 %v543, %v542
  %v559 = vpack.c.b16 %v545, %v544
  %v560 = vpack.c.b16 %v547, %v546
  %v561 = vpack.c.b16 %v549, %v548
  %v562 = vpack.c.b16 %v551, %v550
  %v563 = vpack.c.b16 %v553, %v552
  %v564 = vpack.c.b16 %v555, %v554
  %v565 = vpack.c.b16 %v557, %v556
  %v574 = vunpack.c.l.b16 %v106
  %v575 = vunpack.c.l.b16 %v107
  %v576 = vunpack.c.l.b16 %v108
  %v577 = vunpack.c.l.b16 %v109
  %v578 = vunpack.c.l.b16 %v110
  %v579 = vunpack.c.l.b16 %v111
  %v580 = vunpack.c.l.b16 %v112
  %v581 = vunpack.c.l.b16 %v113
  %v582 = vpack.c.b16 %v575, %v574
  %v583 = vpack.c.b16 %v577, %v576
  %v584 = vpack.c.b16 %v579, %v578
  %v585 = vpack.c.b16 %v581, %v580
  %v591 = vsel %vm178, %v558, 0
  %v594 = vsel %vm178, %v559, 0
  %v597 = vsel %vm178, %v560, 0
  %v600 = vsel %vm178, %v561, 0
  %v603 = vsel %vm178, %v562, 0
  %v606 = vsel %vm178, %v563, 0
  %v609 = vsel %vm178, %v564, 0
  %v612 = vsel %vm178, %v565, 0
  %614 = vmatpush.bf16.msra.mxu0 0
  %615 = vmatpush.bf16.msra.mxu0 0
  %616 = vmatpush.bf16.msra.mxu0 0
  %617 = vmatpush.bf16.msra.mxu0 0
  %618 = vmatpush.bf16.msra.mxu0 %v585
  %619 = vmatpush.bf16.msra.mxu0 %v584
  %620 = vmatpush.bf16.msra.mxu0 %v583
  %621 = vmatpush.bf16.msra.mxu0 %v582
  %622 = vmatmul.bf16.gmra.mxu0 %v591
  %v623 = vpop.f32.mrf.mxu0
  %v624 = vadd.f32 0.0, %v623
  %v625 = vpop.f32.mrf.mxu0
  %v626 = vadd.f32 0.0, %v625
  %627 = vmatmul.bf16.gmra.mxu0 %v594
  %v628 = vpop.f32.mrf.mxu0
  %v629 = vadd.f32 0.0, %v628
  %v630 = vpop.f32.mrf.mxu0
  %v631 = vadd.f32 0.0, %v630
  %632 = vmatmul.bf16.gmra.mxu0 %v597
  %v633 = vpop.f32.mrf.mxu0
  %v634 = vadd.f32 0.0, %v633
  %v635 = vpop.f32.mrf.mxu0
  %v636 = vadd.f32 0.0, %v635
  %637 = vmatmul.bf16.gmra.mxu0 %v600
  %v638 = vpop.f32.mrf.mxu0
  %v639 = vadd.f32 0.0, %v638
  %v640 = vpop.f32.mrf.mxu0
  %v641 = vadd.f32 0.0, %v640
  %642 = vmatmul.bf16.gmra.mxu0 %v603
  %v643 = vpop.f32.mrf.mxu0
  %v644 = vadd.f32 0.0, %v643
  %v645 = vpop.f32.mrf.mxu0
  %v646 = vadd.f32 0.0, %v645
  %647 = vmatmul.bf16.gmra.mxu0 %v606
  %v648 = vpop.f32.mrf.mxu0
  %v649 = vadd.f32 0.0, %v648
  %v650 = vpop.f32.mrf.mxu0
  %v651 = vadd.f32 0.0, %v650
  %652 = vmatmul.bf16.gmra.mxu0 %v609
  %v653 = vpop.f32.mrf.mxu0
  %v654 = vadd.f32 0.0, %v653
  %v655 = vpop.f32.mrf.mxu0
  %v656 = vadd.f32 0.0, %v655
  %657 = vmatmul.bf16.gmra.mxu0 %v612
  %v658 = vpop.f32.mrf.mxu0
  %v659 = vadd.f32 0.0, %v658
  %v660 = vpop.f32.mrf.mxu0
  %v661 = vadd.f32 0.0, %v660
  %662 = vdwg.mxu0
  %v663 = vadd.f32 %v213, %v215
  %v664 = vadd.f32 %v663, %v218
  %v665 = vadd.f32 %v664, %v220
  %v666 = vadd.f32 %v665, %v223
  %v667 = vadd.f32 %v666, %v225
  %v668 = vadd.f32 %v667, %v228
  %v669 = vadd.f32 %v668, %v230
  %v670 = vadd.f32 %v669, %v233
  %v671 = vadd.f32 %v670, %v235
  %v672 = vadd.f32 %v671, %v238
  %v673 = vadd.f32 %v672, %v240
  %v674 = vadd.f32 %v673, %v243
  %v675 = vadd.f32 %v674, %v245
  %v676 = vadd.f32 %v675, %v248
  %v677 = vadd.f32 %v676, %v250
  %v678 = vrot.slane %v677, 4
  %v679 = vadd.f32 %v677, %v678
  %v680 = vrot.slane %v679, 2
  %v681 = vadd.f32 %v679, %v680
  %v682 = vrot.slane %v681, 1
  %v683 = vadd.f32 %v681, %v682
  %v684 = vadd.f32 %v350, %v352
  %v685 = vadd.f32 %v684, %v355
  %v686 = vadd.f32 %v685, %v357
  %v687 = vadd.f32 %v686, %v360
  %v688 = vadd.f32 %v687, %v362
  %v689 = vadd.f32 %v688, %v365
  %v690 = vadd.f32 %v689, %v367
  %v691 = vadd.f32 %v690, %v370
  %v692 = vadd.f32 %v691, %v372
  %v693 = vadd.f32 %v692, %v375
  %v694 = vadd.f32 %v693, %v377
  %v695 = vadd.f32 %v694, %v380
  %v696 = vadd.f32 %v695, %v382
  %v697 = vadd.f32 %v696, %v385
  %v698 = vadd.f32 %v697, %v387
  %v699 = vrot.slane %v698, 4
  %v700 = vadd.f32 %v698, %v699
  %v701 = vrot.slane %v700, 2
  %v702 = vadd.f32 %v700, %v701
  %v703 = vrot.slane %v702, 1
  %v704 = vadd.f32 %v702, %v703
  %v705 = vadd.f32 %v487, %v489
  %v706 = vadd.f32 %v705, %v492
  %v707 = vadd.f32 %v706, %v494
  %v708 = vadd.f32 %v707, %v497
  %v709 = vadd.f32 %v708, %v499
  %v710 = vadd.f32 %v709, %v502
  %v711 = vadd.f32 %v710, %v504
  %v712 = vadd.f32 %v711, %v507
  %v713 = vadd.f32 %v712, %v509
  %v714 = vadd.f32 %v713, %v512
  %v715 = vadd.f32 %v714, %v514
  %v716 = vadd.f32 %v715, %v517
  %v717 = vadd.f32 %v716, %v519
  %v718 = vadd.f32 %v717, %v522
  %v719 = vadd.f32 %v718, %v524
  %v720 = vrot.slane %v719, 4
  %v721 = vadd.f32 %v719, %v720
  %v722 = vrot.slane %v721, 2
  %v723 = vadd.f32 %v721, %v722
  %v724 = vrot.slane %v723, 1
  %v725 = vadd.f32 %v723, %v724
  %v726 = vadd.f32 %v624, %v626
  %v727 = vadd.f32 %v726, %v629
  %v728 = vadd.f32 %v727, %v631
  %v729 = vadd.f32 %v728, %v634
  %v730 = vadd.f32 %v729, %v636
  %v731 = vadd.f32 %v730, %v639
  %v732 = vadd.f32 %v731, %v641
  %v733 = vadd.f32 %v732, %v644
  %v734 = vadd.f32 %v733, %v646
  %v735 = vadd.f32 %v734, %v649
  %v736 = vadd.f32 %v735, %v651
  %v737 = vadd.f32 %v736, %v654
  %v738 = vadd.f32 %v737, %v656
  %v739 = vadd.f32 %v738, %v659
  %v740 = vadd.f32 %v739, %v661
  %v741 = vrot.slane %v740, 4
  %v742 = vadd.f32 %v740, %v741
  %v743 = vrot.slane %v742, 2
  %v744 = vadd.f32 %v742, %v743
  %v745 = vrot.slane %v744, 1
  %v746 = vadd.f32 %v744, %v745
  %v747 = vrcp.pop 128.0
  %v748 = vmul.f32 128.0, %v747
  %v749 = vsub.f32 1.0, %v748
  %v750 = vmul.f32 %v747, %v749
  %v751 = vadd.f32 %v747, %v750
  %vm752 = vweird.f32 %v747
  %v753 = vsel %vm752, %v747, %v751
  %v754 = vmul.f32 %v683, %v753
  %v755 = vmul.f32 %v704, %v753
  %v756 = vmul.f32 %v725, %v753
  %v757 = vmul.f32 %v746, %v753
  %v758 = vadd.f32 %v754, %v755
  %v759 = vadd.f32 %v758, %v756
  %v760 = vadd.f32 %v759, %v757
  %v761 = vrcp.pop 4.0
  %v762 = vmul.f32 4.0, %v761
  %v763 = vsub.f32 1.0, %v762
  %v764 = vmul.f32 %v761, %v763
  %v765 = vadd.f32 %v761, %v764
  %vm766 = vweird.f32 %v761
  %v767 = vsel %vm766, %v761, %v765
  %v768 = vmul.f32 %v760, %v767
  %v769 = vsub.f32 %v213, %v768
  %v770 = vsub.f32 %v215, %v768
  %v771 = vsub.f32 %v218, %v768
  %v772 = vsub.f32 %v220, %v768
  %v773 = vsub.f32 %v223, %v768
  %v774 = vsub.f32 %v225, %v768
  %v775 = vsub.f32 %v228, %v768
  %v776 = vsub.f32 %v230, %v768
  %v777 = vsub.f32 %v233, %v768
  %v778 = vsub.f32 %v235, %v768
  %v779 = vsub.f32 %v238, %v768
  %v780 = vsub.f32 %v240, %v768
  %v781 = vsub.f32 %v243, %v768
  %v782 = vsub.f32 %v245, %v768
  %v783 = vsub.f32 %v248, %v768
  %v784 = vsub.f32 %v250, %v768
  %v785 = vsub.f32 %v350, %v768
  %v786 = vsub.f32 %v352, %v768
  %v787 = vsub.f32 %v355, %v768
  %v788 = vsub.f32 %v357, %v768
  %v789 = vsub.f32 %v360, %v768
  %v790 = vsub.f32 %v362, %v768
  %v791 = vsub.f32 %v365, %v768
  %v792 = vsub.f32 %v367, %v768
  %v793 = vsub.f32 %v370, %v768
  %v794 = vsub.f32 %v372, %v768
  %v795 = vsub.f32 %v375, %v768
  %v796 = vsub.f32 %v377, %v768
  %v797 = vsub.f32 %v380, %v768
  %v798 = vsub.f32 %v382, %v768
  %v799 = vsub.f32 %v385, %v768
  %v800 = vsub.f32 %v387, %v768
  %v801 = vsub.f32 %v487, %v768
  %v802 = vsub.f32 %v489, %v768
  %v803 = vsub.f32 %v492, %v768
  %v804 = vsub.f32 %v494, %v768
  %v805 = vsub.f32 %v497, %v768
  %v806 = vsub.f32 %v499, %v768
  %v807 = vsub.f32 %v502, %v768
  %v808 = vsub.f32 %v504, %v768
  %v809 = vsub.f32 %v507, %v768
  %v810 = vsub.f32 %v509, %v768
  %v811 = vsub.f32 %v512, %v768
  %v812 = vsub.f32 %v514, %v768
  %v813 = vsub.f32 %v517, %v768
  %v814 = vsub.f32 %v519, %v768
  %v815 = vsub.f32 %v522, %v768
  %v816 = vsub.f32 %v524, %v768
  %v817 = vsub.f32 %v624, %v768
  %v818 = vsub.f32 %v626, %v768
  %v819 = vsub.f32 %v629, %v768
  %v820 = vsub.f32 %v631, %v768
  %v821 = vsub.f32 %v634, %v768
  %v822 = vsub.f32 %v636, %v768
  %v823 = vsub.f32 %v639, %v768
  %v824 = vsub.f32 %v641, %v768
  %v825 = vsub.f32 %v644, %v768
  %v826 = vsub.f32 %v646, %v768
  %v827 = vsub.f32 %v649, %v768
  %v828 = vsub.f32 %v651, %v768
  %v829 = vsub.f32 %v654, %v768
  %v830 = vsub.f32 %v656, %v768
  %v831 = vsub.f32 %v659, %v768
  %v832 = vsub.f32 %v661, %v768
  %v833 = vmul.f32 %v769, %v769
  %v834 = vmul.f32 %v770, %v770
  %v835 = vmul.f32 %v771, %v771
  %v836 = vmul.f32 %v772, %v772
  %v837 = vmul.f32 %v773, %v773
  %v838 = vmul.f32 %v774, %v774
  %v839 = vmul.f32 %v775, %v775
  %v840 = vmul.f32 %v776, %v776
  %v841 = vmul.f32 %v777, %v777
  %v842 = vmul.f32 %v778, %v778
  %v843 = vmul.f32 %v779, %v779
  %v844 = vmul.f32 %v780, %v780
  %v845 = vmul.f32 %v781, %v781
  %v846 = vmul.f32 %v782, %v782
  %v847 = vmul.f32 %v783, %v783
  %v848 = vmul.f32 %v784, %v784
  %v849 = vmul.f32 %v785, %v785
  %v850 = vmul.f32 %v786, %v786
  %v851 = vmul.f32 %v787, %v787
  %v852 = vmul.f32 %v788, %v788
  %v853 = vmul.f32 %v789, %v789
  %v854 = vmul.f32 %v790, %v790
  %v855 = vmul.f32 %v791, %v791
  %v856 = vmul.f32 %v792, %v792
  %v857 = vmul.f32 %v793, %v793
  %v858 = vmul.f32 %v794, %v794
  %v859 = vmul.f32 %v795, %v795
  %v860 = vmul.f32 %v796, %v796
  %v861 = vmul.f32 %v797, %v797
  %v862 = vmul.f32 %v798, %v798
  %v863 = vmul.f32 %v799, %v799
  %v864 = vmul.f32 %v800, %v800
  %v865 = vmul.f32 %v801, %v801
  %v866 = vmul.f32 %v802, %v802
  %v867 = vmul.f32 %v803, %v803
  %v868 = vmul.f32 %v804, %v804
  %v869 = vmul.f32 %v805, %v805
  %v870 = vmul.f32 %v806, %v806
  %v871 = vmul.f32 %v807, %v807
  %v872 = vmul.f32 %v808, %v808
  %v873 = vmul.f32 %v809, %v809
  %v874 = vmul.f32 %v810, %v810
  %v875 = vmul.f32 %v811, %v811
  %v876 = vmul.f32 %v812, %v812
  %v877 = vmul.f32 %v813, %v813
  %v878 = vmul.f32 %v814, %v814
  %v879 = vmul.f32 %v815, %v815
  %v880 = vmul.f32 %v816, %v816
  %v881 = vmul.f32 %v817, %v817
  %v882 = vmul.f32 %v818, %v818
  %v883 = vmul.f32 %v819, %v819
  %v884 = vmul.f32 %v820, %v820
  %v885 = vmul.f32 %v821, %v821
  %v886 = vmul.f32 %v822, %v822
  %v887 = vmul.f32 %v823, %v823
  %v888 = vmul.f32 %v824, %v824
  %v889 = vmul.f32 %v825, %v825
  %v890 = vmul.f32 %v826, %v826
  %v891 = vmul.f32 %v827, %v827
  %v892 = vmul.f32 %v828, %v828
  %v893 = vmul.f32 %v829, %v829
  %v894 = vmul.f32 %v830, %v830
  %v895 = vmul.f32 %v831, %v831
  %v896 = vmul.f32 %v832, %v832
  %v897 = vadd.f32 %v833, %v834
  %v898 = vadd.f32 %v897, %v835
  %v899 = vadd.f32 %v898, %v836
  %v900 = vadd.f32 %v899, %v837
  %v901 = vadd.f32 %v900, %v838
  %v902 = vadd.f32 %v901, %v839
  %v903 = vadd.f32 %v902, %v840
  %v904 = vadd.f32 %v903, %v841
  %v905 = vadd.f32 %v904, %v842
  %v906 = vadd.f32 %v905, %v843
  %v907 = vadd.f32 %v906, %v844
  %v908 = vadd.f32 %v907, %v845
  %v909 = vadd.f32 %v908, %v846
  %v910 = vadd.f32 %v909, %v847
  %v911 = vadd.f32 %v910, %v848
  %v912 = vrot.slane %v911, 4
  %v913 = vadd.f32 %v911, %v912
  %v914 = vrot.slane %v913, 2
  %v915 = vadd.f32 %v913, %v914
  %v916 = vrot.slane %v915, 1
  %v917 = vadd.f32 %v915, %v916
  %v918 = vadd.f32 %v849, %v850
  %v919 = vadd.f32 %v918, %v851
  %v920 = vadd.f32 %v919, %v852
  %v921 = vadd.f32 %v920, %v853
  %v922 = vadd.f32 %v921, %v854
  %v923 = vadd.f32 %v922, %v855
  %v924 = vadd.f32 %v923, %v856
  %v925 = vadd.f32 %v924, %v857
  %v926 = vadd.f32 %v925, %v858
  %v927 = vadd.f32 %v926, %v859
  %v928 = vadd.f32 %v927, %v860
  %v929 = vadd.f32 %v928, %v861
  %v930 = vadd.f32 %v929, %v862
  %v931 = vadd.f32 %v930, %v863
  %v932 = vadd.f32 %v931, %v864
  %v933 = vrot.slane %v932, 4
  %v934 = vadd.f32 %v932, %v933
  %v935 = vrot.slane %v934, 2
  %v936 = vadd.f32 %v934, %v935
  %v937 = vrot.slane %v936, 1
  %v938 = vadd.f32 %v936, %v937
  %v939 = vadd.f32 %v865, %v866
  %v940 = vadd.f32 %v939, %v867
  %v941 = vadd.f32 %v940, %v868
  %v942 = vadd.f32 %v941, %v869
  %v943 = vadd.f32 %v942, %v870
  %v944 = vadd.f32 %v943, %v871
  %v945 = vadd.f32 %v944, %v872
  %v946 = vadd.f32 %v945, %v873
  %v947 = vadd.f32 %v946, %v874
  %v948 = vadd.f32 %v947, %v875
  %v949 = vadd.f32 %v948, %v876
  %v950 = vadd.f32 %v949, %v877
  %v951 = vadd.f32 %v950, %v878
  %v952 = vadd.f32 %v951, %v879
  %v953 = vadd.f32 %v952, %v880
  %v954 = vrot.slane %v953, 4
  %v955 = vadd.f32 %v953, %v954
  %v956 = vrot.slane %v955, 2
  %v957 = vadd.f32 %v955, %v956
  %v958 = vrot.slane %v957, 1
  %v959 = vadd.f32 %v957, %v958
  %v960 = vadd.f32 %v881, %v882
  %v961 = vadd.f32 %v960, %v883
  %v962 = vadd.f32 %v961, %v884
  %v963 = vadd.f32 %v962, %v885
  %v964 = vadd.f32 %v963, %v886
  %v965 = vadd.f32 %v964, %v887
  %v966 = vadd.f32 %v965, %v888
  %v967 = vadd.f32 %v966, %v889
  %v968 = vadd.f32 %v967, %v890
  %v969 = vadd.f32 %v968, %v891
  %v970 = vadd.f32 %v969, %v892
  %v971 = vadd.f32 %v970, %v893
  %v972 = vadd.f32 %v971, %v894
  %v973 = vadd.f32 %v972, %v895
  %v974 = vadd.f32 %v973, %v896
  %v975 = vrot.slane %v974, 4
  %v976 = vadd.f32 %v974, %v975
  %v977 = vrot.slane %v976, 2
  %v978 = vadd.f32 %v976, %v977
  %v979 = vrot.slane %v978, 1
  %v980 = vadd.f32 %v978, %v979
  %v981 = vmul.f32 %v917, %v753
  %v982 = vmul.f32 %v938, %v753
  %v983 = vmul.f32 %v959, %v753
  %v984 = vmul.f32 %v980, %v753
  %v985 = vadd.f32 %v981, %v982
  %v986 = vadd.f32 %v985, %v983
  %v987 = vadd.f32 %v986, %v984
  %v988 = vmul.f32 %v987, %v767
  %v989 = vadd.f32 %v988, 1e-05
  %v990 = vrsqrt.pop %v989
  %v991 = vmul.f32 %v990, %v989
  %v992 = vmul.f32 %v991, %v990
  %v993 = vmul.f32 0.5, %v992
  %v994 = vsub.f32 1.5, %v993
  %v995 = vmul.f32 %v990, %v994
  %vm996 = vweird.f32 %v989
  %vm997 = vweird.f32 %v990
  %vm998 = vmor %vm996, %vm997
  %v999 = vsel %vm998, %v990, %v995
  %v1000 = vmul.f32 %v769, %v999
  %v1001 = vmul.f32 %v770, %v999
  %v1002 = vmul.f32 %v771, %v999
  %v1003 = vmul.f32 %v772, %v999
  %v1004 = vmul.f32 %v773, %v999
  %v1005 = vmul.f32 %v774, %v999
  %v1006 = vmul.f32 %v775, %v999
  %v1007 = vmul.f32 %v776, %v999
  %v1008 = vmul.f32 %v777, %v999
  %v1009 = vmul.f32 %v778, %v999
  %v1010 = vmul.f32 %v779, %v999
  %v1011 = vmul.f32 %v780, %v999
  %v1012 = vmul.f32 %v781, %v999
  %v1013 = vmul.f32 %v782, %v999
  %v1014 = vmul.f32 %v783, %v999
  %v1015 = vmul.f32 %v784, %v999
  %v1016 = vmul.f32 %v785, %v999
  %v1017 = vmul.f32 %v786, %v999
  %v1018 = vmul.f32 %v787, %v999
  %v1019 = vmul.f32 %v788, %v999
  %v1020 = vmul.f32 %v789, %v999
  %v1021 = vmul.f32 %v790, %v999
  %v1022 = vmul.f32 %v791, %v999
  %v1023 = vmul.f32 %v792, %v999
  %v1024 = vmul.f32 %v793, %v999
  %v1025 = vmul.f32 %v794, %v999
  %v1026 = vmul.f32 %v795, %v999
  %v1027 = vmul.f32 %v796, %v999
  %v1028 = vmul.f32 %v797, %v999
  %v1029 = vmul.f32 %v798, %v999
  %v1030 = vmul.f32 %v799, %v999
  %v1031 = vmul.f32 %v800, %v999
  %v1032 = vmul.f32 %v801, %v999
  %v1033 = vmul.f32 %v802, %v999
  %v1034 = vmul.f32 %v803, %v999
  %v1035 = vmul.f32 %v804, %v999
  %v1036 = vmul.f32 %v805, %v999
  %v1037 = vmul.f32 %v806, %v999
  %v1038 = vmul.f32 %v807, %v999
  %v1039 = vmul.f32 %v808, %v999
  %v1040 = vmul.f32 %v809, %v999
  %v1041 = vmul.f32 %v810, %v999
  %v1042 = vmul.f32 %v811, %v999
  %v1043 = vmul.f32 %v812, %v999
  %v1044 = vmul.f32 %v813, %v999
  %v1045 = vmul.f32 %v814, %v999
  %v1046 = vmul.f32 %v815, %v999
  %v1047 = vmul.f32 %v816, %v999
  %v1048 = vmul.f32 %v817, %v999
  %v1049 = vmul.f32 %v818, %v999
  %v1050 = vmul.f32 %v819, %v999
  %v1051 = vmul.f32 %v820, %v999
  %v1052 = vmul.f32 %v821, %v999
  %v1053 = vmul.f32 %v822, %v999
  %v1054 = vmul.f32 %v823, %v999
  %v1055 = vmul.f32 %v824, %v999
  %v1056 = vmul.f32 %v825, %v999
  %v1057 = vmul.f32 %v826, %v999
  %v1058 = vmul.f32 %v827, %v999
  %v1059 = vmul.f32 %v828, %v999
  %v1060 = vmul.f32 %v829, %v999
  %v1061 = vmul.f32 %v830, %v999
  %v1062 = vmul.f32 %v831, %v999
  %v1063 = vmul.f32 %v832, %v999
  %v1064 = vld [vmem:[%s2] sm:$0x1]
  %v1066 = vperm.slane %v1064, 0
  %v1068 = vmul.f32 %v1000, %v1066
  %v1069 = vmul.f32 %v1001, %v1066
  %v1070 = vmul.f32 %v1002, %v1066
  %v1071 = vmul.f32 %v1003, %v1066
  %v1072 = vmul.f32 %v1004, %v1066
  %v1073 = vmul.f32 %v1005, %v1066
  %v1074 = vmul.f32 %v1006, %v1066
  %v1075 = vmul.f32 %v1007, %v1066
  %v1076 = vmul.f32 %v1008, %v1066
  %v1077 = vmul.f32 %v1009, %v1066
  %v1078 = vmul.f32 %v1010, %v1066
  %v1079 = vmul.f32 %v1011, %v1066
  %v1080 = vmul.f32 %v1012, %v1066
  %v1081 = vmul.f32 %v1013, %v1066
  %v1082 = vmul.f32 %v1014, %v1066
  %v1083 = vmul.f32 %v1015, %v1066
  %v1084 = vmul.f32 %v1016, %v1066
  %v1085 = vmul.f32 %v1017, %v1066
  %v1086 = vmul.f32 %v1018, %v1066
  %v1087 = vmul.f32 %v1019, %v1066
  %v1088 = vmul.f32 %v1020, %v1066
  %v1089 = vmul.f32 %v1021, %v1066
  %v1090 = vmul.f32 %v1022, %v1066
  %v1091 = vmul.f32 %v1023, %v1066
  %v1092 = vmul.f32 %v1024, %v1066
  %v1093 = vmul.f32 %v1025, %v1066
  %v1094 = vmul.f32 %v1026, %v1066
  %v1095 = vmul.f32 %v1027, %v1066
  %v1096 = vmul.f32 %v1028, %v1066
  %v1097 = vmul.f32 %v1029, %v1066
  %v1098 = vmul.f32 %v1030, %v1066
  %v1099 = vmul.f32 %v1031, %v1066
  %v1100 = vmul.f32 %v1032, %v1066
  %v1101 = vmul.f32 %v1033, %v1066
  %v1102 = vmul.f32 %v1034, %v1066
  %v1103 = vmul.f32 %v1035, %v1066
  %v1104 = vmul.f32 %v1036, %v1066
  %v1105 = vmul.f32 %v1037, %v1066
  %v1106 = vmul.f32 %v1038, %v1066
  %v1107 = vmul.f32 %v1039, %v1066
  %v1108 = vmul.f32 %v1040, %v1066
  %v1109 = vmul.f32 %v1041, %v1066
  %v1110 = vmul.f32 %v1042, %v1066
  %v1111 = vmul.f32 %v1043, %v1066
  %v1112 = vmul.f32 %v1044, %v1066
  %v1113 = vmul.f32 %v1045, %v1066
  %v1114 = vmul.f32 %v1046, %v1066
  %v1115 = vmul.f32 %v1047, %v1066
  %v1116 = vmul.f32 %v1048, %v1066
  %v1117 = vmul.f32 %v1049, %v1066
  %v1118 = vmul.f32 %v1050, %v1066
  %v1119 = vmul.f32 %v1051, %v1066
  %v1120 = vmul.f32 %v1052, %v1066
  %v1121 = vmul.f32 %v1053, %v1066
  %v1122 = vmul.f32 %v1054, %v1066
  %v1123 = vmul.f32 %v1055, %v1066
  %v1124 = vmul.f32 %v1056, %v1066
  %v1125 = vmul.f32 %v1057, %v1066
  %v1126 = vmul.f32 %v1058, %v1066
  %v1127 = vmul.f32 %v1059, %v1066
  %v1128 = vmul.f32 %v1060, %v1066
  %v1129 = vmul.f32 %v1061, %v1066
  %v1130 = vmul.f32 %v1062, %v1066
  %v1131 = vmul.f32 %v1063, %v1066
  %v1132 = vld [vmem:[%s3] sm:$0x1]
  %v1134 = vperm.slane %v1132, 0
  %v1136 = vadd.f32 %v1068, %v1134
  %v1137 = vadd.f32 %v1069, %v1134
  %v1138 = vadd.f32 %v1070, %v1134
  %v1139 = vadd.f32 %v1071, %v1134
  %v1140 = vadd.f32 %v1072, %v1134
  %v1141 = vadd.f32 %v1073, %v1134
  %v1142 = vadd.f32 %v1074, %v1134
  %v1143 = vadd.f32 %v1075, %v1134
  %v1144 = vadd.f32 %v1076, %v1134
  %v1145 = vadd.f32 %v1077, %v1134
  %v1146 = vadd.f32 %v1078, %v1134
  %v1147 = vadd.f32 %v1079, %v1134
  %v1148 = vadd.f32 %v1080, %v1134
  %v1149 = vadd.f32 %v1081, %v1134
  %v1150 = vadd.f32 %v1082, %v1134
  %v1151 = vadd.f32 %v1083, %v1134
  %v1152 = vadd.f32 %v1084, %v1134
  %v1153 = vadd.f32 %v1085, %v1134
  %v1154 = vadd.f32 %v1086, %v1134
  %v1155 = vadd.f32 %v1087, %v1134
  %v1156 = vadd.f32 %v1088, %v1134
  %v1157 = vadd.f32 %v1089, %v1134
  %v1158 = vadd.f32 %v1090, %v1134
  %v1159 = vadd.f32 %v1091, %v1134
  %v1160 = vadd.f32 %v1092, %v1134
  %v1161 = vadd.f32 %v1093, %v1134
  %v1162 = vadd.f32 %v1094, %v1134
  %v1163 = vadd.f32 %v1095, %v1134
  %v1164 = vadd.f32 %v1096, %v1134
  %v1165 = vadd.f32 %v1097, %v1134
  %v1166 = vadd.f32 %v1098, %v1134
  %v1167 = vadd.f32 %v1099, %v1134
  %v1168 = vadd.f32 %v1100, %v1134
  %v1169 = vadd.f32 %v1101, %v1134
  %v1170 = vadd.f32 %v1102, %v1134
  %v1171 = vadd.f32 %v1103, %v1134
  %v1172 = vadd.f32 %v1104, %v1134
  %v1173 = vadd.f32 %v1105, %v1134
  %v1174 = vadd.f32 %v1106, %v1134
  %v1175 = vadd.f32 %v1107, %v1134
  %v1176 = vadd.f32 %v1108, %v1134
  %v1177 = vadd.f32 %v1109, %v1134
  %v1178 = vadd.f32 %v1110, %v1134
  %v1179 = vadd.f32 %v1111, %v1134
  %v1180 = vadd.f32 %v1112, %v1134
  %v1181 = vadd.f32 %v1113, %v1134
  %v1182 = vadd.f32 %v1114, %v1134
  %v1183 = vadd.f32 %v1115, %v1134
  %v1184 = vadd.f32 %v1116, %v1134
  %v1185 = vadd.f32 %v1117, %v1134
  %v1186 = vadd.f32 %v1118, %v1134
  %v1187 = vadd.f32 %v1119, %v1134
  %v1188 = vadd.f32 %v1120, %v1134
  %v1189 = vadd.f32 %v1121, %v1134
  %v1190 = vadd.f32 %v1122, %v1134
  %v1191 = vadd.f32 %v1123, %v1134
  %v1192 = vadd.f32 %v1124, %v1134
  %v1193 = vadd.f32 %v1125, %v1134
  %v1194 = vadd.f32 %v1126, %v1134
  %v1195 = vadd.f32 %v1127, %v1134
  %v1196 = vadd.f32 %v1128, %v1134
  %v1197 = vadd.f32 %v1129, %v1134
  %v1198 = vadd.f32 %v1130, %v1134
  %v1199 = vadd.f32 %v1131, %v1134
  %vm1200 = vcmp.ge.f32.partialorder %v1136, 0.0
  %vm1201 = vcmp.ge.f32.partialorder %v1137, 0.0
  %vm1202 = vcmp.ge.f32.partialorder %v1138, 0.0
  %vm1203 = vcmp.ge.f32.partialorder %v1139, 0.0
  %vm1204 = vcmp.ge.f32.partialorder %v1140, 0.0
  %vm1205 = vcmp.ge.f32.partialorder %v1141, 0.0
  %vm1206 = vcmp.ge.f32.partialorder %v1142, 0.0
  %vm1207 = vcmp.ge.f32.partialorder %v1143, 0.0
  %vm1208 = vcmp.ge.f32.partialorder %v1144, 0.0
  %vm1209 = vcmp.ge.f32.partialorder %v1145, 0.0
  %vm1210 = vcmp.ge.f32.partialorder %v1146, 0.0
  %vm1211 = vcmp.ge.f32.partialorder %v1147, 0.0
  %vm1212 = vcmp.ge.f32.partialorder %v1148, 0.0
  %vm1213 = vcmp.ge.f32.partialorder %v1149, 0.0
  %vm1214 = vcmp.ge.f32.partialorder %v1150, 0.0
  %vm1215 = vcmp.ge.f32.partialorder %v1151, 0.0
  %vm1216 = vcmp.ge.f32.partialorder %v1152, 0.0
  %vm1217 = vcmp.ge.f32.partialorder %v1153, 0.0
  %vm1218 = vcmp.ge.f32.partialorder %v1154, 0.0
  %vm1219 = vcmp.ge.f32.partialorder %v1155, 0.0
  %vm1220 = vcmp.ge.f32.partialorder %v1156, 0.0
  %vm1221 = vcmp.ge.f32.partialorder %v1157, 0.0
  %vm1222 = vcmp.ge.f32.partialorder %v1158, 0.0
  %vm1223 = vcmp.ge.f32.partialorder %v1159, 0.0
  %vm1224 = vcmp.ge.f32.partialorder %v1160, 0.0
  %vm1225 = vcmp.ge.f32.partialorder %v1161, 0.0
  %vm1226 = vcmp.ge.f32.partialorder %v1162, 0.0
  %vm1227 = vcmp.ge.f32.partialorder %v1163, 0.0
  %vm1228 = vcmp.ge.f32.partialorder %v1164, 0.0
  %vm1229 = vcmp.ge.f32.partialorder %v1165, 0.0
  %vm1230 = vcmp.ge.f32.partialorder %v1166, 0.0
  %vm1231 = vcmp.ge.f32.partialorder %v1167, 0.0
  %vm1232 = vcmp.ge.f32.partialorder %v1168, 0.0
  %vm1233 = vcmp.ge.f32.partialorder %v1169, 0.0
  %vm1234 = vcmp.ge.f32.partialorder %v1170, 0.0
  %vm1235 = vcmp.ge.f32.partialorder %v1171, 0.0
  %vm1236 = vcmp.ge.f32.partialorder %v1172, 0.0
  %vm1237 = vcmp.ge.f32.partialorder %v1173, 0.0
  %vm1238 = vcmp.ge.f32.partialorder %v1174, 0.0
  %vm1239 = vcmp.ge.f32.partialorder %v1175, 0.0
  %vm1240 = vcmp.ge.f32.partialorder %v1176, 0.0
  %vm1241 = vcmp.ge.f32.partialorder %v1177, 0.0
  %vm1242 = vcmp.ge.f32.partialorder %v1178, 0.0
  %vm1243 = vcmp.ge.f32.partialorder %v1179, 0.0
  %vm1244 = vcmp.ge.f32.partialorder %v1180, 0.0
  %vm1245 = vcmp.ge.f32.partialorder %v1181, 0.0
  %vm1246 = vcmp.ge.f32.partialorder %v1182, 0.0
  %vm1247 = vcmp.ge.f32.partialorder %v1183, 0.0
  %vm1248 = vcmp.ge.f32.partialorder %v1184, 0.0
  %vm1249 = vcmp.ge.f32.partialorder %v1185, 0.0
  %vm1250 = vcmp.ge.f32.partialorder %v1186, 0.0
  %vm1251 = vcmp.ge.f32.partialorder %v1187, 0.0
  %vm1252 = vcmp.ge.f32.partialorder %v1188, 0.0
  %vm1253 = vcmp.ge.f32.partialorder %v1189, 0.0
  %vm1254 = vcmp.ge.f32.partialorder %v1190, 0.0
  %vm1255 = vcmp.ge.f32.partialorder %v1191, 0.0
  %vm1256 = vcmp.ge.f32.partialorder %v1192, 0.0
  %vm1257 = vcmp.ge.f32.partialorder %v1193, 0.0
  %vm1258 = vcmp.ge.f32.partialorder %v1194, 0.0
  %vm1259 = vcmp.ge.f32.partialorder %v1195, 0.0
  %vm1260 = vcmp.ge.f32.partialorder %v1196, 0.0
  %vm1261 = vcmp.ge.f32.partialorder %v1197, 0.0
  %vm1262 = vcmp.ge.f32.partialorder %v1198, 0.0
  %vm1263 = vcmp.ge.f32.partialorder %v1199, 0.0
  %v1264 = vmul.f32 %v1136, 0.2
  %v1265 = vmul.f32 %v1137, 0.2
  %v1266 = vmul.f32 %v1138, 0.2
  %v1267 = vmul.f32 %v1139, 0.2
  %v1268 = vmul.f32 %v1140, 0.2
  %v1269 = vmul.f32 %v1141, 0.2
  %v1270 = vmul.f32 %v1142, 0.2
  %v1271 = vmul.f32 %v1143, 0.2
  %v1272 = vmul.f32 %v1144, 0.2
  %v1273 = vmul.f32 %v1145, 0.2
  %v1274 = vmul.f32 %v1146, 0.2
  %v1275 = vmul.f32 %v1147, 0.2
  %v1276 = vmul.f32 %v1148, 0.2
  %v1277 = vmul.f32 %v1149, 0.2
  %v1278 = vmul.f32 %v1150, 0.2
  %v1279 = vmul.f32 %v1151, 0.2
  %v1280 = vmul.f32 %v1152, 0.2
  %v1281 = vmul.f32 %v1153, 0.2
  %v1282 = vmul.f32 %v1154, 0.2
  %v1283 = vmul.f32 %v1155, 0.2
  %v1284 = vmul.f32 %v1156, 0.2
  %v1285 = vmul.f32 %v1157, 0.2
  %v1286 = vmul.f32 %v1158, 0.2
  %v1287 = vmul.f32 %v1159, 0.2
  %v1288 = vmul.f32 %v1160, 0.2
  %v1289 = vmul.f32 %v1161, 0.2
  %v1290 = vmul.f32 %v1162, 0.2
  %v1291 = vmul.f32 %v1163, 0.2
  %v1292 = vmul.f32 %v1164, 0.2
  %v1293 = vmul.f32 %v1165, 0.2
  %v1294 = vmul.f32 %v1166, 0.2
  %v1295 = vmul.f32 %v1167, 0.2
  %v1296 = vmul.f32 %v1168, 0.2
  %v1297 = vmul.f32 %v1169, 0.2
  %v1298 = vmul.f32 %v1170, 0.2
  %v1299 = vmul.f32 %v1171, 0.2
  %v1300 = vmul.f32 %v1172, 0.2
  %v1301 = vmul.f32 %v1173, 0.2
  %v1302 = vmul.f32 %v1174, 0.2
  %v1303 = vmul.f32 %v1175, 0.2
  %v1304 = vmul.f32 %v1176, 0.2
  %v1305 = vmul.f32 %v1177, 0.2
  %v1306 = vmul.f32 %v1178, 0.2
  %v1307 = vmul.f32 %v1179, 0.2
  %v1308 = vmul.f32 %v1180, 0.2
  %v1309 = vmul.f32 %v1181, 0.2
  %v1310 = vmul.f32 %v1182, 0.2
  %v1311 = vmul.f32 %v1183, 0.2
  %v1312 = vmul.f32 %v1184, 0.2
  %v1313 = vmul.f32 %v1185, 0.2
  %v1314 = vmul.f32 %v1186, 0.2
  %v1315 = vmul.f32 %v1187, 0.2
  %v1316 = vmul.f32 %v1188, 0.2
  %v1317 = vmul.f32 %v1189, 0.2
  %v1318 = vmul.f32 %v1190, 0.2
  %v1319 = vmul.f32 %v1191, 0.2
  %v1320 = vmul.f32 %v1192, 0.2
  %v1321 = vmul.f32 %v1193, 0.2
  %v1322 = vmul.f32 %v1194, 0.2
  %v1323 = vmul.f32 %v1195, 0.2
  %v1324 = vmul.f32 %v1196, 0.2
  %v1325 = vmul.f32 %v1197, 0.2
  %v1326 = vmul.f32 %v1198, 0.2
  %v1327 = vmul.f32 %v1199, 0.2
  %v1328 = vsel %vm1200, %v1136, %v1264
  %v1329 = vsel %vm1201, %v1137, %v1265
  %v1330 = vsel %vm1202, %v1138, %v1266
  %v1331 = vsel %vm1203, %v1139, %v1267
  %v1332 = vsel %vm1204, %v1140, %v1268
  %v1333 = vsel %vm1205, %v1141, %v1269
  %v1334 = vsel %vm1206, %v1142, %v1270
  %v1335 = vsel %vm1207, %v1143, %v1271
  %v1336 = vsel %vm1208, %v1144, %v1272
  %v1337 = vsel %vm1209, %v1145, %v1273
  %v1338 = vsel %vm1210, %v1146, %v1274
  %v1339 = vsel %vm1211, %v1147, %v1275
  %v1340 = vsel %vm1212, %v1148, %v1276
  %v1341 = vsel %vm1213, %v1149, %v1277
  %v1342 = vsel %vm1214, %v1150, %v1278
  %v1343 = vsel %vm1215, %v1151, %v1279
  %v1344 = vsel %vm1216, %v1152, %v1280
  %v1345 = vsel %vm1217, %v1153, %v1281
  %v1346 = vsel %vm1218, %v1154, %v1282
  %v1347 = vsel %vm1219, %v1155, %v1283
  %v1348 = vsel %vm1220, %v1156, %v1284
  %v1349 = vsel %vm1221, %v1157, %v1285
  %v1350 = vsel %vm1222, %v1158, %v1286
  %v1351 = vsel %vm1223, %v1159, %v1287
  %v1352 = vsel %vm1224, %v1160, %v1288
  %v1353 = vsel %vm1225, %v1161, %v1289
  %v1354 = vsel %vm1226, %v1162, %v1290
  %v1355 = vsel %vm1227, %v1163, %v1291
  %v1356 = vsel %vm1228, %v1164, %v1292
  %v1357 = vsel %vm1229, %v1165, %v1293
  %v1358 = vsel %vm1230, %v1166, %v1294
  %v1359 = vsel %vm1231, %v1167, %v1295
  %v1360 = vsel %vm1232, %v1168, %v1296
  %v1361 = vsel %vm1233, %v1169, %v1297
  %v1362 = vsel %vm1234, %v1170, %v1298
  %v1363 = vsel %vm1235, %v1171, %v1299
  %v1364 = vsel %vm1236, %v1172, %v1300
  %v1365 = vsel %vm1237, %v1173, %v1301
  %v1366 = vsel %vm1238, %v1174, %v1302
  %v1367 = vsel %vm1239, %v1175, %v1303
  %v1368 = vsel %vm1240, %v1176, %v1304
  %v1369 = vsel %vm1241, %v1177, %v1305
  %v1370 = vsel %vm1242, %v1178, %v1306
  %v1371 = vsel %vm1243, %v1179, %v1307
  %v1372 = vsel %vm1244, %v1180, %v1308
  %v1373 = vsel %vm1245, %v1181, %v1309
  %v1374 = vsel %vm1246, %v1182, %v1310
  %v1375 = vsel %vm1247, %v1183, %v1311
  %v1376 = vsel %vm1248, %v1184, %v1312
  %v1377 = vsel %vm1249, %v1185, %v1313
  %v1378 = vsel %vm1250, %v1186, %v1314
  %v1379 = vsel %vm1251, %v1187, %v1315
  %v1380 = vsel %vm1252, %v1188, %v1316
  %v1381 = vsel %vm1253, %v1189, %v1317
  %v1382 = vsel %vm1254, %v1190, %v1318
  %v1383 = vsel %vm1255, %v1191, %v1319
  %v1384 = vsel %vm1256, %v1192, %v1320
  %v1385 = vsel %vm1257, %v1193, %v1321
  %v1386 = vsel %vm1258, %v1194, %v1322
  %v1387 = vsel %vm1259, %v1195, %v1323
  %v1388 = vsel %vm1260, %v1196, %v1324
  %v1389 = vsel %vm1261, %v1197, %v1325
  %v1390 = vsel %vm1262, %v1198, %v1326
  %v1391 = vsel %vm1263, %v1199, %v1327
  %v1392 = vpack.c.bf16 %v1328, %v1328
  %v1393 = vpack.c.bf16 %v1329, %v1329
  %v1394 = vpack.c.bf16 %v1330, %v1330
  %v1395 = vpack.c.bf16 %v1331, %v1331
  %v1396 = vpack.c.bf16 %v1332, %v1332
  %v1397 = vpack.c.bf16 %v1333, %v1333
  %v1398 = vpack.c.bf16 %v1334, %v1334
  %v1399 = vpack.c.bf16 %v1335, %v1335
  %v1400 = vpack.c.bf16 %v1336, %v1336
  %v1401 = vpack.c.bf16 %v1337, %v1337
  %v1402 = vpack.c.bf16 %v1338, %v1338
  %v1403 = vpack.c.bf16 %v1339, %v1339
  %v1404 = vpack.c.bf16 %v1340, %v1340
  %v1405 = vpack.c.bf16 %v1341, %v1341
  %v1406 = vpack.c.bf16 %v1342, %v1342
  %v1407 = vpack.c.bf16 %v1343, %v1343
  %v1408 = vpack.c.bf16 %v1344, %v1344
  %v1409 = vpack.c.bf16 %v1345, %v1345
  %v1410 = vpack.c.bf16 %v1346, %v1346
  %v1411 = vpack.c.bf16 %v1347, %v1347
  %v1412 = vpack.c.bf16 %v1348, %v1348
  %v1413 = vpack.c.bf16 %v1349, %v1349
  %v1414 = vpack.c.bf16 %v1350, %v1350
  %v1415 = vpack.c.bf16 %v1351, %v1351
  %v1416 = vpack.c.bf16 %v1352, %v1352
  %v1417 = vpack.c.bf16 %v1353, %v1353
  %v1418 = vpack.c.bf16 %v1354, %v1354
  %v1419 = vpack.c.bf16 %v1355, %v1355
  %v1420 = vpack.c.bf16 %v1356, %v1356
  %v1421 = vpack.c.bf16 %v1357, %v1357
  %v1422 = vpack.c.bf16 %v1358, %v1358
  %v1423 = vpack.c.bf16 %v1359, %v1359
  %v1424 = vpack.c.bf16 %v1360, %v1360
  %v1425 = vpack.c.bf16 %v1361, %v1361
  %v1426 = vpack.c.bf16 %v1362, %v1362
  %v1427 = vpack.c.bf16 %v1363, %v1363
  %v1428 = vpack.c.bf16 %v1364, %v1364
  %v1429 = vpack.c.bf16 %v1365, %v1365
  %v1430 = vpack.c.bf16 %v1366, %v1366
  %v1431 = vpack.c.bf16 %v1367, %v1367
  %v1432 = vpack.c.bf16 %v1368, %v1368
  %v1433 = vpack.c.bf16 %v1369, %v1369
  %v1434 = vpack.c.bf16 %v1370, %v1370
  %v1435 = vpack.c.bf16 %v1371, %v1371
  %v1436 = vpack.c.bf16 %v1372, %v1372
  %v1437 = vpack.c.bf16 %v1373, %v1373
  %v1438 = vpack.c.bf16 %v1374, %v1374
  %v1439 = vpack.c.bf16 %v1375, %v1375
  %v1440 = vpack.c.bf16 %v1376, %v1376
  %v1441 = vpack.c.bf16 %v1377, %v1377
  %v1442 = vpack.c.bf16 %v1378, %v1378
  %v1443 = vpack.c.bf16 %v1379, %v1379
  %v1444 = vpack.c.bf16 %v1380, %v1380
  %v1445 = vpack.c.bf16 %v1381, %v1381
  %v1446 = vpack.c.bf16 %v1382, %v1382
  %v1447 = vpack.c.bf16 %v1383, %v1383
  %v1448 = vpack.c.bf16 %v1384, %v1384
  %v1449 = vpack.c.bf16 %v1385, %v1385
  %v1450 = vpack.c.bf16 %v1386, %v1386
  %v1451 = vpack.c.bf16 %v1387, %v1387
  %v1452 = vpack.c.bf16 %v1388, %v1388
  %v1453 = vpack.c.bf16 %v1389, %v1389
  %v1454 = vpack.c.bf16 %v1390, %v1390
  %v1455 = vpack.c.bf16 %v1391, %v1391
  %1456 = vst [vmem:[%s4] sm:$0xf] %v1392
  %1457 = vst [vmem:[%s4 + $0x4] sm:$0xf] %v1393
  %1458 = vst [vmem:[%s4 + $0x8] sm:$0xf] %v1394
  %1459 = vst [vmem:[%s4 + $0xc] sm:$0xf] %v1395
  %1460 = vst [vmem:[%s4 + $0x10] sm:$0xf] %v1396
  %1461 = vst [vmem:[%s4 + $0x14] sm:$0xf] %v1397
  %1462 = vst [vmem:[%s4 + $0x18] sm:$0xf] %v1398
  %1463 = vst [vmem:[%s4 + $0x1c] sm:$0xf] %v1399
  %1464 = vst [vmem:[%s4 + $0x20] sm:$0xf] %v1400
  %1465 = vst [vmem:[%s4 + $0x24] sm:$0xf] %v1401
  %1466 = vst [vmem:[%s4 + $0x28] sm:$0xf] %v1402
  %1467 = vst [vmem:[%s4 + $0x2c] sm:$0xf] %v1403
  %1468 = vst [vmem:[%s4 + $0x30] sm:$0xf] %v1404
  %1469 = vst [vmem:[%s4 + $0x34] sm:$0xf] %v1405
  %1470 = vst [vmem:[%s4 + $0x38] sm:$0xf] %v1406
  %1471 = vst [vmem:[%s4 + $0x3c] sm:$0xf] %v1407
  %1472 = vst [vmem:[%s4 + $0x40] sm:$0xf] %v1408
  %1473 = vst [vmem:[%s4 + $0x44] sm:$0xf] %v1409
  %1474 = vst [vmem:[%s4 + $0x48] sm:$0xf] %v1410
  %1475 = vst [vmem:[%s4 + $0x4c] sm:$0xf] %v1411
  %1476 = vst [vmem:[%s4 + $0x50] sm:$0xf] %v1412
  %1477 = vst [vmem:[%s4 + $0x54] sm:$0xf] %v1413
  %1478 = vst [vmem:[%s4 + $0x58] sm:$0xf] %v1414
  %1479 = vst [vmem:[%s4 + $0x5c] sm:$0xf] %v1415
  %1480 = vst [vmem:[%s4 + $0x60] sm:$0xf] %v1416
  %1481 = vst [vmem:[%s4 + $0x64] sm:$0xf] %v1417
  %1482 = vst [vmem:[%s4 + $0x68] sm:$0xf] %v1418
  %1483 = vst [vmem:[%s4 + $0x6c] sm:$0xf] %v1419
  %1484 = vst [vmem:[%s4 + $0x70] sm:$0xf] %v1420
  %1485 = vst [vmem:[%s4 + $0x74] sm:$0xf] %v1421
  %1486 = vst [vmem:[%s4 + $0x78] sm:$0xf] %v1422
  %1487 = vst [vmem:[%s4 + $0x7c] sm:$0xf] %v1423
  %1488 = vst [vmem:[%s4 + $0x80] sm:$0xf] %v1424
  %1489 = vst [vmem:[%s4 + $0x84] sm:$0xf] %v1425
  %1490 = vst [vmem:[%s4 + $0x88] sm:$0xf] %v1426
  %1491 = vst [vmem:[%s4 + $0x8c] sm:$0xf] %v1427
  %1492 = vst [vmem:[%s4 + $0x90] sm:$0xf] %v1428
  %1493 = vst [vmem:[%s4 + $0x94] sm:$0xf] %v1429
  %1494 = vst [vmem:[%s4 + $0x98] sm:$0xf] %v1430
  %1495 = vst [vmem:[%s4 + $0x9c] sm:$0xf] %v1431
  %1496 = vst [vmem:[%s4 + $0xa0] sm:$0xf] %v1432
  %1497 = vst [vmem:[%s4 + $0xa4] sm:$0xf] %v1433
  %1498 = vst [vmem:[%s4 + $0xa8] sm:$0xf] %v1434
  %1499 = vst [vmem:[%s4 + $0xac] sm:$0xf] %v1435
  %1500 = vst [vmem:[%s4 + $0xb0] sm:$0xf] %v1436
  %1501 = vst [vmem:[%s4 + $0xb4] sm:$0xf] %v1437
  %1502 = vst [vmem:[%s4 + $0xb8] sm:$0xf] %v1438
  %1503 = vst [vmem:[%s4 + $0xbc] sm:$0xf] %v1439
  %1504 = vst [vmem:[%s4 + $0xc0] sm:$0xf] %v1440
  %1505 = vst [vmem:[%s4 + $0xc4] sm:$0xf] %v1441
  %1506 = vst [vmem:[%s4 + $0xc8] sm:$0xf] %v1442
  %1507 = vst [vmem:[%s4 + $0xcc] sm:$0xf] %v1443
  %1508 = vst [vmem:[%s4 + $0xd0] sm:$0xf] %v1444
  %1509 = vst [vmem:[%s4 + $0xd4] sm:$0xf] %v1445
  %1510 = vst [vmem:[%s4 + $0xd8] sm:$0xf] %v1446
  %1511 = vst [vmem:[%s4 + $0xdc] sm:$0xf] %v1447
  %1512 = vst [vmem:[%s4 + $0xe0] sm:$0xf] %v1448
  %1513 = vst [vmem:[%s4 + $0xe4] sm:$0xf] %v1449
  %1514 = vst [vmem:[%s4 + $0xe8] sm:$0xf] %v1450
  %1515 = vst [vmem:[%s4 + $0xec] sm:$0xf] %v1451
  %1516 = vst [vmem:[%s4 + $0xf0] sm:$0xf] %v1452
  %1517 = vst [vmem:[%s4 + $0xf4] sm:$0xf] %v1453
  %1518 = vst [vmem:[%s4 + $0xf8] sm:$0xf] %v1454
  %1519 = vst [vmem:[%s4 + $0xfc] sm:$0xf] %v1455
  // Predicated region
  $region18: #{generator_forward.6} parent=0 // pred_check
    _
  $region19: #{generator_forward.6} parent=0 // pred_check_branch
    %1521 = sbr.rel (0) target = $region21
  $region20: #{generator_forward.6} parent=0 // pred_region
    _
  $region21: #{generator_forward.6} parent=0 // pred_fallthru
    _
  // Predicated region
  $region22: #{generator_forward.6} parent=0 // pred_check
    _
  $region23: #{generator_forward.6} parent=0 // pred_check_branch
    %1523 = sbr.rel (0) target = $region25
  $region24: #{generator_forward.6} parent=0 // pred_region
    _
  $region25: #{generator_forward.6} parent=0 // pred_fallthru
    _

// kernel: generator_forward.7
$region0: #{generator_forward.7}
  #allocation0 [shape = 'u32[]', space=smem, size = 0x4, offset = 0x4, fixed_abs, tag = 'smem constant byte address 0x4 - core index']
  #allocation1 [shape = 'u32[72,128]{1,0:T(1,128)}', space=vmem, size = 0x9000, scoped, tag = 'internal scratch']
  %s0 = inlined_call_operand.vmem [shape: bf16[4,512,32], index: 0, kind: input, shape index: {}]
  %s1 = inlined_call_operand.vmem [shape: bf16[4,32,128], index: 1, kind: input, shape index: {}]
  %s2 = inlined_call_operand.vmem [shape: f32[4,512,128], index: 2, kind: output, shape index: {}]
  %s3 = sld [smem:[#allocation0]]
  $region41: #{generator_forward.7} parent=0
    _
  %s5 = ssub.s32 1, %s3
  %s6 = scalar_select 0, %s5, %s3
  loop: start=0, step=1, limit=6
  $region2: #{generator_forward.7} parent=0 // loop_pre_header
    _
  $region3: #{generator_forward.7} parent=0 // loop_header
    %s8 = sphi 0, %s12
    %p9 = scmp.ge.s32.totalorder %s8, 6
    %s18 = sphi 0, %s20
    %s21 = sphi 0, %s18
    %s22 = sphi 0, %s21
    %s38 = sphi 0, %s22
    %s44 = sphi 0, %s46
    %s47 = sphi 0, %s44
    %s48 = sphi 0, %s47
    %s64 = sphi 0, %s48
    %s70 = sphi 0, %s72
    %s73 = sphi 0, %s70
    %s74 = sphi 0, %s73
    %s90 = sphi 0, %s74
  $region4: #{generator_forward.7} parent=0 // loop_header_branch
    %11 = sbr.rel (%p9) target = $region8
  $region5: #{generator_forward.7} parent=0 // loop_body
    %s13 = ssub.s32 %s8, 1
    %s14 = ssub.s32 %s8, 2
    %s15 = sadd.s32 %s8, 1
    %s16 = ssub.s32 %s8, %s15
    %p17 = scmp.eq.s32.totalorder %s16, 0
    %s19 = sadd.s32 %s18, 1
    %s20 = scalar_select %p17, %s18, %s19
    %p23 = pneg %p17
    %p24 = scmp.eq.s32.totalorder %s8, 3
    %p25 = por %p23, %p24
    %p26 = scmp.ne.s32.totalorder %s18, %s21
    %p27 = scmp.eq.s32.totalorder %s8, 0
    %p28 = por %p26, %p27
    %p29 = scmp.ne.s32.totalorder %s18, %s21
    %p30 = scmp.eq.s32.totalorder %s13, 3
    %p31 = por %p29, %p30
    %p32 = scmp.ne.s32.totalorder %s21, %s22
    %p33 = scmp.eq.s32.totalorder %s13, 0
    %p34 = por %p32, %p33
    %p35 = scmp.ne.s32.totalorder %s21, %s22
    %p36 = scmp.eq.s32.totalorder %s14, 3
    %p37 = por %p35, %p36
    %p39 = scmp.ne.s32.totalorder %s22, %s38
    %p40 = scmp.eq.s32.totalorder %s14, 0
    %p41 = por %p39, %p40
    %s42 = ssub.s32 %s8, %s15
    %p43 = scmp.eq.s32.totalorder %s42, 0
    %s45 = sadd.s32 %s44, 1
    %s46 = scalar_select %p43, %s44, %s45
    %p49 = pneg %p43
    %p50 = scmp.eq.s32.totalorder %s8, 3
    %p51 = por %p49, %p50
    %p52 = scmp.ne.s32.totalorder %s44, %s47
    %p53 = scmp.eq.s32.totalorder %s8, 0
    %p54 = por %p52, %p53
    %p55 = scmp.ne.s32.totalorder %s44, %s47
    %p56 = scmp.eq.s32.totalorder %s13, 3
    %p57 = por %p55, %p56
    %p58 = scmp.ne.s32.totalorder %s47, %s48
    %p59 = scmp.eq.s32.totalorder %s13, 0
    %p60 = por %p58, %p59
    %p61 = scmp.ne.s32.totalorder %s47, %s48
    %p62 = scmp.eq.s32.totalorder %s14, 3
    %p63 = por %p61, %p62
    %p65 = scmp.ne.s32.totalorder %s48, %s64
    %p66 = scmp.eq.s32.totalorder %s14, 0
    %p67 = por %p65, %p66
    %s68 = ssub.s32 %s8, %s15
    %p69 = scmp.eq.s32.totalorder %s68, 0
    %s71 = sadd.s32 %s70, 1
    %s72 = scalar_select %p69, %s70, %s71
    %p75 = pneg %p69
    %p76 = scmp.eq.s32.totalorder %s8, 3
    %p77 = por %p75, %p76
    %p78 = scmp.ne.s32.totalorder %s70, %s73
    %p79 = scmp.eq.s32.totalorder %s8, 0
    %p80 = por %p78, %p79
    %p81 = scmp.ne.s32.totalorder %s70, %s73
    %p82 = scmp.eq.s32.totalorder %s13, 3
    %p83 = por %p81, %p82
    %p84 = scmp.ne.s32.totalorder %s73, %s74
    %p85 = scmp.eq.s32.totalorder %s13, 0
    %p86 = por %p84, %p85
    %p87 = scmp.ne.s32.totalorder %s73, %s74
    %p88 = scmp.eq.s32.totalorder %s14, 3
    %p89 = por %p87, %p88
    %p91 = scmp.ne.s32.totalorder %s74, %s90
    %p92 = scmp.eq.s32.totalorder %s14, 0
    %p93 = por %p91, %p92
    %p94 = scmp.le.s32.totalorder 1, %s8
    %p95 = scmp.lt.s32.totalorder %s8, 5
    %p96 = pnand %p94, %p95
    %p97 = pneg %p96
    // Predicated region
    $region9: #{generator_forward.7} parent=5 // pred_check
      _
    $region10: #{generator_forward.7} parent=5 // pred_check_branch
      %99 = sbr.rel (%p96) target = $region12
    $region11: #{generator_forward.7} parent=5 // pred_region
      %s100 = ssub.s32 %s8, 1
    $region12: #{generator_forward.7} parent=5 // pred_fallthru
      _
    %p101 = scmp.lt.s32.totalorder %s8, 4
    // Predicated region
    $region13: #{generator_forward.7} parent=5 // pred_check
      %p102 = pneg %p101
    $region14: #{generator_forward.7} parent=5 // pred_check_branch
      %104 = sbr.rel (%p102) target = $region16
    $region15: #{generator_forward.7} parent=5 // pred_region
      // Predicated region
      $region17: #{generator_forward.7} parent=15 // pred_check
        %p105 = pneg %p28
      $region18: #{generator_forward.7} parent=15 // pred_check_branch
        %107 = sbr.rel (%p105) target = $region20
      $region19: #{generator_forward.7} parent=15 // pred_region
        %p108 = scmp.lt.s32.totalorder %s8, 3
        %s109 = scalar_select %p108, %s8, 3
        %s110 = smul.addr %s109, 64
        %s111 = smul.addr %s110, 4
        %s112 = scalar_lea.vmem %s0, %s111
      $region20: #{generator_forward.7} parent=15 // pred_fallthru
        _
      // Predicated region
      $region21: #{generator_forward.7} parent=15 // pred_check
        %p113 = pneg %p54
      $region22: #{generator_forward.7} parent=15 // pred_check_branch
        %115 = sbr.rel (%p113) target = $region24
      $region23: #{generator_forward.7} parent=15 // pred_region
        %p116 = scmp.lt.s32.totalorder %s8, 3
        %s117 = scalar_select %p116, %s8, 3
        %s118 = smul.addr %s117, 4
        %s119 = smul.addr %s118, 4
        %s120 = scalar_lea.vmem %s1, %s119
      $region24: #{generator_forward.7} parent=15 // pred_fallthru
        _
    $region16: #{generator_forward.7} parent=5 // pred_fallthru
      _
    %p121 = scmp.le.s32.totalorder 1, %s8
    %p122 = scmp.lt.s32.totalorder %s8, 5
    %p123 = pnand %p121, %p122
    %p124 = pneg %p123
    // Predicated region
    $region25: #{generator_forward.7} parent=5 // pred_check
      _
    $region26: #{generator_forward.7} parent=5 // pred_check_branch
      %126 = sbr.rel (%p123) target = $region28
    $region27: #{generator_forward.7} parent=5 // pred_region
      %s127 = ssub.s32 %s8, 1
      %p128 = scmp.lt.s32.totalorder %s13, 3
      %s129 = scalar_select %p128, %s13, 3
      %s130 = smul.addr %s129, 64
      %s131 = smul.addr %s130, 4
      %s132 = scalar_lea.vmem %s0, %s131
      %p133 = pneg %p34
      %p134 = pneg %p31
      %p135 = scmp.lt.s32.totalorder %s13, 3
      %s136 = scalar_select %p135, %s13, 3
      %s137 = smul.addr %s136, 4
      %s138 = smul.addr %s137, 4
      %s139 = scalar_lea.vmem %s1, %s138
      %p140 = pneg %p60
      %p141 = pneg %p57
      %p142 = pneg %p86
      %p143 = pneg %p83
      %p144 = scmp.lt.s32.totalorder %s13, 3
      %s145 = scalar_select %p144, %s13, 3
      %s146 = smul.addr %s145, 64
      %s147 = smul.addr %s146, 8
      %s148 = scalar_lea.vmem %s2, %s147
      %p149 = scmp.lt.s32.totalorder %s13, 3
      %s150 = scalar_select %p149, %s13, 3
      %s151 = smul.addr %s150, 64
      %s152 = smul.addr %s151, 4
      %s153 = scalar_lea.vmem %s0, %s152
      %p154 = scmp.lt.s32.totalorder %s13, 3
      %s155 = scalar_select %p154, %s13, 3
      %s156 = smul.addr %s155, 4
      %s157 = smul.addr %s156, 4
      %s158 = scalar_lea.vmem %s1, %s157
      %p159 = scmp.lt.s32.totalorder %s13, 3
      %s160 = scalar_select %p159, %s13, 3
      %s161 = smul.addr %s160, 64
      %s162 = smul.addr %s161, 8
      %s163 = scalar_lea.vmem %s2, %s162
      %v165 = vld [vmem:[%s153] sm:$0xf]
      %v166 = vld [vmem:[%s153 + $0x4] sm:$0xf]
      %v167 = vld [vmem:[%s153 + $0x8] sm:$0xf]
      %v168 = vld [vmem:[%s153 + $0xc] sm:$0xf]
      %v169 = vld [vmem:[%s153 + $0x10] sm:$0xf]
      %v170 = vld [vmem:[%s153 + $0x14] sm:$0xf]
      %v171 = vld [vmem:[%s153 + $0x18] sm:$0xf]
      %v172 = vld [vmem:[%s153 + $0x1c] sm:$0xf]
      %v173 = vld [vmem:[%s153 + $0x20] sm:$0xf]
      %v174 = vld [vmem:[%s153 + $0x24] sm:$0xf]
      %v175 = vld [vmem:[%s153 + $0x28] sm:$0xf]
      %v176 = vld [vmem:[%s153 + $0x2c] sm:$0xf]
      %v177 = vld [vmem:[%s153 + $0x30] sm:$0xf]
      %v178 = vld [vmem:[%s153 + $0x34] sm:$0xf]
      %v179 = vld [vmem:[%s153 + $0x38] sm:$0xf]
      %v180 = vld [vmem:[%s153 + $0x3c] sm:$0xf]
      %v181 = vld [vmem:[%s153 + $0x40] sm:$0xf]
      %v182 = vld [vmem:[%s153 + $0x44] sm:$0xf]
      %v183 = vld [vmem:[%s153 + $0x48] sm:$0xf]
      %v184 = vld [vmem:[%s153 + $0x4c] sm:$0xf]
      %v185 = vld [vmem:[%s153 + $0x50] sm:$0xf]
      %v186 = vld [vmem:[%s153 + $0x54] sm:$0xf]
      %v187 = vld [vmem:[%s153 + $0x58] sm:$0xf]
      %v188 = vld [vmem:[%s153 + $0x5c] sm:$0xf]
      %v189 = vld [vmem:[%s153 + $0x60] sm:$0xf]
      %v190 = vld [vmem:[%s153 + $0x64] sm:$0xf]
      %v191 = vld [vmem:[%s153 + $0x68] sm:$0xf]
      %v192 = vld [vmem:[%s153 + $0x6c] sm:$0xf]
      %v193 = vld [vmem:[%s153 + $0x70] sm:$0xf]
      %v194 = vld [vmem:[%s153 + $0x74] sm:$0xf]
      %v195 = vld [vmem:[%s153 + $0x78] sm:$0xf]
      %v196 = vld [vmem:[%s153 + $0x7c] sm:$0xf]
      %v197 = vld [vmem:[%s153 + $0x80] sm:$0xf]
      %v198 = vld [vmem:[%s153 + $0x84] sm:$0xf]
      %v199 = vld [vmem:[%s153 + $0x88] sm:$0xf]
      %v200 = vld [vmem:[%s153 + $0x8c] sm:$0xf]
      %v201 = vld [vmem:[%s153 + $0x90] sm:$0xf]
      %v202 = vld [vmem:[%s153 + $0x94] sm:$0xf]
      %v203 = vld [vmem:[%s153 + $0x98] sm:$0xf]
      %v204 = vld [vmem:[%s153 + $0x9c] sm:$0xf]
      %v205 = vld [vmem:[%s153 + $0xa0] sm:$0xf]
      %v206 = vld [vmem:[%s153 + $0xa4] sm:$0xf]
      %v207 = vld [vmem:[%s153 + $0xa8] sm:$0xf]
      %v208 = vld [vmem:[%s153 + $0xac] sm:$0xf]
      %v209 = vld [vmem:[%s153 + $0xb0] sm:$0xf]
      %v210 = vld [vmem:[%s153 + $0xb4] sm:$0xf]
      %v211 = vld [vmem:[%s153 + $0xb8] sm:$0xf]
      %v212 = vld [vmem:[%s153 + $0xbc] sm:$0xf]
      %v213 = vld [vmem:[%s153 + $0xc0] sm:$0xf]
      %v214 = vld [vmem:[%s153 + $0xc4] sm:$0xf]
      %v215 = vld [vmem:[%s153 + $0xc8] sm:$0xf]
      %v216 = vld [vmem:[%s153 + $0xcc] sm:$0xf]
      %v217 = vld [vmem:[%s153 + $0xd0] sm:$0xf]
      %v218 = vld [vmem:[%s153 + $0xd4] sm:$0xf]
      %v219 = vld [vmem:[%s153 + $0xd8] sm:$0xf]
      %v220 = vld [vmem:[%s153 + $0xdc] sm:$0xf]
      %v221 = vld [vmem:[%s153 + $0xe0] sm:$0xf]
      %v222 = vld [vmem:[%s153 + $0xe4] sm:$0xf]
      %v223 = vld [vmem:[%s153 + $0xe8] sm:$0xf]
      %v224 = vld [vmem:[%s153 + $0xec] sm:$0xf]
      %v225 = vld [vmem:[%s153 + $0xf0] sm:$0xf]
      %v226 = vld [vmem:[%s153 + $0xf4] sm:$0xf]
      %v227 = vld [vmem:[%s153 + $0xf8] sm:$0xf]
      %v228 = vld [vmem:[%s153 + $0xfc] sm:$0xf]
      %v229 = vld [vmem:[%s158] sm:$0xf]
      %v230 = vld [vmem:[%s158 + $0x4] sm:$0xf]
      %v231 = vld [vmem:[%s158 + $0x8] sm:$0xf]
      %v232 = vld [vmem:[%s158 + $0xc] sm:$0xf]
      %v297 = vunpack.c.l.b16 %v165
      %v298 = vunpack.c.l.b16 %v166
      %v299 = vunpack.c.l.b16 %v167
      %v300 = vunpack.c.l.b16 %v168
      %v301 = vunpack.c.l.b16 %v169
      %v302 = vunpack.c.l.b16 %v170
      %v303 = vunpack.c.l.b16 %v171
      %v304 = vunpack.c.l.b16 %v172
      %v305 = vunpack.c.l.b16 %v173
      %v306 = vunpack.c.l.b16 %v174
      %v307 = vunpack.c.l.b16 %v175
      %v308 = vunpack.c.l.b16 %v176
      %v309 = vunpack.c.l.b16 %v177
      %v310 = vunpack.c.l.b16 %v178
      %v311 = vunpack.c.l.b16 %v179
      %v312 = vunpack.c.l.b16 %v180
      %v313 = vunpack.c.l.b16 %v181
      %v314 = vunpack.c.l.b16 %v182
      %v315 = vunpack.c.l.b16 %v183
      %v316 = vunpack.c.l.b16 %v184
      %v317 = vunpack.c.l.b16 %v185
      %v318 = vunpack.c.l.b16 %v186
      %v319 = vunpack.c.l.b16 %v187
      %v320 = vunpack.c.l.b16 %v188
      %v321 = vunpack.c.l.b16 %v189
      %v322 = vunpack.c.l.b16 %v190
      %v323 = vunpack.c.l.b16 %v191
      %v324 = vunpack.c.l.b16 %v192
      %v325 = vunpack.c.l.b16 %v193
      %v326 = vunpack.c.l.b16 %v194
      %v327 = vunpack.c.l.b16 %v195
      %v328 = vunpack.c.l.b16 %v196
      %v329 = vunpack.c.l.b16 %v197
      %v330 = vunpack.c.l.b16 %v198
      %v331 = vunpack.c.l.b16 %v199
      %v332 = vunpack.c.l.b16 %v200
      %v333 = vunpack.c.l.b16 %v201
      %v334 = vunpack.c.l.b16 %v202
      %v335 = vunpack.c.l.b16 %v203
      %v336 = vunpack.c.l.b16 %v204
      %v337 = vunpack.c.l.b16 %v205
      %v338 = vunpack.c.l.b16 %v206
      %v339 = vunpack.c.l.b16 %v207
      %v340 = vunpack.c.l.b16 %v208
      %v341 = vunpack.c.l.b16 %v209
      %v342 = vunpack.c.l.b16 %v210
      %v343 = vunpack.c.l.b16 %v211
      %v344 = vunpack.c.l.b16 %v212
      %v345 = vunpack.c.l.b16 %v213
      %v346 = vunpack.c.l.b16 %v214
      %v347 = vunpack.c.l.b16 %v215
      %v348 = vunpack.c.l.b16 %v216
      %v349 = vunpack.c.l.b16 %v217
      %v350 = vunpack.c.l.b16 %v218
      %v351 = vunpack.c.l.b16 %v219
      %v352 = vunpack.c.l.b16 %v220
      %v353 = vunpack.c.l.b16 %v221
      %v354 = vunpack.c.l.b16 %v222
      %v355 = vunpack.c.l.b16 %v223
      %v356 = vunpack.c.l.b16 %v224
      %v357 = vunpack.c.l.b16 %v225
      %v358 = vunpack.c.l.b16 %v226
      %v359 = vunpack.c.l.b16 %v227
      %v360 = vunpack.c.l.b16 %v228
      %v361 = vpack.c.b16 %v298, %v297
      %v362 = vpack.c.b16 %v300, %v299
      %v363 = vpack.c.b16 %v302, %v301
      %v364 = vpack.c.b16 %v304, %v303
      %v365 = vpack.c.b16 %v306, %v305
      %v366 = vpack.c.b16 %v308, %v307
      %v367 = vpack.c.b16 %v310, %v309
      %v368 = vpack.c.b16 %v312, %v311
      %v369 = vpack.c.b16 %v314, %v313
      %v370 = vpack.c.b16 %v316, %v315
      %v371 = vpack.c.b16 %v318, %v317
      %v372 = vpack.c.b16 %v320, %v319
      %v373 = vpack.c.b16 %v322, %v321
      %v374 = vpack.c.b16 %v324, %v323
      %v375 = vpack.c.b16 %v326, %v325
      %v376 = vpack.c.b16 %v328, %v327
      %v377 = vpack.c.b16 %v330, %v329
      %v378 = vpack.c.b16 %v332, %v331
      %v379 = vpack.c.b16 %v334, %v333
      %v380 = vpack.c.b16 %v336, %v335
      %v381 = vpack.c.b16 %v338, %v337
      %v382 = vpack.c.b16 %v340, %v339
      %v383 = vpack.c.b16 %v342, %v341
      %v384 = vpack.c.b16 %v344, %v343
      %v385 = vpack.c.b16 %v346, %v345
      %v386 = vpack.c.b16 %v348, %v347
      %v387 = vpack.c.b16 %v350, %v349
      %v388 = vpack.c.b16 %v352, %v351
      %v389 = vpack.c.b16 %v354, %v353
      %v390 = vpack.c.b16 %v356, %v355
      %v391 = vpack.c.b16 %v358, %v357
      %v392 = vpack.c.b16 %v360, %v359
      %v397 = vunpack.c.l.b16 %v229
      %v398 = vunpack.c.l.b16 %v230
      %v399 = vunpack.c.l.b16 %v231
      %v400 = vunpack.c.l.b16 %v232
      %v401 = vpack.c.b16 %v398, %v397
      %v402 = vpack.c.b16 %v400, %v399
      %vm405 = vcmask 261120
      %v407 = vsel %vm405, %v361, 0
      %v410 = vsel %vm405, %v362, 0
      %v413 = vsel %vm405, %v363, 0
      %v416 = vsel %vm405, %v364, 0
      %v419 = vsel %vm405, %v365, 0
      %v422 = vsel %vm405, %v366, 0
      %v425 = vsel %vm405, %v367, 0
      %v428 = vsel %vm405, %v368, 0
      %v431 = vsel %vm405, %v369, 0
      %v434 = vsel %vm405, %v370, 0
      %v437 = vsel %vm405, %v371, 0
      %v440 = vsel %vm405, %v372, 0
      %v443 = vsel %vm405, %v373, 0
      %v446 = vsel %vm405, %v374, 0
      %v449 = vsel %vm405, %v375, 0
      %v452 = vsel %vm405, %v376, 0
      %v455 = vsel %vm405, %v377, 0
      %v458 = vsel %vm405, %v378, 0
      %v461 = vsel %vm405, %v379, 0
      %v464 = vsel %vm405, %v380, 0
      %v467 = vsel %vm405, %v381, 0
      %v470 = vsel %vm405, %v382, 0
      %v473 = vsel %vm405, %v383, 0
      %v476 = vsel %vm405, %v384, 0
      %v479 = vsel %vm405, %v385, 0
      %v482 = vsel %vm405, %v386, 0
      %v485 = vsel %vm405, %v387, 0
      %v488 = vsel %vm405, %v388, 0
      %v491 = vsel %vm405, %v389, 0
      %v494 = vsel %vm405, %v390, 0
      %v497 = vsel %vm405, %v391, 0
      %v500 = vsel %vm405, %v392, 0
      %502 = vmatpush.bf16.msra.mxu0 0
      %503 = vmatpush.bf16.msra.mxu0 0
      %504 = vmatpush.bf16.msra.mxu0 0
      %505 = vmatpush.bf16.msra.mxu0 0
      %506 = vmatpush.bf16.msra.mxu0 0
      %507 = vmatpush.bf16.msra.mxu0 0
      %508 = vmatpush.bf16.msra.mxu0 %v402
      %509 = vmatpush.bf16.msra.mxu0 %v401
      %510 = vmatmul.bf16.gmra.mxu0 %v407
      %v511 = vpop.f32.mrf.mxu0
      %v512 = vadd.f32 0.0, %v511
      %v513 = vpop.f32.mrf.mxu0
      %v514 = vadd.f32 0.0, %v513
      %515 = vmatmul.bf16.gmra.mxu0 %v410
      %v516 = vpop.f32.mrf.mxu0
      %v517 = vadd.f32 0.0, %v516
      %v518 = vpop.f32.mrf.mxu0
      %v519 = vadd.f32 0.0, %v518
      %520 = vmatmul.bf16.gmra.mxu0 %v413
      %v521 = vpop.f32.mrf.mxu0
      %v522 = vadd.f32 0.0, %v521
      %v523 = vpop.f32.mrf.mxu0
      %v524 = vadd.f32 0.0, %v523
      %525 = vmatmul.bf16.gmra.mxu0 %v416
      %v526 = vpop.f32.mrf.mxu0
      %v527 = vadd.f32 0.0, %v526
      %v528 = vpop.f32.mrf.mxu0
      %v529 = vadd.f32 0.0, %v528
      %530 = vmatmul.bf16.gmra.mxu0 %v419
      %v531 = vpop.f32.mrf.mxu0
      %v532 = vadd.f32 0.0, %v531
      %v533 = vpop.f32.mrf.mxu0
      %v534 = vadd.f32 0.0, %v533
      %535 = vmatmul.bf16.gmra.mxu0 %v422
      %v536 = vpop.f32.mrf.mxu0
      %v537 = vadd.f32 0.0, %v536
      %v538 = vpop.f32.mrf.mxu0
      %v539 = vadd.f32 0.0, %v538
      %540 = vmatmul.bf16.gmra.mxu0 %v425
      %v541 = vpop.f32.mrf.mxu0
      %v542 = vadd.f32 0.0, %v541
      %v543 = vpop.f32.mrf.mxu0
      %v544 = vadd.f32 0.0, %v543
      %545 = vmatmul.bf16.gmra.mxu0 %v428
      %v546 = vpop.f32.mrf.mxu0
      %v547 = vadd.f32 0.0, %v546
      %v548 = vpop.f32.mrf.mxu0
      %v549 = vadd.f32 0.0, %v548
      %550 = vmatmul.bf16.gmra.mxu0 %v431
      %v551 = vpop.f32.mrf.mxu0
      %v552 = vadd.f32 0.0, %v551
      %v553 = vpop.f32.mrf.mxu0
      %v554 = vadd.f32 0.0, %v553
      %555 = vmatmul.bf16.gmra.mxu0 %v434
      %v556 = vpop.f32.mrf.mxu0
      %v557 = vadd.f32 0.0, %v556
      %v558 = vpop.f32.mrf.mxu0
      %v559 = vadd.f32 0.0, %v558
      %560 = vmatmul.bf16.gmra.mxu0 %v437
      %v561 = vpop.f32.mrf.mxu0
      %v562 = vadd.f32 0.0, %v561
      %v563 = vpop.f32.mrf.mxu0
      %v564 = vadd.f32 0.0, %v563
      %565 = vmatmul.bf16.gmra.mxu0 %v440
      %v566 = vpop.f32.mrf.mxu0
      %v567 = vadd.f32 0.0, %v566
      %v568 = vpop.f32.mrf.mxu0
      %v569 = vadd.f32 0.0, %v568
      %570 = vmatmul.bf16.gmra.mxu0 %v443
      %v571 = vpop.f32.mrf.mxu0
      %v572 = vadd.f32 0.0, %v571
      %v573 = vpop.f32.mrf.mxu0
      %v574 = vadd.f32 0.0, %v573
      %575 = vmatmul.bf16.gmra.mxu0 %v446
      %v576 = vpop.f32.mrf.mxu0
      %v577 = vadd.f32 0.0, %v576
      %v578 = vpop.f32.mrf.mxu0
      %v579 = vadd.f32 0.0, %v578
      %580 = vmatmul.bf16.gmra.mxu0 %v449
      %v581 = vpop.f32.mrf.mxu0
      %v582 = vadd.f32 0.0, %v581
      %v583 = vpop.f32.mrf.mxu0
      %v584 = vadd.f32 0.0, %v583
      %585 = vmatmul.bf16.gmra.mxu0 %v452
      %v586 = vpop.f32.mrf.mxu0
      %v587 = vadd.f32 0.0, %v586
      %v588 = vpop.f32.mrf.mxu0
      %v589 = vadd.f32 0.0, %v588
      %590 = vmatmul.bf16.gmra.mxu0 %v455
      %v591 = vpop.f32.mrf.mxu0
      %v592 = vadd.f32 0.0, %v591
      %v593 = vpop.f32.mrf.mxu0
      %v594 = vadd.f32 0.0, %v593
      %595 = vmatmul.bf16.gmra.mxu0 %v458
      %v596 = vpop.f32.mrf.mxu0
      %v597 = vadd.f32 0.0, %v596
      %v598 = vpop.f32.mrf.mxu0
      %v599 = vadd.f32 0.0, %v598
      %600 = vmatmul.bf16.gmra.mxu0 %v461
      %v601 = vpop.f32.mrf.mxu0
      %v602 = vadd.f32 0.0, %v601
      %v603 = vpop.f32.mrf.mxu0
      %v604 = vadd.f32 0.0, %v603
      %605 = vmatmul.bf16.gmra.mxu0 %v464
      %v606 = vpop.f32.mrf.mxu0
      %v607 = vadd.f32 0.0, %v606
      %v608 = vpop.f32.mrf.mxu0
      %v609 = vadd.f32 0.0, %v608
      %610 = vmatmul.bf16.gmra.mxu0 %v467
      %v611 = vpop.f32.mrf.mxu0
      %v612 = vadd.f32 0.0, %v611
      %v613 = vpop.f32.mrf.mxu0
      %v614 = vadd.f32 0.0, %v613
      %615 = vmatmul.bf16.gmra.mxu0 %v470
      %v616 = vpop.f32.mrf.mxu0
      %v617 = vadd.f32 0.0, %v616
      %v618 = vpop.f32.mrf.mxu0
      %v619 = vadd.f32 0.0, %v618
      %620 = vmatmul.bf16.gmra.mxu0 %v473
      %v621 = vpop.f32.mrf.mxu0
      %v622 = vadd.f32 0.0, %v621
      %v623 = vpop.f32.mrf.mxu0
      %v624 = vadd.f32 0.0, %v623
      %625 = vmatmul.bf16.gmra.mxu0 %v476
      %v626 = vpop.f32.mrf.mxu0
      %v627 = vadd.f32 0.0, %v626
      %v628 = vpop.f32.mrf.mxu0
      %v629 = vadd.f32 0.0, %v628
      %630 = vmatmul.bf16.gmra.mxu0 %v479
      %v631 = vpop.f32.mrf.mxu0
      %v632 = vadd.f32 0.0, %v631
      %v633 = vpop.f32.mrf.mxu0
      %v634 = vadd.f32 0.0, %v633
      %635 = vmatmul.bf16.gmra.mxu0 %v482
      %v636 = vpop.f32.mrf.mxu0
      %v637 = vadd.f32 0.0, %v636
      %v638 = vpop.f32.mrf.mxu0
      %v639 = vadd.f32 0.0, %v638
      %640 = vmatmul.bf16.gmra.mxu0 %v485
      %v641 = vpop.f32.mrf.mxu0
      %v642 = vadd.f32 0.0, %v641
      %v643 = vpop.f32.mrf.mxu0
      %v644 = vadd.f32 0.0, %v643
      %645 = vmatmul.bf16.gmra.mxu0 %v488
      %v646 = vpop.f32.mrf.mxu0
      %v647 = vadd.f32 0.0, %v646
      %v648 = vpop.f32.mrf.mxu0
      %v649 = vadd.f32 0.0, %v648
      %650 = vmatmul.bf16.gmra.mxu0 %v491
      %v651 = vpop.f32.mrf.mxu0
      %v652 = vadd.f32 0.0, %v651
      %v653 = vpop.f32.mrf.mxu0
      %v654 = vadd.f32 0.0, %v653
      %655 = vmatmul.bf16.gmra.mxu0 %v494
      %v656 = vpop.f32.mrf.mxu0
      %v657 = vadd.f32 0.0, %v656
      %v658 = vpop.f32.mrf.mxu0
      %v659 = vadd.f32 0.0, %v658
      %660 = vmatmul.bf16.gmra.mxu0 %v497
      %v661 = vpop.f32.mrf.mxu0
      %v662 = vadd.f32 0.0, %v661
      %v663 = vpop.f32.mrf.mxu0
      %v664 = vadd.f32 0.0, %v663
      %665 = vmatmul.bf16.gmra.mxu0 %v500
      %v666 = vpop.f32.mrf.mxu0
      %v667 = vadd.f32 0.0, %v666
      %v668 = vpop.f32.mrf.mxu0
      %v669 = vadd.f32 0.0, %v668
      %670 = vdwg.mxu0
      %v671 = vtanh.pop %v512
      %v672 = vtanh.pop %v514
      %v673 = vtanh.pop %v517
      %v674 = vtanh.pop %v519
      %v675 = vtanh.pop %v522
      %v676 = vtanh.pop %v524
      %v677 = vtanh.pop %v527
      %v678 = vtanh.pop %v529
      %v679 = vtanh.pop %v532
      %v680 = vtanh.pop %v534
      %v681 = vtanh.pop %v537
      %v682 = vtanh.pop %v539
      %v683 = vtanh.pop %v542
      %v684 = vtanh.pop %v544
      %v685 = vtanh.pop %v547
      %v686 = vtanh.pop %v549
      %v687 = vtanh.pop %v552
      %v688 = vtanh.pop %v554
      %v689 = vtanh.pop %v557
      %v690 = vtanh.pop %v559
      %v691 = vtanh.pop %v562
      %v692 = vtanh.pop %v564
      %v693 = vtanh.pop %v567
      %v694 = vtanh.pop %v569
      %v695 = vtanh.pop %v572
      %v696 = vtanh.pop %v574
      %v697 = vtanh.pop %v577
      %v698 = vtanh.pop %v579
      %v699 = vtanh.pop %v582
      %v700 = vtanh.pop %v584
      %v701 = vtanh.pop %v587
      %v702 = vtanh.pop %v589
      %v703 = vtanh.pop %v592
      %v704 = vtanh.pop %v594
      %v705 = vtanh.pop %v597
      %v706 = vtanh.pop %v599
      %v707 = vtanh.pop %v602
      %v708 = vtanh.pop %v604
      %v709 = vtanh.pop %v607
      %v710 = vtanh.pop %v609
      %v711 = vtanh.pop %v612
      %v712 = vtanh.pop %v614
      %v713 = vtanh.pop %v617
      %v714 = vtanh.pop %v619
      %v715 = vtanh.pop %v622
      %v716 = vtanh.pop %v624
      %v717 = vtanh.pop %v627
      %v718 = vtanh.pop %v629
      %v719 = vtanh.pop %v632
      %v720 = vtanh.pop %v634
      %v721 = vtanh.pop %v637
      %v722 = vtanh.pop %v639
      %v723 = vtanh.pop %v642
      %v724 = vtanh.pop %v644
      %v725 = vtanh.pop %v647
      %v726 = vtanh.pop %v649
      %v727 = vtanh.pop %v652
      %v728 = vtanh.pop %v654
      %v729 = vtanh.pop %v657
      %v730 = vtanh.pop %v659
      %v731 = vtanh.pop %v662
      %v732 = vtanh.pop %v664
      %v733 = vtanh.pop %v667
      %v734 = vtanh.pop %v669
      %735 = vst [vmem:[%s163] sm:$0xff] %v671
      %736 = vst [vmem:[%s163 + $0x8] sm:$0xff] %v672
      %737 = vst [vmem:[%s163 + $0x10] sm:$0xff] %v673
      %738 = vst [vmem:[%s163 + $0x18] sm:$0xff] %v674
      %739 = vst [vmem:[%s163 + $0x20] sm:$0xff] %v675
      %740 = vst [vmem:[%s163 + $0x28] sm:$0xff] %v676
      %741 = vst [vmem:[%s163 + $0x30] sm:$0xff] %v677
      %742 = vst [vmem:[%s163 + $0x38] sm:$0xff] %v678
      %743 = vst [vmem:[%s163 + $0x40] sm:$0xff] %v679
      %744 = vst [vmem:[%s163 + $0x48] sm:$0xff] %v680
      %745 = vst [vmem:[%s163 + $0x50] sm:$0xff] %v681
      %746 = vst [vmem:[%s163 + $0x58] sm:$0xff] %v682
      %747 = vst [vmem:[%s163 + $0x60] sm:$0xff] %v683
      %748 = vst [vmem:[%s163 + $0x68] sm:$0xff] %v684
      %749 = vst [vmem:[%s163 + $0x70] sm:$0xff] %v685
      %750 = vst [vmem:[%s163 + $0x78] sm:$0xff] %v686
      %751 = vst [vmem:[%s163 + $0x80] sm:$0xff] %v687
      %752 = vst [vmem:[%s163 + $0x88] sm:$0xff] %v688
      %753 = vst [vmem:[%s163 + $0x90] sm:$0xff] %v689
      %754 = vst [vmem:[%s163 + $0x98] sm:$0xff] %v690
      %755 = vst [vmem:[%s163 + $0xa0] sm:$0xff] %v691
      %756 = vst [vmem:[%s163 + $0xa8] sm:$0xff] %v692
      %757 = vst [vmem:[%s163 + $0xb0] sm:$0xff] %v693
      %758 = vst [vmem:[%s163 + $0xb8] sm:$0xff] %v694
      %759 = vst [vmem:[%s163 + $0xc0] sm:$0xff] %v695
      %760 = vst [vmem:[%s163 + $0xc8] sm:$0xff] %v696
      %761 = vst [vmem:[%s163 + $0xd0] sm:$0xff] %v697
      %762 = vst [vmem:[%s163 + $0xd8] sm:$0xff] %v698
      %763 = vst [vmem:[%s163 + $0xe0] sm:$0xff] %v699
      %764 = vst [vmem:[%s163 + $0xe8] sm:$0xff] %v700
      %765 = vst [vmem:[%s163 + $0xf0] sm:$0xff] %v701
      %766 = vst [vmem:[%s163 + $0xf8] sm:$0xff] %v702
      %767 = vst [vmem:[%s163 + $0x100] sm:$0xff] %v703
      %768 = vst [vmem:[%s163 + $0x108] sm:$0xff] %v704
      %769 = vst [vmem:[%s163 + $0x110] sm:$0xff] %v705
      %770 = vst [vmem:[%s163 + $0x118] sm:$0xff] %v706
      %771 = vst [vmem:[%s163 + $0x120] sm:$0xff] %v707
      %772 = vst [vmem:[%s163 + $0x128] sm:$0xff] %v708
      %773 = vst [vmem:[%s163 + $0x130] sm:$0xff] %v709
      %774 = vst [vmem:[%s163 + $0x138] sm:$0xff] %v710
      %775 = vst [vmem:[%s163 + $0x140] sm:$0xff] %v711
      %776 = vst [vmem:[%s163 + $0x148] sm:$0xff] %v712
      %777 = vst [vmem:[%s163 + $0x150] sm:$0xff] %v713
      %778 = vst [vmem:[%s163 + $0x158] sm:$0xff] %v714
      %779 = vst [vmem:[%s163 + $0x160] sm:$0xff] %v715
      %780 = vst [vmem:[%s163 + $0x168] sm:$0xff] %v716
      %781 = vst [vmem:[%s163 + $0x170] sm:$0xff] %v717
      %782 = vst [vmem:[%s163 + $0x178] sm:$0xff] %v718
      %783 = vst [vmem:[%s163 + $0x180] sm:$0xff] %v719
      %784 = vst [vmem:[%s163 + $0x188] sm:$0xff] %v720
      %785 = vst [vmem:[%s163 + $0x190] sm:$0xff] %v721
      %786 = vst [vmem:[%s163 + $0x198] sm:$0xff] %v722
      %787 = vst [vmem:[%s163 + $0x1a0] sm:$0xff] %v723
      %788 = vst [vmem:[%s163 + $0x1a8] sm:$0xff] %v724
      %789 = vst [vmem:[%s163 + $0x1b0] sm:$0xff] %v725
      %790 = vst [vmem:[%s163 + $0x1b8] sm:$0xff] %v726
      %791 = vst [vmem:[%s163 + $0x1c0] sm:$0xff] %v727
      %792 = vst [vmem:[%s163 + $0x1c8] sm:$0xff] %v728
      %793 = vst [vmem:[%s163 + $0x1d0] sm:$0xff] %v729
      %794 = vst [vmem:[%s163 + $0x1d8] sm:$0xff] %v730
      %795 = vst [vmem:[%s163 + $0x1e0] sm:$0xff] %v731
      %796 = vst [vmem:[%s163 + $0x1e8] sm:$0xff] %v732
      %797 = vst [vmem:[%s163 + $0x1f0] sm:$0xff] %v733
      %798 = vst [vmem:[%s163 + $0x1f8] sm:$0xff] %v734
      %p799 = scmp.lt.s32.totalorder %s13, 3
      %s800 = scalar_select %p799, %s13, 3
      %s801 = smul.addr %s800, 64
      %s802 = smul.addr %s801, 8
      %s803 = scalar_lea.vmem %s2, %s802
      // Predicated region
      $region29: #{generator_forward.7} parent=27 // pred_check
        %p804 = pneg %p83
      $region30: #{generator_forward.7} parent=27 // pred_check_branch
        %806 = sbr.rel (%p804) target = $region32
      $region31: #{generator_forward.7} parent=27 // pred_region
        _
      $region32: #{generator_forward.7} parent=27 // pred_fallthru
        _
    $region28: #{generator_forward.7} parent=5 // pred_fallthru
      _
    %p807 = scmp.le.s32.totalorder 2, %s8
    // Predicated region
    $region33: #{generator_forward.7} parent=5 // pred_check
      %p808 = pneg %p807
    $region34: #{generator_forward.7} parent=5 // pred_check_branch
      %810 = sbr.rel (%p808) target = $region36
    $region35: #{generator_forward.7} parent=5 // pred_region
      %s811 = ssub.s32 %s8, 2
      // Predicated region
      $region37: #{generator_forward.7} parent=35 // pred_check
        %p812 = pneg %p89
      $region38: #{generator_forward.7} parent=35 // pred_check_branch
        %814 = sbr.rel (%p812) target = $region40
      $region39: #{generator_forward.7} parent=35 // pred_region
        %p815 = scmp.lt.s32.totalorder %s14, 3
        %s816 = scalar_select %p815, %s14, 3
        %s817 = smul.addr %s816, 64
        %s818 = smul.addr %s817, 8
        %s819 = scalar_lea.vmem %s2, %s818
      $region40: #{generator_forward.7} parent=35 // pred_fallthru
        _
    $region36: #{generator_forward.7} parent=5 // pred_fallthru
      _
  $region6: #{generator_forward.7} parent=0 // loop_footer
    %s12 = sadd.s32 1, %s8
  $region7: #{generator_forward.7} parent=0 // loop_footer_branch
    %7 = sbr.rel target = $region3
  $region8: #{generator_forward.7} parent=0 // loop_exit
    _

</llo_original>
